<compile_context>
chip_gen: v7x
topology: tpu7x:2x2x1
jax: 0.10.0
libtpu: 0.0.40
codegen_flags: <defaults>
</compile_context>

<pallas_src>
import jax
import jax.numpy as jnp
from jax import lax
from jax.experimental import pallas as pl
from jax.experimental.pallas import tpu as pltpu


def _seg_head_kernel(x_ref, w1_ref, b1_ref, w2_ref, b2_ref, w3t_ref, b3_ref,
                     out_ref, h1pad_ref):
    # Per grid step (nb batch items):
    #   x_ref     : (nb, H+2, W+2, Cin)  bf16  zero-padded NHWC input
    #   w1_ref    : (9*Cin, Cm)          bf16  full-3x3 im2col weights (BN1 folded)
    #   b1_ref    : (1, Cm)              f32
    #   w2_ref    : (3, 3*Cm, Cm)        bf16  ky-major width-im2col slabs (BN2 folded)
    #   b2_ref    : (1, Cm)              f32
    #   w3t_ref   : (Co, Cm)             bf16  transposed 1x1 conv weights
    #   b3_ref    : (Co, 1)              f32
    #   out_ref   : (Co, nb*H*W)         f32   lane-dense output block
    #   h1pad_ref : (nb, H+2, W+4, Cm)   bf16  scratch; data lives in cols [2:W+2]
    nb, Hp, _, Cin = x_ref.shape
    H = Hp - 2
    W = x_ref.shape[2] - 2
    Cm = w1_ref.shape[1]
    M = nb * H * W
    f32 = jnp.float32
    bf16 = jnp.bfloat16

    # ---- conv1 (3x3, pad=1) + folded-BN1 bias + ReLU ------------------------
    # im2col directly in bf16; kx and ky folded into K = 9*Cin -> one dot.
    x = x_ref[...]                                                # bf16
    xc = jnp.concatenate(
        [x[:, :, 0:W, :], x[:, :, 1:W + 1, :], x[:, :, 2:W + 2, :]],
        axis=-1)                                                  # (nb, H+2, W, 3*Cin)
    xf = jnp.concatenate(
        [xc[:, 0:H], xc[:, 1:H + 1], xc[:, 2:H + 2]], axis=-1)    # (nb, H, W, 9*Cin)
    acc1 = jnp.dot(xf.reshape(M, 9 * Cin), w1_ref[...],
                   preferred_element_type=f32)                    # (M, Cm)
    h1 = jnp.maximum(acc1 + b1_ref[...], 0.0)                     # f32

    # ---- conv2 (3x3, pad=1) + folded-BN2 bias + ReLU ------------------------
    # bf16 padded scratch: zero ring via 4 aligned strip stores, interior store
    # at column offset 2 (aligned to the bf16 sublane packing). No full-buffer
    # zero pass and no iota mask.
    Wp2 = W + 4
    h1pad_ref[:, 0:1, :, :] = jnp.zeros((nb, 1, Wp2, Cm), bf16)
    h1pad_ref[:, H + 1:H + 2, :, :] = jnp.zeros((nb, 1, Wp2, Cm), bf16)
    h1pad_ref[:, :, 0:2, :] = jnp.zeros((nb, Hp, 2, Cm), bf16)
    h1pad_ref[:, :, W + 2:W + 4, :] = jnp.zeros((nb, Hp, 2, Cm), bf16)
    h1pad_ref[:, 1:H + 1, 2:W + 2, :] = h1.astype(bf16).reshape(nb, H, W, Cm)

    h1p = h1pad_ref[...]                                          # (nb, H+2, W+4, Cm) bf16
    h1c = jnp.concatenate(
        [h1p[:, :, 1:W + 1, :], h1p[:, :, 2:W + 2, :], h1p[:, :, 3:W + 3, :]],
        axis=-1)                                                  # (nb, H+2, W, 3*Cm)
    acc2 = jnp.dot(h1c[:, 0:H].reshape(M, 3 * Cm), w2_ref[0],
                   preferred_element_type=f32)
    acc2 = acc2 + jnp.dot(h1c[:, 1:H + 1].reshape(M, 3 * Cm), w2_ref[1],
                          preferred_element_type=f32)
    acc2 = acc2 + jnp.dot(h1c[:, 2:H + 2].reshape(M, 3 * Cm), w2_ref[2],
                          preferred_element_type=f32)
    h2 = jnp.maximum(acc2 + b2_ref[...], 0.0)                     # (M, Cm) f32

    # ---- conv3 (1x1, bias), computed transposed for a lane-dense store ------
    # out_t[co, p] = sum_c w3t[co, c] * h2[p, c]  (NT contraction on the MXU)
    out_t = lax.dot_general(w3t_ref[...], h2.astype(bf16),
                            (((1,), (1,)), ((), ())),
                            preferred_element_type=f32)           # (Co, M)
    out_ref[...] = (out_t + b3_ref[...]).astype(out_ref.dtype)


def _pick_nb(n, cap=8):
    # Largest divisor of N that is <= cap: amortises per-grid-step overhead
    # (batch folded into the matmul M dim) while keeping the per-step block
    # small enough for v7x's 64 MiB VMEM.
    for nb in range(min(n, cap), 0, -1):
        if n % nb == 0:
            return nb
    return 1


@jax.jit
def aux_semantic_seg_head(x_nchw, w1s, b1, w2s, b2, w3t, b3):
    """x_nchw: (N, Cin, H, W) f32 -> (N, num_classes+1, H, W) f32."""
    N, Cin, H, W = x_nchw.shape
    Cm = w1s.shape[1]
    Co = w3t.shape[0]
    nb = _pick_nb(N)

    # NCHW -> NHWC, zero-pad spatial by 1, bf16 for DMA / MXU operands.
    x_nhwc = jnp.transpose(x_nchw, (0, 2, 3, 1))
    x_pad = jnp.pad(x_nhwc, ((0, 0), (1, 1), (1, 1), (0, 0))).astype(jnp.bfloat16)

    out_t = pl.pallas_call(
        _seg_head_kernel,
        out_shape=jax.ShapeDtypeStruct((Co, N * H * W), jnp.float32),
        grid_spec=pltpu.PrefetchScalarGridSpec(
            num_scalar_prefetch=0,
            grid=(N // nb,),
            in_specs=[
                pl.BlockSpec((nb, H + 2, W + 2, Cin), lambda n: (n, 0, 0, 0)),
                pl.BlockSpec((9 * Cin, Cm), lambda n: (0, 0)),
                pl.BlockSpec((1, Cm), lambda n: (0, 0)),
                pl.BlockSpec((3, 3 * Cm, Cm), lambda n: (0, 0, 0)),
                pl.BlockSpec((1, Cm), lambda n: (0, 0)),
                pl.BlockSpec((Co, Cm), lambda n: (0, 0)),
                pl.BlockSpec((Co, 1), lambda n: (0, 0)),
            ],
            # Lane-dense output block: nb*H*W (a multiple of 128 here) on lanes.
            out_specs=pl.BlockSpec((Co, nb * H * W), lambda n: (0, n)),
            scratch_shapes=[pltpu.VMEM((nb, H + 2, W + 4, Cm), jnp.bfloat16)],
        ),
        compiler_params=pltpu.CompilerParams(
            dimension_semantics=("parallel",),
            # Plenty for these block sizes; raise for large H-tiles on v5e/v6e.
            vmem_limit_bytes=32 * 1024 * 1024),
    )(x_pad, w1s, b1, w2s, b2, w3t, b3)

    # (Co, N*H*W) -> (N, Co, H, W) to match PyTorch NCHW.
    return jnp.transpose(out_t.reshape(Co, N, H, W), (1, 0, 2, 3))


def _fold_bn(gamma, beta, mean, var, eps=1e-5):
    scale = gamma / jnp.sqrt(var + eps)
    bias = beta - mean * scale
    return scale, bias


def prepare_params(w1_hwio, w2_hwio, w3, b3, bn1, bn2, eps=1e-5):
    """Fold BN scale into conv weights and build kernel-ready operands.

    w1_hwio: (3,3,Cin,Cm), w2_hwio: (3,3,Cm,Cm), w3: (Cm,Co), b3: (Co,),
    bn1/bn2 = (gamma, beta, running_mean, running_var).

    Returns:
      w1s : (9*Cin, Cm) bf16   full-3x3 im2col weights, (ky,kx,ci) row-major
      b1  : (1, Cm)     f32    folded BN1 bias
      w2s : (3, 3*Cm, Cm) bf16 ky-major width-im2col slabs
      b2  : (1, Cm)     f32    folded BN2 bias
      w3t : (Co, Cm)    bf16   transposed 1x1 weights
      b3  : (Co, 1)     f32
    """
    s1, bb1 = _fold_bn(*bn1, eps=eps)
    s2, bb2 = _fold_bn(*bn2, eps=eps)
    Cin, Cm = w1_hwio.shape[2], w1_hwio.shape[3]
    Co = w3.shape[1]
    w1s = (w1_hwio * s1).reshape(9 * Cin, Cm).astype(jnp.bfloat16)
    w2s = (w2_hwio * s2).reshape(3, 3 * Cm, Cm).astype(jnp.bfloat16)
    w3t = jnp.transpose(w3).astype(jnp.bfloat16)
    return (w1s, bb1.reshape(1, Cm).astype(jnp.float32),
            w2s, bb2.reshape(1, Cm).astype(jnp.float32),
            w3t, b3.reshape(Co, 1).astype(jnp.float32))


@jax.jit
def _reference(x_nchw, w1s, b1, w2s, b2, w3t, b3):
    # Pure-JAX reference of the same folded, bf16-quantized computation with
    # f32 accumulation (lax convs), for validating the Pallas kernel.
    f32, bf16 = jnp.float32, jnp.bfloat16
    Cin = w1s.shape[0] // 9
    Cm = w1s.shape[1]
    Co = w3t.shape[0]
    w1h = w1s.astype(f32).reshape(3, 3, Cin, Cm)
    w2h = w2s.astype(f32).reshape(3, 3, Cm, Cm)
    dn = ('NHWC', 'HWIO', 'NHWC')
    x = jnp.transpose(x_nchw, (0, 2, 3, 1)).astype(bf16).astype(f32)
    h = lax.conv_general_dilated(x, w1h, (1, 1), 'SAME', dimension_numbers=dn)
    h = jnp.maximum(h + b1, 0.0).astype(bf16).astype(f32)
    h = lax.conv_general_dilated(h, w2h, (1, 1), 'SAME', dimension_numbers=dn)
    h = jnp.maximum(h + b2, 0.0).astype(bf16).astype(f32)
    out = jnp.matmul(h, jnp.transpose(w3t).astype(f32)) + b3.reshape(Co)
    return jnp.transpose(out, (0, 3, 1, 2))


if __name__ == "__main__":
    # Small, deterministic configuration.
    N, Cin, H, W = 2, 4, 16, 16       # batch, fpn_channels, spatial
    Cm = 32                            # inner_channels
    num_classes = 7
    Co = num_classes + 1

    key = jax.random.PRNGKey(0)
    ks = jax.random.split(key, 13)

    x = jax.random.normal(ks[0], (N, Cin, H, W), jnp.float32)

    # Raw module parameters (HWIO conv weights, BN params, conv3 bias).
    w1 = 0.1 * jax.random.normal(ks[1], (3, 3, Cin, Cm), jnp.float32)
    w2 = 0.1 * jax.random.normal(ks[2], (3, 3, Cm, Cm), jnp.float32)
    w3 = 0.1 * jax.random.normal(ks[3], (Cm, Co), jnp.float32)
    b3 = 0.1 * jax.random.normal(ks[4], (Co,), jnp.float32)

    g1 = 1.0 + 0.1 * jax.random.normal(ks[5], (Cm,), jnp.float32)
    be1 = 0.1 * jax.random.normal(ks[6], (Cm,), jnp.float32)
    m1 = 0.1 * jax.random.normal(ks[7], (Cm,), jnp.float32)
    v1 = jnp.abs(jax.random.normal(ks[8], (Cm,), jnp.float32)) + 0.5
    g2 = 1.0 + 0.1 * jax.random.normal(ks[9], (Cm,), jnp.float32)
    be2 = 0.1 * jax.random.normal(ks[10], (Cm,), jnp.float32)
    m2 = 0.1 * jax.random.normal(ks[11], (Cm,), jnp.float32)
    v2 = jnp.abs(jax.random.normal(ks[12], (Cm,), jnp.float32)) + 0.5

    params = prepare_params(w1, w2, w3, b3,
                            (g1, be1, m1, v1), (g2, be2, m2, v2))

    out = aux_semantic_seg_head(x, *params)
    out = jax.block_until_ready(out)

    ref = _reference(x, *params)
    ref = jax.block_until_ready(ref)

    assert out.shape == (N, Co, H, W), out.shape
    max_err = float(jnp.max(jnp.abs(out - ref)))
    assert jnp.allclose(out, ref, atol=1e-2, rtol=1e-2), max_err

    print("KERNEL_OK")
</pallas_src>

<mosaic_0001>
module attributes {stable_mosaic.version = 11 : i64} {
  func.func @_seg_head_kernel(%arg0: i32, %arg1: memref<2x18x18x4xbf16, #tpu.memory_space<vmem>>, %arg2: memref<36x32xbf16, #tpu.memory_space<vmem>>, %arg3: memref<1x32xf32, #tpu.memory_space<vmem>>, %arg4: memref<3x96x32xbf16, #tpu.memory_space<vmem>>, %arg5: memref<1x32xf32, #tpu.memory_space<vmem>>, %arg6: memref<8x32xbf16, #tpu.memory_space<vmem>>, %arg7: memref<8x1xf32, #tpu.memory_space<vmem>>, %arg8: memref<8x512xf32, #tpu.memory_space<vmem>>, %arg9: memref<2x18x20x32xbf16, #tpu.memory_space<vmem>>) attributes {dimension_semantics = [#tpu.dimension_semantics<parallel>], iteration_bounds = array<i64: 1>, scalar_prefetch = 0 : i64, scratch_operands = 1 : i64, tpu.core_type = #tpu.core_type<tc>, window_params = [{transform_indices = @transform_0, window_bounds = array<i64: 2, 18, 18, 4>}, {pipeline_mode = #tpu.pipeline_mode<synchronous>, transform_indices = @transform_1, window_bounds = array<i64: 36, 32>}, {pipeline_mode = #tpu.pipeline_mode<synchronous>, transform_indices = @transform_2, window_bounds = array<i64: 1, 32>}, {pipeline_mode = #tpu.pipeline_mode<synchronous>, transform_indices = @transform_3, window_bounds = array<i64: 3, 96, 32>}, {pipeline_mode = #tpu.pipeline_mode<synchronous>, transform_indices = @transform_4, window_bounds = array<i64: 1, 32>}, {pipeline_mode = #tpu.pipeline_mode<synchronous>, transform_indices = @transform_5, window_bounds = array<i64: 8, 32>}, {pipeline_mode = #tpu.pipeline_mode<synchronous>, transform_indices = @transform_6, window_bounds = array<i64: 8, 1>}, {transform_indices = @transform_7, window_bounds = array<i64: 8, 512>}]} {
    %c0 = arith.constant 0 : index
    %c0_0 = arith.constant 0 : index
    %c0_1 = arith.constant 0 : index
    %c0_2 = arith.constant 0 : index
    %0 = vector.load %arg1[%c0, %c0_0, %c0_1, %c0_2] : memref<2x18x18x4xbf16, #tpu.memory_space<vmem>>, vector<2x18x18x4xbf16>
    %1 = vector.extract_strided_slice %0 {offsets = [0, 0, 0, 0], sizes = [2, 18, 16, 4], strides = [1, 1, 1, 1]} : vector<2x18x18x4xbf16> to vector<2x18x16x4xbf16>
    %2 = vector.extract_strided_slice %0 {offsets = [0, 0, 1, 0], sizes = [2, 18, 16, 4], strides = [1, 1, 1, 1]} : vector<2x18x18x4xbf16> to vector<2x18x16x4xbf16>
    %3 = vector.extract_strided_slice %0 {offsets = [0, 0, 2, 0], sizes = [2, 18, 16, 4], strides = [1, 1, 1, 1]} : vector<2x18x18x4xbf16> to vector<2x18x16x4xbf16>
    %4 = tpu.concatenate %1, %2, %3 in 3 : vector<2x18x16x4xbf16>, vector<2x18x16x4xbf16>, vector<2x18x16x4xbf16> -> vector<2x18x16x12xbf16>
    %5 = vector.extract_strided_slice %4 {offsets = [0, 0, 0, 0], sizes = [2, 16, 16, 12], strides = [1, 1, 1, 1]} : vector<2x18x16x12xbf16> to vector<2x16x16x12xbf16>
    %6 = vector.extract_strided_slice %4 {offsets = [0, 1, 0, 0], sizes = [2, 16, 16, 12], strides = [1, 1, 1, 1]} : vector<2x18x16x12xbf16> to vector<2x16x16x12xbf16>
    %7 = vector.extract_strided_slice %4 {offsets = [0, 2, 0, 0], sizes = [2, 16, 16, 12], strides = [1, 1, 1, 1]} : vector<2x18x16x12xbf16> to vector<2x16x16x12xbf16>
    %8 = tpu.concatenate %5, %6, %7 in 3 : vector<2x16x16x12xbf16>, vector<2x16x16x12xbf16>, vector<2x16x16x12xbf16> -> vector<2x16x16x36xbf16>
    %9 = vector.shape_cast %8 : vector<2x16x16x36xbf16> to vector<512x36xbf16>
    %c0_3 = arith.constant 0 : index
    %c0_4 = arith.constant 0 : index
    %10 = vector.load %arg2[%c0_3, %c0_4] : memref<36x32xbf16, #tpu.memory_space<vmem>>, vector<36x32xbf16>
    %cst = arith.constant dense<0.000000e+00> : vector<512x32xf32>
    %11 = tpu.matmul %9, %10, %cst {dimension_numbers = #tpu.dot_dimension_numbers<[1], [0], [0], [1], [0, 0, 1, 1], [], []>} : vector<512x36xbf16>, vector<36x32xbf16>, vector<512x32xf32> -> vector<512x32xf32>
    %c0_5 = arith.constant 0 : index
    %c0_6 = arith.constant 0 : index
    %12 = vector.load %arg3[%c0_5, %c0_6] : memref<1x32xf32, #tpu.memory_space<vmem>>, vector<1x32xf32>
    %13 = vector.broadcast %12 : vector<1x32xf32> to vector<512x32xf32>
    %14 = arith.addf %11, %13 : vector<512x32xf32>
    %cst_7 = arith.constant 0.000000e+00 : f32
    %15 = vector.broadcast %cst_7 : f32 to vector<512x32xf32>
    %16 = arith.maximumf %14, %15 : vector<512x32xf32>
    %cst_8 = arith.constant 0.000000e+00 : bf16
    %17 = vector.broadcast %cst_8 : bf16 to vector<2x1x20x32xbf16>
    %c0_9 = arith.constant 0 : index
    %c0_10 = arith.constant 0 : index
    %c0_11 = arith.constant 0 : index
    %c0_12 = arith.constant 0 : index
    %18 = vector.load %arg9[%c0_9, %c0_10, %c0_11, %c0_12] : memref<2x18x20x32xbf16, #tpu.memory_space<vmem>>, vector<2x1x20x32xbf16>
    tpu.vector_store %arg9[%c0_9, %c0_10, %c0_11, %c0_12], %17 {strides = array<i32>} : memref<2x18x20x32xbf16, #tpu.memory_space<vmem>>, vector<2x1x20x32xbf16>,
    %cst_13 = arith.constant 0.000000e+00 : bf16
    %19 = vector.broadcast %cst_13 : bf16 to vector<2x1x20x32xbf16>
    %c0_14 = arith.constant 0 : index
    %c17 = arith.constant 17 : index
    %c0_15 = arith.constant 0 : index
    %c0_16 = arith.constant 0 : index
    %20 = vector.load %arg9[%c0_14, %c17, %c0_15, %c0_16] : memref<2x18x20x32xbf16, #tpu.memory_space<vmem>>, vector<2x1x20x32xbf16>
    tpu.vector_store %arg9[%c0_14, %c17, %c0_15, %c0_16], %19 {strides = array<i32>} : memref<2x18x20x32xbf16, #tpu.memory_space<vmem>>, vector<2x1x20x32xbf16>,
    %cst_17 = arith.constant 0.000000e+00 : bf16
    %21 = vector.broadcast %cst_17 : bf16 to vector<2x18x2x32xbf16>
    %c0_18 = arith.constant 0 : index
    %c0_19 = arith.constant 0 : index
    %c0_20 = arith.constant 0 : index
    %c0_21 = arith.constant 0 : index
    %22 = vector.load %arg9[%c0_18, %c0_19, %c0_20, %c0_21] : memref<2x18x20x32xbf16, #tpu.memory_space<vmem>>, vector<2x18x2x32xbf16>
    tpu.vector_store %arg9[%c0_18, %c0_19, %c0_20, %c0_21], %21 {strides = array<i32>} : memref<2x18x20x32xbf16, #tpu.memory_space<vmem>>, vector<2x18x2x32xbf16>,
    %cst_22 = arith.constant 0.000000e+00 : bf16
    %23 = vector.broadcast %cst_22 : bf16 to vector<2x18x2x32xbf16>
    %c0_23 = arith.constant 0 : index
    %c0_24 = arith.constant 0 : index
    %c18 = arith.constant 18 : index
    %c0_25 = arith.constant 0 : index
    %24 = vector.load %arg9[%c0_23, %c0_24, %c18, %c0_25] : memref<2x18x20x32xbf16, #tpu.memory_space<vmem>>, vector<2x18x2x32xbf16>
    tpu.vector_store %arg9[%c0_23, %c0_24, %c18, %c0_25], %23 {strides = array<i32>} : memref<2x18x20x32xbf16, #tpu.memory_space<vmem>>, vector<2x18x2x32xbf16>,
    %25 = arith.truncf %16 : vector<512x32xf32> to vector<512x32xbf16>
    %26 = vector.shape_cast %25 : vector<512x32xbf16> to vector<2x16x16x32xbf16>
    %c0_26 = arith.constant 0 : index
    %c1 = arith.constant 1 : index
    %c2 = arith.constant 2 : index
    %c0_27 = arith.constant 0 : index
    %27 = vector.load %arg9[%c0_26, %c1, %c2, %c0_27] : memref<2x18x20x32xbf16, #tpu.memory_space<vmem>>, vector<2x16x16x32xbf16>
    tpu.vector_store %arg9[%c0_26, %c1, %c2, %c0_27], %26 {strides = array<i32>} : memref<2x18x20x32xbf16, #tpu.memory_space<vmem>>, vector<2x16x16x32xbf16>,
    %c0_28 = arith.constant 0 : index
    %c0_29 = arith.constant 0 : index
    %c0_30 = arith.constant 0 : index
    %c0_31 = arith.constant 0 : index
    %28 = vector.load %arg9[%c0_28, %c0_29, %c0_30, %c0_31] : memref<2x18x20x32xbf16, #tpu.memory_space<vmem>>, vector<2x18x20x32xbf16>
    %29 = vector.extract_strided_slice %28 {offsets = [0, 0, 1, 0], sizes = [2, 18, 16, 32], strides = [1, 1, 1, 1]} : vector<2x18x20x32xbf16> to vector<2x18x16x32xbf16>
    %30 = vector.extract_strided_slice %28 {offsets = [0, 0, 2, 0], sizes = [2, 18, 16, 32], strides = [1, 1, 1, 1]} : vector<2x18x20x32xbf16> to vector<2x18x16x32xbf16>
    %31 = vector.extract_strided_slice %28 {offsets = [0, 0, 3, 0], sizes = [2, 18, 16, 32], strides = [1, 1, 1, 1]} : vector<2x18x20x32xbf16> to vector<2x18x16x32xbf16>
    %32 = tpu.concatenate %29, %30, %31 in 3 : vector<2x18x16x32xbf16>, vector<2x18x16x32xbf16>, vector<2x18x16x32xbf16> -> vector<2x18x16x96xbf16>
    %33 = vector.extract_strided_slice %32 {offsets = [0, 0, 0, 0], sizes = [2, 16, 16, 96], strides = [1, 1, 1, 1]} : vector<2x18x16x96xbf16> to vector<2x16x16x96xbf16>
    %34 = vector.shape_cast %33 : vector<2x16x16x96xbf16> to vector<512x96xbf16>
    %c0_32 = arith.constant 0 : index
    %c0_33 = arith.constant 0 : index
    %c0_34 = arith.constant 0 : index
    %35 = vector.load %arg4[%c0_32, %c0_33, %c0_34] : memref<3x96x32xbf16, #tpu.memory_space<vmem>>, vector<1x96x32xbf16>
    %36 = vector.shape_cast %35 : vector<1x96x32xbf16> to vector<96x32xbf16>
    %cst_35 = arith.constant dense<0.000000e+00> : vector<512x32xf32>
    %37 = tpu.matmul %34, %36, %cst_35 {dimension_numbers = #tpu.dot_dimension_numbers<[1], [0], [0], [1], [0, 0, 1, 1], [], []>} : vector<512x96xbf16>, vector<96x32xbf16>, vector<512x32xf32> -> vector<512x32xf32>
    %38 = vector.extract_strided_slice %32 {offsets = [0, 1, 0, 0], sizes = [2, 16, 16, 96], strides = [1, 1, 1, 1]} : vector<2x18x16x96xbf16> to vector<2x16x16x96xbf16>
    %39 = vector.shape_cast %38 : vector<2x16x16x96xbf16> to vector<512x96xbf16>
    %c1_36 = arith.constant 1 : index
    %c0_37 = arith.constant 0 : index
    %c0_38 = arith.constant 0 : index
    %40 = vector.load %arg4[%c1_36, %c0_37, %c0_38] : memref<3x96x32xbf16, #tpu.memory_space<vmem>>, vector<1x96x32xbf16>
    %41 = vector.shape_cast %40 : vector<1x96x32xbf16> to vector<96x32xbf16>
    %cst_39 = arith.constant dense<0.000000e+00> : vector<512x32xf32>
    %42 = tpu.matmul %39, %41, %cst_39 {dimension_numbers = #tpu.dot_dimension_numbers<[1], [0], [0], [1], [0, 0, 1, 1], [], []>} : vector<512x96xbf16>, vector<96x32xbf16>, vector<512x32xf32> -> vector<512x32xf32>
    %43 = arith.addf %37, %42 : vector<512x32xf32>
    %44 = vector.extract_strided_slice %32 {offsets = [0, 2, 0, 0], sizes = [2, 16, 16, 96], strides = [1, 1, 1, 1]} : vector<2x18x16x96xbf16> to vector<2x16x16x96xbf16>
    %45 = vector.shape_cast %44 : vector<2x16x16x96xbf16> to vector<512x96xbf16>
    %c2_40 = arith.constant 2 : index
    %c0_41 = arith.constant 0 : index
    %c0_42 = arith.constant 0 : index
    %46 = vector.load %arg4[%c2_40, %c0_41, %c0_42] : memref<3x96x32xbf16, #tpu.memory_space<vmem>>, vector<1x96x32xbf16>
    %47 = vector.shape_cast %46 : vector<1x96x32xbf16> to vector<96x32xbf16>
    %cst_43 = arith.constant dense<0.000000e+00> : vector<512x32xf32>
    %48 = tpu.matmul %45, %47, %cst_43 {dimension_numbers = #tpu.dot_dimension_numbers<[1], [0], [0], [1], [0, 0, 1, 1], [], []>} : vector<512x96xbf16>, vector<96x32xbf16>, vector<512x32xf32> -> vector<512x32xf32>
    %49 = arith.addf %43, %48 : vector<512x32xf32>
    %c0_44 = arith.constant 0 : index
    %c0_45 = arith.constant 0 : index
    %50 = vector.load %arg5[%c0_44, %c0_45] : memref<1x32xf32, #tpu.memory_space<vmem>>, vector<1x32xf32>
    %51 = vector.broadcast %50 : vector<1x32xf32> to vector<512x32xf32>
    %52 = arith.addf %49, %51 : vector<512x32xf32>
    %cst_46 = arith.constant 0.000000e+00 : f32
    %53 = vector.broadcast %cst_46 : f32 to vector<512x32xf32>
    %54 = arith.maximumf %52, %53 : vector<512x32xf32>
    %c0_47 = arith.constant 0 : index
    %c0_48 = arith.constant 0 : index
    %55 = vector.load %arg6[%c0_47, %c0_48] : memref<8x32xbf16, #tpu.memory_space<vmem>>, vector<8x32xbf16>
    %56 = arith.truncf %54 : vector<512x32xf32> to vector<512x32xbf16>
    %cst_49 = arith.constant dense<0.000000e+00> : vector<8x512xf32>
    %57 = tpu.matmul %55, %56, %cst_49 {dimension_numbers = #tpu.dot_dimension_numbers<[1], [1], [0], [0], [0, 0, 1, 0], [], []>} : vector<8x32xbf16>, vector<512x32xbf16>, vector<8x512xf32> -> vector<8x512xf32>
    %c0_50 = arith.constant 0 : index
    %c0_51 = arith.constant 0 : index
    %58 = vector.load %arg7[%c0_50, %c0_51] : memref<8x1xf32, #tpu.memory_space<vmem>>, vector<8x1xf32>
    %59 = vector.broadcast %58 : vector<8x1xf32> to vector<8x512xf32>
    %60 = arith.addf %57, %59 : vector<8x512xf32>
    %c0_52 = arith.constant 0 : index
    %c0_53 = arith.constant 0 : index
    %61 = vector.load %arg8[%c0_52, %c0_53] : memref<8x512xf32, #tpu.memory_space<vmem>>, vector<8x512xf32>
    tpu.vector_store %arg8[%c0_52, %c0_53], %60 {strides = array<i32>} : memref<8x512xf32, #tpu.memory_space<vmem>>, vector<8x512xf32>,
    return
  }
  func.func @transform_0(%arg0: i32) -> (i32, i32, i32, i32) {
    %c0_i32 = arith.constant 0 : i32
    %c0_i32_0 = arith.constant 0 : i32
    %c0_i32_1 = arith.constant 0 : i32
    %c0_i32_2 = arith.constant 0 : i32
    return %arg0, %c0_i32, %c0_i32_0, %c0_i32_1 : i32, i32, i32, i32
  }
  func.func @transform_1(%arg0: i32) -> (i32, i32) {
    %c0_i32 = arith.constant 0 : i32
    %c0_i32_0 = arith.constant 0 : i32
    %c0_i32_1 = arith.constant 0 : i32
    return %c0_i32, %c0_i32_0 : i32, i32
  }
  func.func @transform_2(%arg0: i32) -> (i32, i32) {
    %c0_i32 = arith.constant 0 : i32
    %c0_i32_0 = arith.constant 0 : i32
    %c0_i32_1 = arith.constant 0 : i32
    return %c0_i32, %c0_i32_0 : i32, i32
  }
  func.func @transform_3(%arg0: i32) -> (i32, i32, i32) {
    %c0_i32 = arith.constant 0 : i32
    %c0_i32_0 = arith.constant 0 : i32
    %c0_i32_1 = arith.constant 0 : i32
    %c0_i32_2 = arith.constant 0 : i32
    return %c0_i32, %c0_i32_0, %c0_i32_1 : i32, i32, i32
  }
  func.func @transform_4(%arg0: i32) -> (i32, i32) {
    %c0_i32 = arith.constant 0 : i32
    %c0_i32_0 = arith.constant 0 : i32
    %c0_i32_1 = arith.constant 0 : i32
    return %c0_i32, %c0_i32_0 : i32, i32
  }
  func.func @transform_5(%arg0: i32) -> (i32, i32) {
    %c0_i32 = arith.constant 0 : i32
    %c0_i32_0 = arith.constant 0 : i32
    %c0_i32_1 = arith.constant 0 : i32
    return %c0_i32, %c0_i32_0 : i32, i32
  }
  func.func @transform_6(%arg0: i32) -> (i32, i32) {
    %c0_i32 = arith.constant 0 : i32
    %c0_i32_0 = arith.constant 0 : i32
    %c0_i32_1 = arith.constant 0 : i32
    return %c0_i32, %c0_i32_0 : i32, i32
  }
  func.func @transform_7(%arg0: i32) -> (i32, i32) {
    %c0_i32 = arith.constant 0 : i32
    %c0_i32_0 = arith.constant 0 : i32
    return %c0_i32, %arg0 : i32, i32
  }
}

</mosaic_0001>

<llo_original>
// kernel: aux_semantic_seg_head.1
$region0: #{aux_semantic_seg_head.1}
  #allocation0 [shape = 'u32[]', space=smem, size = 0x4, offset = 0x4, fixed_abs, tag = 'smem constant byte address 0x4 - core index']
  #allocation1 [shape = 'u32[144,128]{1,0:T(1,128)}', space=vmem, size = 0x12000, scoped, tag = 'internal scratch']
  #allocation2 [shape = 'bf16[2,18,20,32]{3,2,1,0:T(8,128)(2,1)}', space=vmem, size = 0x36000, scoped, tag = 'scratch operand']
  %s0 = inlined_call_operand.vmem [shape: bf16[2,18,18,4], index: 0, kind: input, shape index: {}]
  %s1 = inlined_call_operand.vmem [shape: bf16[36,32], index: 1, kind: input, shape index: {}]
  %s2 = inlined_call_operand.vmem [shape: f32[1,32], index: 2, kind: input, shape index: {}]
  %s3 = inlined_call_operand.vmem [shape: bf16[3,96,32], index: 3, kind: input, shape index: {}]
  %s4 = inlined_call_operand.vmem [shape: f32[1,32], index: 4, kind: input, shape index: {}]
  %s5 = inlined_call_operand.vmem [shape: bf16[8,32], index: 5, kind: input, shape index: {}]
  %s6 = inlined_call_operand.vmem [shape: f32[8,1], index: 6, kind: input, shape index: {}]
  %s7 = inlined_call_operand.vmem [shape: f32[8,512], index: 7, kind: output, shape index: {}]
  %s8 = sld [smem:[#allocation0]]
  $region38: #{aux_semantic_seg_head.1} parent=0
    _
  %s10 = ssub.s32 1, %s8
  %s11 = scalar_select 0, %s10, %s8
  // Predicated region
  $region2: #{aux_semantic_seg_head.1} parent=0 // pred_check
    _
  $region3: #{aux_semantic_seg_head.1} parent=0 // pred_check_branch
    %13 = sbr.rel (0) target = $region5
  $region4: #{aux_semantic_seg_head.1} parent=0 // pred_region
    _
  $region5: #{aux_semantic_seg_head.1} parent=0 // pred_fallthru
    _
  // Predicated region
  $region6: #{aux_semantic_seg_head.1} parent=0 // pred_check
    _
  $region7: #{aux_semantic_seg_head.1} parent=0 // pred_check_branch
    %15 = sbr.rel (0) target = $region9
  $region8: #{aux_semantic_seg_head.1} parent=0 // pred_region
    _
  $region9: #{aux_semantic_seg_head.1} parent=0 // pred_fallthru
    _
  // Predicated region
  $region10: #{aux_semantic_seg_head.1} parent=0 // pred_check
    _
  $region11: #{aux_semantic_seg_head.1} parent=0 // pred_check_branch
    %17 = sbr.rel (0) target = $region13
  $region12: #{aux_semantic_seg_head.1} parent=0 // pred_region
    _
  $region13: #{aux_semantic_seg_head.1} parent=0 // pred_fallthru
    _
  // Predicated region
  $region14: #{aux_semantic_seg_head.1} parent=0 // pred_check
    _
  $region15: #{aux_semantic_seg_head.1} parent=0 // pred_check_branch
    %19 = sbr.rel (0) target = $region17
  $region16: #{aux_semantic_seg_head.1} parent=0 // pred_region
    _
  $region17: #{aux_semantic_seg_head.1} parent=0 // pred_fallthru
    _
  // Predicated region
  $region18: #{aux_semantic_seg_head.1} parent=0 // pred_check
    _
  $region19: #{aux_semantic_seg_head.1} parent=0 // pred_check_branch
    %21 = sbr.rel (0) target = $region21
  $region20: #{aux_semantic_seg_head.1} parent=0 // pred_region
    _
  $region21: #{aux_semantic_seg_head.1} parent=0 // pred_fallthru
    _
  // Predicated region
  $region22: #{aux_semantic_seg_head.1} parent=0 // pred_check
    _
  $region23: #{aux_semantic_seg_head.1} parent=0 // pred_check_branch
    %23 = sbr.rel (0) target = $region25
  $region24: #{aux_semantic_seg_head.1} parent=0 // pred_region
    _
  $region25: #{aux_semantic_seg_head.1} parent=0 // pred_fallthru
    _
  // Predicated region
  $region26: #{aux_semantic_seg_head.1} parent=0 // pred_check
    _
  $region27: #{aux_semantic_seg_head.1} parent=0 // pred_check_branch
    %25 = sbr.rel (0) target = $region29
  $region28: #{aux_semantic_seg_head.1} parent=0 // pred_region
    _
  $region29: #{aux_semantic_seg_head.1} parent=0 // pred_fallthru
    _
  %v27 = vld [vmem:[%s0] sm:$0xf]
  %v28 = vld [vmem:[%s0 + $0x4] sm:$0xf]
  %v29 = vld [vmem:[%s0 + $0x8] sm:$0x1]
  %v30 = vld [vmem:[%s0 + $0xc] sm:$0xf]
  %v31 = vld [vmem:[%s0 + $0x10] sm:$0xf]
  %v32 = vld [vmem:[%s0 + $0x14] sm:$0x1]
  %v33 = vld [vmem:[%s0 + $0x18] sm:$0xf]
  %v34 = vld [vmem:[%s0 + $0x1c] sm:$0xf]
  %v35 = vld [vmem:[%s0 + $0x20] sm:$0x1]
  %v36 = vld [vmem:[%s0 + $0x24] sm:$0xf]
  %v37 = vld [vmem:[%s0 + $0x28] sm:$0xf]
  %v38 = vld [vmem:[%s0 + $0x2c] sm:$0x1]
  %v39 = vld [vmem:[%s0 + $0x30] sm:$0xf]
  %v40 = vld [vmem:[%s0 + $0x34] sm:$0xf]
  %v41 = vld [vmem:[%s0 + $0x38] sm:$0x1]
  %v42 = vld [vmem:[%s0 + $0x3c] sm:$0xf]
  %v43 = vld [vmem:[%s0 + $0x40] sm:$0xf]
  %v44 = vld [vmem:[%s0 + $0x44] sm:$0x1]
  %v45 = vld [vmem:[%s0 + $0x48] sm:$0xf]
  %v46 = vld [vmem:[%s0 + $0x4c] sm:$0xf]
  %v47 = vld [vmem:[%s0 + $0x50] sm:$0x1]
  %v48 = vld [vmem:[%s0 + $0x54] sm:$0xf]
  %v49 = vld [vmem:[%s0 + $0x58] sm:$0xf]
  %v50 = vld [vmem:[%s0 + $0x5c] sm:$0x1]
  %v51 = vld [vmem:[%s0 + $0x60] sm:$0xf]
  %v52 = vld [vmem:[%s0 + $0x64] sm:$0xf]
  %v53 = vld [vmem:[%s0 + $0x68] sm:$0x1]
  %v54 = vld [vmem:[%s0 + $0x6c] sm:$0xf]
  %v55 = vld [vmem:[%s0 + $0x70] sm:$0xf]
  %v56 = vld [vmem:[%s0 + $0x74] sm:$0x1]
  %v57 = vld [vmem:[%s0 + $0x78] sm:$0xf]
  %v58 = vld [vmem:[%s0 + $0x7c] sm:$0xf]
  %v59 = vld [vmem:[%s0 + $0x80] sm:$0x1]
  %v60 = vld [vmem:[%s0 + $0x84] sm:$0xf]
  %v61 = vld [vmem:[%s0 + $0x88] sm:$0xf]
  %v62 = vld [vmem:[%s0 + $0x8c] sm:$0x1]
  %v63 = vld [vmem:[%s0 + $0x90] sm:$0xf]
  %v64 = vld [vmem:[%s0 + $0x94] sm:$0xf]
  %v65 = vld [vmem:[%s0 + $0x98] sm:$0x1]
  %v66 = vld [vmem:[%s0 + $0x9c] sm:$0xf]
  %v67 = vld [vmem:[%s0 + $0xa0] sm:$0xf]
  %v68 = vld [vmem:[%s0 + $0xa4] sm:$0x1]
  %v69 = vld [vmem:[%s0 + $0xa8] sm:$0xf]
  %v70 = vld [vmem:[%s0 + $0xac] sm:$0xf]
  %v71 = vld [vmem:[%s0 + $0xb0] sm:$0x1]
  %v72 = vld [vmem:[%s0 + $0xb4] sm:$0xf]
  %v73 = vld [vmem:[%s0 + $0xb8] sm:$0xf]
  %v74 = vld [vmem:[%s0 + $0xbc] sm:$0x1]
  %v75 = vld [vmem:[%s0 + $0xc0] sm:$0xf]
  %v76 = vld [vmem:[%s0 + $0xc4] sm:$0xf]
  %v77 = vld [vmem:[%s0 + $0xc8] sm:$0x1]
  %v78 = vld [vmem:[%s0 + $0xcc] sm:$0xf]
  %v79 = vld [vmem:[%s0 + $0xd0] sm:$0xf]
  %v80 = vld [vmem:[%s0 + $0xd4] sm:$0x1]
  %v81 = vld [vmem:[%s0 + $0xd8] sm:$0xf]
  %v82 = vld [vmem:[%s0 + $0xdc] sm:$0xf]
  %v83 = vld [vmem:[%s0 + $0xe0] sm:$0x1]
  %v84 = vld [vmem:[%s0 + $0xe4] sm:$0xf]
  %v85 = vld [vmem:[%s0 + $0xe8] sm:$0xf]
  %v86 = vld [vmem:[%s0 + $0xec] sm:$0x1]
  %v87 = vld [vmem:[%s0 + $0xf0] sm:$0xf]
  %v88 = vld [vmem:[%s0 + $0xf4] sm:$0xf]
  %v89 = vld [vmem:[%s0 + $0xf8] sm:$0x1]
  %v90 = vld [vmem:[%s0 + $0xfc] sm:$0xf]
  %v91 = vld [vmem:[%s0 + $0x100] sm:$0xf]
  %v92 = vld [vmem:[%s0 + $0x104] sm:$0x1]
  %v93 = vld [vmem:[%s0 + $0x108] sm:$0xf]
  %v94 = vld [vmem:[%s0 + $0x10c] sm:$0xf]
  %v95 = vld [vmem:[%s0 + $0x110] sm:$0x1]
  %v96 = vld [vmem:[%s0 + $0x114] sm:$0xf]
  %v97 = vld [vmem:[%s0 + $0x118] sm:$0xf]
  %v98 = vld [vmem:[%s0 + $0x11c] sm:$0x1]
  %v99 = vld [vmem:[%s0 + $0x120] sm:$0xf]
  %v100 = vld [vmem:[%s0 + $0x124] sm:$0xf]
  %v101 = vld [vmem:[%s0 + $0x128] sm:$0x1]
  %v102 = vld [vmem:[%s0 + $0x12c] sm:$0xf]
  %v103 = vld [vmem:[%s0 + $0x130] sm:$0xf]
  %v104 = vld [vmem:[%s0 + $0x134] sm:$0x1]
  %v105 = vld [vmem:[%s0 + $0x138] sm:$0xf]
  %v106 = vld [vmem:[%s0 + $0x13c] sm:$0xf]
  %v107 = vld [vmem:[%s0 + $0x140] sm:$0x1]
  %v108 = vld [vmem:[%s0 + $0x144] sm:$0xf]
  %v109 = vld [vmem:[%s0 + $0x148] sm:$0xf]
  %v110 = vld [vmem:[%s0 + $0x14c] sm:$0x1]
  %v111 = vld [vmem:[%s0 + $0x150] sm:$0xf]
  %v112 = vld [vmem:[%s0 + $0x154] sm:$0xf]
  %v113 = vld [vmem:[%s0 + $0x158] sm:$0x1]
  %v114 = vld [vmem:[%s0 + $0x15c] sm:$0xf]
  %v115 = vld [vmem:[%s0 + $0x160] sm:$0xf]
  %v116 = vld [vmem:[%s0 + $0x164] sm:$0x1]
  %v117 = vld [vmem:[%s0 + $0x168] sm:$0xf]
  %v118 = vld [vmem:[%s0 + $0x16c] sm:$0xf]
  %v119 = vld [vmem:[%s0 + $0x170] sm:$0x1]
  %v120 = vld [vmem:[%s0 + $0x174] sm:$0xf]
  %v121 = vld [vmem:[%s0 + $0x178] sm:$0xf]
  %v122 = vld [vmem:[%s0 + $0x17c] sm:$0x1]
  %v123 = vld [vmem:[%s0 + $0x180] sm:$0xf]
  %v124 = vld [vmem:[%s0 + $0x184] sm:$0xf]
  %v125 = vld [vmem:[%s0 + $0x188] sm:$0x1]
  %v126 = vld [vmem:[%s0 + $0x18c] sm:$0xf]
  %v127 = vld [vmem:[%s0 + $0x190] sm:$0xf]
  %v128 = vld [vmem:[%s0 + $0x194] sm:$0x1]
  %v129 = vld [vmem:[%s0 + $0x198] sm:$0xf]
  %v130 = vld [vmem:[%s0 + $0x19c] sm:$0xf]
  %v131 = vld [vmem:[%s0 + $0x1a0] sm:$0x1]
  %v132 = vld [vmem:[%s0 + $0x1a4] sm:$0xf]
  %v133 = vld [vmem:[%s0 + $0x1a8] sm:$0xf]
  %v134 = vld [vmem:[%s0 + $0x1ac] sm:$0x1]
  %v207 = vunpack.c.l.b16 %v27
  %v208 = vunpack.c.l.b16 %v28
  %v209 = vunpack.c.l.b16 %v30
  %v210 = vunpack.c.l.b16 %v31
  %v211 = vunpack.c.l.b16 %v33
  %v212 = vunpack.c.l.b16 %v34
  %v213 = vunpack.c.l.b16 %v36
  %v214 = vunpack.c.l.b16 %v37
  %v215 = vunpack.c.l.b16 %v39
  %v216 = vunpack.c.l.b16 %v40
  %v217 = vunpack.c.l.b16 %v42
  %v218 = vunpack.c.l.b16 %v43
  %v219 = vunpack.c.l.b16 %v45
  %v220 = vunpack.c.l.b16 %v46
  %v221 = vunpack.c.l.b16 %v48
  %v222 = vunpack.c.l.b16 %v49
  %v223 = vunpack.c.l.b16 %v51
  %v224 = vunpack.c.l.b16 %v52
  %v225 = vunpack.c.l.b16 %v54
  %v226 = vunpack.c.l.b16 %v55
  %v227 = vunpack.c.l.b16 %v57
  %v228 = vunpack.c.l.b16 %v58
  %v229 = vunpack.c.l.b16 %v60
  %v230 = vunpack.c.l.b16 %v61
  %v231 = vunpack.c.l.b16 %v63
  %v232 = vunpack.c.l.b16 %v64
  %v233 = vunpack.c.l.b16 %v66
  %v234 = vunpack.c.l.b16 %v67
  %v235 = vunpack.c.l.b16 %v69
  %v236 = vunpack.c.l.b16 %v70
  %v237 = vunpack.c.l.b16 %v72
  %v238 = vunpack.c.l.b16 %v73
  %v239 = vunpack.c.l.b16 %v75
  %v240 = vunpack.c.l.b16 %v76
  %v241 = vunpack.c.l.b16 %v78
  %v242 = vunpack.c.l.b16 %v79
  %v243 = vunpack.c.l.b16 %v81
  %v244 = vunpack.c.l.b16 %v82
  %v245 = vunpack.c.l.b16 %v84
  %v246 = vunpack.c.l.b16 %v85
  %v247 = vunpack.c.l.b16 %v87
  %v248 = vunpack.c.l.b16 %v88
  %v249 = vunpack.c.l.b16 %v90
  %v250 = vunpack.c.l.b16 %v91
  %v251 = vunpack.c.l.b16 %v93
  %v252 = vunpack.c.l.b16 %v94
  %v253 = vunpack.c.l.b16 %v96
  %v254 = vunpack.c.l.b16 %v97
  %v255 = vunpack.c.l.b16 %v99
  %v256 = vunpack.c.l.b16 %v100
  %v257 = vunpack.c.l.b16 %v102
  %v258 = vunpack.c.l.b16 %v103
  %v259 = vunpack.c.l.b16 %v105
  %v260 = vunpack.c.l.b16 %v106
  %v261 = vunpack.c.l.b16 %v108
  %v262 = vunpack.c.l.b16 %v109
  %v263 = vunpack.c.l.b16 %v111
  %v264 = vunpack.c.l.b16 %v112
  %v265 = vunpack.c.l.b16 %v114
  %v266 = vunpack.c.l.b16 %v115
  %v267 = vunpack.c.l.b16 %v117
  %v268 = vunpack.c.l.b16 %v118
  %v269 = vunpack.c.l.b16 %v120
  %v270 = vunpack.c.l.b16 %v121
  %v271 = vunpack.c.l.b16 %v123
  %v272 = vunpack.c.l.b16 %v124
  %v273 = vunpack.c.l.b16 %v126
  %v274 = vunpack.c.l.b16 %v127
  %v275 = vunpack.c.l.b16 %v129
  %v276 = vunpack.c.l.b16 %v130
  %v277 = vunpack.c.l.b16 %v132
  %v278 = vunpack.c.l.b16 %v133
  %v279 = vpack.c.b16 %v208, %v207
  %v280 = vpack.c.b16 %v210, %v209
  %v281 = vpack.c.b16 %v212, %v211
  %v282 = vpack.c.b16 %v214, %v213
  %v283 = vpack.c.b16 %v216, %v215
  %v284 = vpack.c.b16 %v218, %v217
  %v285 = vpack.c.b16 %v220, %v219
  %v286 = vpack.c.b16 %v222, %v221
  %v287 = vpack.c.b16 %v224, %v223
  %v288 = vpack.c.b16 %v226, %v225
  %v289 = vpack.c.b16 %v228, %v227
  %v290 = vpack.c.b16 %v230, %v229
  %v291 = vpack.c.b16 %v232, %v231
  %v292 = vpack.c.b16 %v234, %v233
  %v293 = vpack.c.b16 %v236, %v235
  %v294 = vpack.c.b16 %v238, %v237
  %v295 = vpack.c.b16 %v240, %v239
  %v296 = vpack.c.b16 %v242, %v241
  %v297 = vpack.c.b16 %v244, %v243
  %v298 = vpack.c.b16 %v246, %v245
  %v299 = vpack.c.b16 %v248, %v247
  %v300 = vpack.c.b16 %v250, %v249
  %v301 = vpack.c.b16 %v252, %v251
  %v302 = vpack.c.b16 %v254, %v253
  %v303 = vpack.c.b16 %v256, %v255
  %v304 = vpack.c.b16 %v258, %v257
  %v305 = vpack.c.b16 %v260, %v259
  %v306 = vpack.c.b16 %v262, %v261
  %v307 = vpack.c.b16 %v264, %v263
  %v308 = vpack.c.b16 %v266, %v265
  %v309 = vpack.c.b16 %v268, %v267
  %v310 = vpack.c.b16 %v270, %v269
  %v311 = vpack.c.b16 %v272, %v271
  %v312 = vpack.c.b16 %v274, %v273
  %v313 = vpack.c.b16 %v276, %v275
  %v314 = vpack.c.b16 %v278, %v277
  %v351 = vunpack.c.l.b16 %v29
  %v352 = vunpack.c.l.b16 %v32
  %v353 = vunpack.c.l.b16 %v35
  %v354 = vunpack.c.l.b16 %v38
  %v355 = vunpack.c.l.b16 %v41
  %v356 = vunpack.c.l.b16 %v44
  %v357 = vunpack.c.l.b16 %v47
  %v358 = vunpack.c.l.b16 %v50
  %v359 = vunpack.c.l.b16 %v53
  %v360 = vunpack.c.l.b16 %v56
  %v361 = vunpack.c.l.b16 %v59
  %v362 = vunpack.c.l.b16 %v62
  %v363 = vunpack.c.l.b16 %v65
  %v364 = vunpack.c.l.b16 %v68
  %v365 = vunpack.c.l.b16 %v71
  %v366 = vunpack.c.l.b16 %v74
  %v367 = vunpack.c.l.b16 %v77
  %v368 = vunpack.c.l.b16 %v80
  %v369 = vunpack.c.l.b16 %v83
  %v370 = vunpack.c.l.b16 %v86
  %v371 = vunpack.c.l.b16 %v89
  %v372 = vunpack.c.l.b16 %v92
  %v373 = vunpack.c.l.b16 %v95
  %v374 = vunpack.c.l.b16 %v98
  %v375 = vunpack.c.l.b16 %v101
  %v376 = vunpack.c.l.b16 %v104
  %v377 = vunpack.c.l.b16 %v107
  %v378 = vunpack.c.l.b16 %v110
  %v379 = vunpack.c.l.b16 %v113
  %v380 = vunpack.c.l.b16 %v116
  %v381 = vunpack.c.l.b16 %v119
  %v382 = vunpack.c.l.b16 %v122
  %v383 = vunpack.c.l.b16 %v125
  %v384 = vunpack.c.l.b16 %v128
  %v385 = vunpack.c.l.b16 %v131
  %v386 = vunpack.c.l.b16 %v134
  %v387 = vpack.c.b16 %v351, %v351
  %v388 = vpack.c.b16 %v352, %v352
  %v389 = vpack.c.b16 %v353, %v353
  %v390 = vpack.c.b16 %v354, %v354
  %v391 = vpack.c.b16 %v355, %v355
  %v392 = vpack.c.b16 %v356, %v356
  %v393 = vpack.c.b16 %v357, %v357
  %v394 = vpack.c.b16 %v358, %v358
  %v395 = vpack.c.b16 %v359, %v359
  %v396 = vpack.c.b16 %v360, %v360
  %v397 = vpack.c.b16 %v361, %v361
  %v398 = vpack.c.b16 %v362, %v362
  %v399 = vpack.c.b16 %v363, %v363
  %v400 = vpack.c.b16 %v364, %v364
  %v401 = vpack.c.b16 %v365, %v365
  %v402 = vpack.c.b16 %v366, %v366
  %v403 = vpack.c.b16 %v367, %v367
  %v404 = vpack.c.b16 %v368, %v368
  %v405 = vpack.c.b16 %v369, %v369
  %v406 = vpack.c.b16 %v370, %v370
  %v407 = vpack.c.b16 %v371, %v371
  %v408 = vpack.c.b16 %v372, %v372
  %v409 = vpack.c.b16 %v373, %v373
  %v410 = vpack.c.b16 %v374, %v374
  %v411 = vpack.c.b16 %v375, %v375
  %v412 = vpack.c.b16 %v376, %v376
  %v413 = vpack.c.b16 %v377, %v377
  %v414 = vpack.c.b16 %v378, %v378
  %v415 = vpack.c.b16 %v379, %v379
  %v416 = vpack.c.b16 %v380, %v380
  %v417 = vpack.c.b16 %v381, %v381
  %v418 = vpack.c.b16 %v382, %v382
  %v419 = vpack.c.b16 %v383, %v383
  %v420 = vpack.c.b16 %v384, %v384
  %v421 = vpack.c.b16 %v385, %v385
  %v422 = vpack.c.b16 %v386, %v386
  %vm423 = vsmask.f32 7424
  %v425 = vshrl.u32 %v279, 16
  %v427 = vshll.u32 %v279, 16
  %v429 = vrot.slane %v427, 1
  %v430 = vor.u32 %v425, %v429
  %v432 = vshll.u32 %v387, 16
  %v434 = vrot.slane %v432, 1
  %v435 = vsel %vm423, %v430, %v434
  %v437 = vshrl.u32 %v280, 16
  %v439 = vshll.u32 %v280, 16
  %v441 = vrot.slane %v439, 1
  %v442 = vor.u32 %v437, %v441
  %v444 = vshll.u32 %v388, 16
  %v446 = vrot.slane %v444, 1
  %v447 = vsel %vm423, %v442, %v446
  %v449 = vshrl.u32 %v281, 16
  %v451 = vshll.u32 %v281, 16
  %v453 = vrot.slane %v451, 1
  %v454 = vor.u32 %v449, %v453
  %v456 = vshll.u32 %v389, 16
  %v458 = vrot.slane %v456, 1
  %v459 = vsel %vm423, %v454, %v458
  %v461 = vshrl.u32 %v282, 16
  %v463 = vshll.u32 %v282, 16
  %v465 = vrot.slane %v463, 1
  %v466 = vor.u32 %v461, %v465
  %v468 = vshll.u32 %v390, 16
  %v470 = vrot.slane %v468, 1
  %v471 = vsel %vm423, %v466, %v470
  %v473 = vshrl.u32 %v283, 16
  %v475 = vshll.u32 %v283, 16
  %v477 = vrot.slane %v475, 1
  %v478 = vor.u32 %v473, %v477
  %v480 = vshll.u32 %v391, 16
  %v482 = vrot.slane %v480, 1
  %v483 = vsel %vm423, %v478, %v482
  %v485 = vshrl.u32 %v284, 16
  %v487 = vshll.u32 %v284, 16
  %v489 = vrot.slane %v487, 1
  %v490 = vor.u32 %v485, %v489
  %v492 = vshll.u32 %v392, 16
  %v494 = vrot.slane %v492, 1
  %v495 = vsel %vm423, %v490, %v494
  %v497 = vshrl.u32 %v285, 16
  %v499 = vshll.u32 %v285, 16
  %v501 = vrot.slane %v499, 1
  %v502 = vor.u32 %v497, %v501
  %v504 = vshll.u32 %v393, 16
  %v506 = vrot.slane %v504, 1
  %v507 = vsel %vm423, %v502, %v506
  %v509 = vshrl.u32 %v286, 16
  %v511 = vshll.u32 %v286, 16
  %v513 = vrot.slane %v511, 1
  %v514 = vor.u32 %v509, %v513
  %v516 = vshll.u32 %v394, 16
  %v518 = vrot.slane %v516, 1
  %v519 = vsel %vm423, %v514, %v518
  %v521 = vshrl.u32 %v287, 16
  %v523 = vshll.u32 %v287, 16
  %v525 = vrot.slane %v523, 1
  %v526 = vor.u32 %v521, %v525
  %v528 = vshll.u32 %v395, 16
  %v530 = vrot.slane %v528, 1
  %v531 = vsel %vm423, %v526, %v530
  %v533 = vshrl.u32 %v288, 16
  %v535 = vshll.u32 %v288, 16
  %v537 = vrot.slane %v535, 1
  %v538 = vor.u32 %v533, %v537
  %v540 = vshll.u32 %v396, 16
  %v542 = vrot.slane %v540, 1
  %v543 = vsel %vm423, %v538, %v542
  %v545 = vshrl.u32 %v289, 16
  %v547 = vshll.u32 %v289, 16
  %v549 = vrot.slane %v547, 1
  %v550 = vor.u32 %v545, %v549
  %v552 = vshll.u32 %v397, 16
  %v554 = vrot.slane %v552, 1
  %v555 = vsel %vm423, %v550, %v554
  %v557 = vshrl.u32 %v290, 16
  %v559 = vshll.u32 %v290, 16
  %v561 = vrot.slane %v559, 1
  %v562 = vor.u32 %v557, %v561
  %v564 = vshll.u32 %v398, 16
  %v566 = vrot.slane %v564, 1
  %v567 = vsel %vm423, %v562, %v566
  %v569 = vshrl.u32 %v291, 16
  %v571 = vshll.u32 %v291, 16
  %v573 = vrot.slane %v571, 1
  %v574 = vor.u32 %v569, %v573
  %v576 = vshll.u32 %v399, 16
  %v578 = vrot.slane %v576, 1
  %v579 = vsel %vm423, %v574, %v578
  %v581 = vshrl.u32 %v292, 16
  %v583 = vshll.u32 %v292, 16
  %v585 = vrot.slane %v583, 1
  %v586 = vor.u32 %v581, %v585
  %v588 = vshll.u32 %v400, 16
  %v590 = vrot.slane %v588, 1
  %v591 = vsel %vm423, %v586, %v590
  %v593 = vshrl.u32 %v293, 16
  %v595 = vshll.u32 %v293, 16
  %v597 = vrot.slane %v595, 1
  %v598 = vor.u32 %v593, %v597
  %v600 = vshll.u32 %v401, 16
  %v602 = vrot.slane %v600, 1
  %v603 = vsel %vm423, %v598, %v602
  %v605 = vshrl.u32 %v294, 16
  %v607 = vshll.u32 %v294, 16
  %v609 = vrot.slane %v607, 1
  %v610 = vor.u32 %v605, %v609
  %v612 = vshll.u32 %v402, 16
  %v614 = vrot.slane %v612, 1
  %v615 = vsel %vm423, %v610, %v614
  %v617 = vshrl.u32 %v295, 16
  %v619 = vshll.u32 %v295, 16
  %v621 = vrot.slane %v619, 1
  %v622 = vor.u32 %v617, %v621
  %v624 = vshll.u32 %v403, 16
  %v626 = vrot.slane %v624, 1
  %v627 = vsel %vm423, %v622, %v626
  %v629 = vshrl.u32 %v296, 16
  %v631 = vshll.u32 %v296, 16
  %v633 = vrot.slane %v631, 1
  %v634 = vor.u32 %v629, %v633
  %v636 = vshll.u32 %v404, 16
  %v638 = vrot.slane %v636, 1
  %v639 = vsel %vm423, %v634, %v638
  %v641 = vshrl.u32 %v297, 16
  %v643 = vshll.u32 %v297, 16
  %v645 = vrot.slane %v643, 1
  %v646 = vor.u32 %v641, %v645
  %v648 = vshll.u32 %v405, 16
  %v650 = vrot.slane %v648, 1
  %v651 = vsel %vm423, %v646, %v650
  %v653 = vshrl.u32 %v298, 16
  %v655 = vshll.u32 %v298, 16
  %v657 = vrot.slane %v655, 1
  %v658 = vor.u32 %v653, %v657
  %v660 = vshll.u32 %v406, 16
  %v662 = vrot.slane %v660, 1
  %v663 = vsel %vm423, %v658, %v662
  %v665 = vshrl.u32 %v299, 16
  %v667 = vshll.u32 %v299, 16
  %v669 = vrot.slane %v667, 1
  %v670 = vor.u32 %v665, %v669
  %v672 = vshll.u32 %v407, 16
  %v674 = vrot.slane %v672, 1
  %v675 = vsel %vm423, %v670, %v674
  %v677 = vshrl.u32 %v300, 16
  %v679 = vshll.u32 %v300, 16
  %v681 = vrot.slane %v679, 1
  %v682 = vor.u32 %v677, %v681
  %v684 = vshll.u32 %v408, 16
  %v686 = vrot.slane %v684, 1
  %v687 = vsel %vm423, %v682, %v686
  %v689 = vshrl.u32 %v301, 16
  %v691 = vshll.u32 %v301, 16
  %v693 = vrot.slane %v691, 1
  %v694 = vor.u32 %v689, %v693
  %v696 = vshll.u32 %v409, 16
  %v698 = vrot.slane %v696, 1
  %v699 = vsel %vm423, %v694, %v698
  %v701 = vshrl.u32 %v302, 16
  %v703 = vshll.u32 %v302, 16
  %v705 = vrot.slane %v703, 1
  %v706 = vor.u32 %v701, %v705
  %v708 = vshll.u32 %v410, 16
  %v710 = vrot.slane %v708, 1
  %v711 = vsel %vm423, %v706, %v710
  %v713 = vshrl.u32 %v303, 16
  %v715 = vshll.u32 %v303, 16
  %v717 = vrot.slane %v715, 1
  %v718 = vor.u32 %v713, %v717
  %v720 = vshll.u32 %v411, 16
  %v722 = vrot.slane %v720, 1
  %v723 = vsel %vm423, %v718, %v722
  %v725 = vshrl.u32 %v304, 16
  %v727 = vshll.u32 %v304, 16
  %v729 = vrot.slane %v727, 1
  %v730 = vor.u32 %v725, %v729
  %v732 = vshll.u32 %v412, 16
  %v734 = vrot.slane %v732, 1
  %v735 = vsel %vm423, %v730, %v734
  %v737 = vshrl.u32 %v305, 16
  %v739 = vshll.u32 %v305, 16
  %v741 = vrot.slane %v739, 1
  %v742 = vor.u32 %v737, %v741
  %v744 = vshll.u32 %v413, 16
  %v746 = vrot.slane %v744, 1
  %v747 = vsel %vm423, %v742, %v746
  %v749 = vshrl.u32 %v306, 16
  %v751 = vshll.u32 %v306, 16
  %v753 = vrot.slane %v751, 1
  %v754 = vor.u32 %v749, %v753
  %v756 = vshll.u32 %v414, 16
  %v758 = vrot.slane %v756, 1
  %v759 = vsel %vm423, %v754, %v758
  %v761 = vshrl.u32 %v307, 16
  %v763 = vshll.u32 %v307, 16
  %v765 = vrot.slane %v763, 1
  %v766 = vor.u32 %v761, %v765
  %v768 = vshll.u32 %v415, 16
  %v770 = vrot.slane %v768, 1
  %v771 = vsel %vm423, %v766, %v770
  %v773 = vshrl.u32 %v308, 16
  %v775 = vshll.u32 %v308, 16
  %v777 = vrot.slane %v775, 1
  %v778 = vor.u32 %v773, %v777
  %v780 = vshll.u32 %v416, 16
  %v782 = vrot.slane %v780, 1
  %v783 = vsel %vm423, %v778, %v782
  %v785 = vshrl.u32 %v309, 16
  %v787 = vshll.u32 %v309, 16
  %v789 = vrot.slane %v787, 1
  %v790 = vor.u32 %v785, %v789
  %v792 = vshll.u32 %v417, 16
  %v794 = vrot.slane %v792, 1
  %v795 = vsel %vm423, %v790, %v794
  %v797 = vshrl.u32 %v310, 16
  %v799 = vshll.u32 %v310, 16
  %v801 = vrot.slane %v799, 1
  %v802 = vor.u32 %v797, %v801
  %v804 = vshll.u32 %v418, 16
  %v806 = vrot.slane %v804, 1
  %v807 = vsel %vm423, %v802, %v806
  %v809 = vshrl.u32 %v311, 16
  %v811 = vshll.u32 %v311, 16
  %v813 = vrot.slane %v811, 1
  %v814 = vor.u32 %v809, %v813
  %v816 = vshll.u32 %v419, 16
  %v818 = vrot.slane %v816, 1
  %v819 = vsel %vm423, %v814, %v818
  %v821 = vshrl.u32 %v312, 16
  %v823 = vshll.u32 %v312, 16
  %v825 = vrot.slane %v823, 1
  %v826 = vor.u32 %v821, %v825
  %v828 = vshll.u32 %v420, 16
  %v830 = vrot.slane %v828, 1
  %v831 = vsel %vm423, %v826, %v830
  %v833 = vshrl.u32 %v313, 16
  %v835 = vshll.u32 %v313, 16
  %v837 = vrot.slane %v835, 1
  %v838 = vor.u32 %v833, %v837
  %v840 = vshll.u32 %v421, 16
  %v842 = vrot.slane %v840, 1
  %v843 = vsel %vm423, %v838, %v842
  %v845 = vshrl.u32 %v314, 16
  %v847 = vshll.u32 %v314, 16
  %v849 = vrot.slane %v847, 1
  %v850 = vor.u32 %v845, %v849
  %v852 = vshll.u32 %v422, 16
  %v854 = vrot.slane %v852, 1
  %v855 = vsel %vm423, %v850, %v854
  %856 = vrot.lane.b32.xlu0 %v435, 4
  %v857 = vpop.permute.xlu0 %856
  %858 = vrot.lane.b32.xlu0 %v447, 4
  %v859 = vpop.permute.xlu0 %858
  %860 = vrot.lane.b32.xlu0 %v459, 4
  %v861 = vpop.permute.xlu0 %860
  %862 = vrot.lane.b32.xlu0 %v471, 4
  %v863 = vpop.permute.xlu0 %862
  %864 = vrot.lane.b32.xlu0 %v483, 4
  %v865 = vpop.permute.xlu0 %864
  %866 = vrot.lane.b32.xlu0 %v495, 4
  %v867 = vpop.permute.xlu0 %866
  %868 = vrot.lane.b32.xlu0 %v507, 4
  %v869 = vpop.permute.xlu0 %868
  %870 = vrot.lane.b32.xlu0 %v519, 4
  %v871 = vpop.permute.xlu0 %870
  %872 = vrot.lane.b32.xlu0 %v531, 4
  %v873 = vpop.permute.xlu0 %872
  %874 = vrot.lane.b32.xlu0 %v543, 4
  %v875 = vpop.permute.xlu0 %874
  %876 = vrot.lane.b32.xlu0 %v555, 4
  %v877 = vpop.permute.xlu0 %876
  %878 = vrot.lane.b32.xlu0 %v567, 4
  %v879 = vpop.permute.xlu0 %878
  %880 = vrot.lane.b32.xlu0 %v579, 4
  %v881 = vpop.permute.xlu0 %880
  %882 = vrot.lane.b32.xlu0 %v591, 4
  %v883 = vpop.permute.xlu0 %882
  %884 = vrot.lane.b32.xlu0 %v603, 4
  %v885 = vpop.permute.xlu0 %884
  %886 = vrot.lane.b32.xlu0 %v615, 4
  %v887 = vpop.permute.xlu0 %886
  %888 = vrot.lane.b32.xlu0 %v627, 4
  %v889 = vpop.permute.xlu0 %888
  %890 = vrot.lane.b32.xlu0 %v639, 4
  %v891 = vpop.permute.xlu0 %890
  %892 = vrot.lane.b32.xlu0 %v651, 4
  %v893 = vpop.permute.xlu0 %892
  %894 = vrot.lane.b32.xlu0 %v663, 4
  %v895 = vpop.permute.xlu0 %894
  %896 = vrot.lane.b32.xlu0 %v675, 4
  %v897 = vpop.permute.xlu0 %896
  %898 = vrot.lane.b32.xlu0 %v687, 4
  %v899 = vpop.permute.xlu0 %898
  %900 = vrot.lane.b32.xlu0 %v699, 4
  %v901 = vpop.permute.xlu0 %900
  %902 = vrot.lane.b32.xlu0 %v711, 4
  %v903 = vpop.permute.xlu0 %902
  %904 = vrot.lane.b32.xlu0 %v723, 4
  %v905 = vpop.permute.xlu0 %904
  %906 = vrot.lane.b32.xlu0 %v735, 4
  %v907 = vpop.permute.xlu0 %906
  %908 = vrot.lane.b32.xlu0 %v747, 4
  %v909 = vpop.permute.xlu0 %908
  %910 = vrot.lane.b32.xlu0 %v759, 4
  %v911 = vpop.permute.xlu0 %910
  %912 = vrot.lane.b32.xlu0 %v771, 4
  %v913 = vpop.permute.xlu0 %912
  %914 = vrot.lane.b32.xlu0 %v783, 4
  %v915 = vpop.permute.xlu0 %914
  %916 = vrot.lane.b32.xlu0 %v795, 4
  %v917 = vpop.permute.xlu0 %916
  %918 = vrot.lane.b32.xlu0 %v807, 4
  %v919 = vpop.permute.xlu0 %918
  %920 = vrot.lane.b32.xlu0 %v819, 4
  %v921 = vpop.permute.xlu0 %920
  %922 = vrot.lane.b32.xlu0 %v831, 4
  %v923 = vpop.permute.xlu0 %922
  %924 = vrot.lane.b32.xlu0 %v843, 4
  %v925 = vpop.permute.xlu0 %924
  %926 = vrot.lane.b32.xlu0 %v855, 4
  %v927 = vpop.permute.xlu0 %926
  %vm928 = vcmask 1046528
  %v929 = vrot.slane %v279, 1
  %v930 = vrot.slane %v387, 1
  %v931 = vsel %vm928, %v929, %v930
  %v932 = vrot.slane %v280, 1
  %v933 = vrot.slane %v388, 1
  %v934 = vsel %vm928, %v932, %v933
  %v935 = vrot.slane %v281, 1
  %v936 = vrot.slane %v389, 1
  %v937 = vsel %vm928, %v935, %v936
  %v938 = vrot.slane %v282, 1
  %v939 = vrot.slane %v390, 1
  %v940 = vsel %vm928, %v938, %v939
  %v941 = vrot.slane %v283, 1
  %v942 = vrot.slane %v391, 1
  %v943 = vsel %vm928, %v941, %v942
  %v944 = vrot.slane %v284, 1
  %v945 = vrot.slane %v392, 1
  %v946 = vsel %vm928, %v944, %v945
  %v947 = vrot.slane %v285, 1
  %v948 = vrot.slane %v393, 1
  %v949 = vsel %vm928, %v947, %v948
  %v950 = vrot.slane %v286, 1
  %v951 = vrot.slane %v394, 1
  %v952 = vsel %vm928, %v950, %v951
  %v953 = vrot.slane %v287, 1
  %v954 = vrot.slane %v395, 1
  %v955 = vsel %vm928, %v953, %v954
  %v956 = vrot.slane %v288, 1
  %v957 = vrot.slane %v396, 1
  %v958 = vsel %vm928, %v956, %v957
  %v959 = vrot.slane %v289, 1
  %v960 = vrot.slane %v397, 1
  %v961 = vsel %vm928, %v959, %v960
  %v962 = vrot.slane %v290, 1
  %v963 = vrot.slane %v398, 1
  %v964 = vsel %vm928, %v962, %v963
  %v965 = vrot.slane %v291, 1
  %v966 = vrot.slane %v399, 1
  %v967 = vsel %vm928, %v965, %v966
  %v968 = vrot.slane %v292, 1
  %v969 = vrot.slane %v400, 1
  %v970 = vsel %vm928, %v968, %v969
  %v971 = vrot.slane %v293, 1
  %v972 = vrot.slane %v401, 1
  %v973 = vsel %vm928, %v971, %v972
  %v974 = vrot.slane %v294, 1
  %v975 = vrot.slane %v402, 1
  %v976 = vsel %vm928, %v974, %v975
  %v977 = vrot.slane %v295, 1
  %v978 = vrot.slane %v403, 1
  %v979 = vsel %vm928, %v977, %v978
  %v980 = vrot.slane %v296, 1
  %v981 = vrot.slane %v404, 1
  %v982 = vsel %vm928, %v980, %v981
  %v983 = vrot.slane %v297, 1
  %v984 = vrot.slane %v405, 1
  %v985 = vsel %vm928, %v983, %v984
  %v986 = vrot.slane %v298, 1
  %v987 = vrot.slane %v406, 1
  %v988 = vsel %vm928, %v986, %v987
  %v989 = vrot.slane %v299, 1
  %v990 = vrot.slane %v407, 1
  %v991 = vsel %vm928, %v989, %v990
  %v992 = vrot.slane %v300, 1
  %v993 = vrot.slane %v408, 1
  %v994 = vsel %vm928, %v992, %v993
  %v995 = vrot.slane %v301, 1
  %v996 = vrot.slane %v409, 1
  %v997 = vsel %vm928, %v995, %v996
  %v998 = vrot.slane %v302, 1
  %v999 = vrot.slane %v410, 1
  %v1000 = vsel %vm928, %v998, %v999
  %v1001 = vrot.slane %v303, 1
  %v1002 = vrot.slane %v411, 1
  %v1003 = vsel %vm928, %v1001, %v1002
  %v1004 = vrot.slane %v304, 1
  %v1005 = vrot.slane %v412, 1
  %v1006 = vsel %vm928, %v1004, %v1005
  %v1007 = vrot.slane %v305, 1
  %v1008 = vrot.slane %v413, 1
  %v1009 = vsel %vm928, %v1007, %v1008
  %v1010 = vrot.slane %v306, 1
  %v1011 = vrot.slane %v414, 1
  %v1012 = vsel %vm928, %v1010, %v1011
  %v1013 = vrot.slane %v307, 1
  %v1014 = vrot.slane %v415, 1
  %v1015 = vsel %vm928, %v1013, %v1014
  %v1016 = vrot.slane %v308, 1
  %v1017 = vrot.slane %v416, 1
  %v1018 = vsel %vm928, %v1016, %v1017
  %v1019 = vrot.slane %v309, 1
  %v1020 = vrot.slane %v417, 1
  %v1021 = vsel %vm928, %v1019, %v1020
  %v1022 = vrot.slane %v310, 1
  %v1023 = vrot.slane %v418, 1
  %v1024 = vsel %vm928, %v1022, %v1023
  %v1025 = vrot.slane %v311, 1
  %v1026 = vrot.slane %v419, 1
  %v1027 = vsel %vm928, %v1025, %v1026
  %v1028 = vrot.slane %v312, 1
  %v1029 = vrot.slane %v420, 1
  %v1030 = vsel %vm928, %v1028, %v1029
  %v1031 = vrot.slane %v313, 1
  %v1032 = vrot.slane %v421, 1
  %v1033 = vsel %vm928, %v1031, %v1032
  %v1034 = vrot.slane %v314, 1
  %v1035 = vrot.slane %v422, 1
  %v1036 = vsel %vm928, %v1034, %v1035
  %1037 = vrot.lane.b32.xlu0 %v931, 8
  %v1038 = vpop.permute.xlu0 %1037
  %1039 = vrot.lane.b32.xlu0 %v934, 8
  %v1040 = vpop.permute.xlu0 %1039
  %1041 = vrot.lane.b32.xlu0 %v937, 8
  %v1042 = vpop.permute.xlu0 %1041
  %1043 = vrot.lane.b32.xlu0 %v940, 8
  %v1044 = vpop.permute.xlu0 %1043
  %1045 = vrot.lane.b32.xlu0 %v943, 8
  %v1046 = vpop.permute.xlu0 %1045
  %1047 = vrot.lane.b32.xlu0 %v946, 8
  %v1048 = vpop.permute.xlu0 %1047
  %1049 = vrot.lane.b32.xlu0 %v949, 8
  %v1050 = vpop.permute.xlu0 %1049
  %1051 = vrot.lane.b32.xlu0 %v952, 8
  %v1052 = vpop.permute.xlu0 %1051
  %1053 = vrot.lane.b32.xlu0 %v955, 8
  %v1054 = vpop.permute.xlu0 %1053
  %1055 = vrot.lane.b32.xlu0 %v958, 8
  %v1056 = vpop.permute.xlu0 %1055
  %1057 = vrot.lane.b32.xlu0 %v961, 8
  %v1058 = vpop.permute.xlu0 %1057
  %1059 = vrot.lane.b32.xlu0 %v964, 8
  %v1060 = vpop.permute.xlu0 %1059
  %1061 = vrot.lane.b32.xlu0 %v967, 8
  %v1062 = vpop.permute.xlu0 %1061
  %1063 = vrot.lane.b32.xlu0 %v970, 8
  %v1064 = vpop.permute.xlu0 %1063
  %1065 = vrot.lane.b32.xlu0 %v973, 8
  %v1066 = vpop.permute.xlu0 %1065
  %1067 = vrot.lane.b32.xlu0 %v976, 8
  %v1068 = vpop.permute.xlu0 %1067
  %1069 = vrot.lane.b32.xlu0 %v979, 8
  %v1070 = vpop.permute.xlu0 %1069
  %1071 = vrot.lane.b32.xlu0 %v982, 8
  %v1072 = vpop.permute.xlu0 %1071
  %1073 = vrot.lane.b32.xlu0 %v985, 8
  %v1074 = vpop.permute.xlu0 %1073
  %1075 = vrot.lane.b32.xlu0 %v988, 8
  %v1076 = vpop.permute.xlu0 %1075
  %1077 = vrot.lane.b32.xlu0 %v991, 8
  %v1078 = vpop.permute.xlu0 %1077
  %1079 = vrot.lane.b32.xlu0 %v994, 8
  %v1080 = vpop.permute.xlu0 %1079
  %1081 = vrot.lane.b32.xlu0 %v997, 8
  %v1082 = vpop.permute.xlu0 %1081
  %1083 = vrot.lane.b32.xlu0 %v1000, 8
  %v1084 = vpop.permute.xlu0 %1083
  %1085 = vrot.lane.b32.xlu0 %v1003, 8
  %v1086 = vpop.permute.xlu0 %1085
  %1087 = vrot.lane.b32.xlu0 %v1006, 8
  %v1088 = vpop.permute.xlu0 %1087
  %1089 = vrot.lane.b32.xlu0 %v1009, 8
  %v1090 = vpop.permute.xlu0 %1089
  %1091 = vrot.lane.b32.xlu0 %v1012, 8
  %v1092 = vpop.permute.xlu0 %1091
  %1093 = vrot.lane.b32.xlu0 %v1015, 8
  %v1094 = vpop.permute.xlu0 %1093
  %1095 = vrot.lane.b32.xlu0 %v1018, 8
  %v1096 = vpop.permute.xlu0 %1095
  %1097 = vrot.lane.b32.xlu0 %v1021, 8
  %v1098 = vpop.permute.xlu0 %1097
  %1099 = vrot.lane.b32.xlu0 %v1024, 8
  %v1100 = vpop.permute.xlu0 %1099
  %1101 = vrot.lane.b32.xlu0 %v1027, 8
  %v1102 = vpop.permute.xlu0 %1101
  %1103 = vrot.lane.b32.xlu0 %v1030, 8
  %v1104 = vpop.permute.xlu0 %1103
  %1105 = vrot.lane.b32.xlu0 %v1033, 8
  %v1106 = vpop.permute.xlu0 %1105
  %1107 = vrot.lane.b32.xlu0 %v1036, 8
  %v1108 = vpop.permute.xlu0 %1107
  %vm1109 = vcmask 31744
  %v1111 = vsel %vm1109, %v279, %v857
  %v1113 = vsel %vm1109, %v280, %v859
  %v1115 = vsel %vm1109, %v281, %v861
  %v1117 = vsel %vm1109, %v282, %v863
  %v1119 = vsel %vm1109, %v283, %v865
  %v1121 = vsel %vm1109, %v284, %v867
  %v1123 = vsel %vm1109, %v285, %v869
  %v1125 = vsel %vm1109, %v286, %v871
  %v1127 = vsel %vm1109, %v287, %v873
  %v1129 = vsel %vm1109, %v288, %v875
  %v1131 = vsel %vm1109, %v289, %v877
  %v1133 = vsel %vm1109, %v290, %v879
  %v1135 = vsel %vm1109, %v291, %v881
  %v1137 = vsel %vm1109, %v292, %v883
  %v1139 = vsel %vm1109, %v293, %v885
  %v1141 = vsel %vm1109, %v294, %v887
  %v1143 = vsel %vm1109, %v295, %v889
  %v1145 = vsel %vm1109, %v296, %v891
  %v1147 = vsel %vm1109, %v297, %v893
  %v1149 = vsel %vm1109, %v298, %v895
  %v1151 = vsel %vm1109, %v299, %v897
  %v1153 = vsel %vm1109, %v300, %v899
  %v1155 = vsel %vm1109, %v301, %v901
  %v1157 = vsel %vm1109, %v302, %v903
  %v1159 = vsel %vm1109, %v303, %v905
  %v1161 = vsel %vm1109, %v304, %v907
  %v1163 = vsel %vm1109, %v305, %v909
  %v1165 = vsel %vm1109, %v306, %v911
  %v1167 = vsel %vm1109, %v307, %v913
  %v1169 = vsel %vm1109, %v308, %v915
  %v1171 = vsel %vm1109, %v309, %v917
  %v1173 = vsel %vm1109, %v310, %v919
  %v1175 = vsel %vm1109, %v311, %v921
  %v1177 = vsel %vm1109, %v312, %v923
  %v1179 = vsel %vm1109, %v313, %v925
  %v1181 = vsel %vm1109, %v314, %v927
  %vm1182 = vcmask 64512
  %v1184 = vsel %vm1182, %v1111, %v1038
  %v1186 = vsel %vm1182, %v1113, %v1040
  %v1188 = vsel %vm1182, %v1115, %v1042
  %v1190 = vsel %vm1182, %v1117, %v1044
  %v1192 = vsel %vm1182, %v1119, %v1046
  %v1194 = vsel %vm1182, %v1121, %v1048
  %v1196 = vsel %vm1182, %v1123, %v1050
  %v1198 = vsel %vm1182, %v1125, %v1052
  %v1200 = vsel %vm1182, %v1127, %v1054
  %v1202 = vsel %vm1182, %v1129, %v1056
  %v1204 = vsel %vm1182, %v1131, %v1058
  %v1206 = vsel %vm1182, %v1133, %v1060
  %v1208 = vsel %vm1182, %v1135, %v1062
  %v1210 = vsel %vm1182, %v1137, %v1064
  %v1212 = vsel %vm1182, %v1139, %v1066
  %v1214 = vsel %vm1182, %v1141, %v1068
  %v1216 = vsel %vm1182, %v1143, %v1070
  %v1218 = vsel %vm1182, %v1145, %v1072
  %v1220 = vsel %vm1182, %v1147, %v1074
  %v1222 = vsel %vm1182, %v1149, %v1076
  %v1224 = vsel %vm1182, %v1151, %v1078
  %v1226 = vsel %vm1182, %v1153, %v1080
  %v1228 = vsel %vm1182, %v1155, %v1082
  %v1230 = vsel %vm1182, %v1157, %v1084
  %v1232 = vsel %vm1182, %v1159, %v1086
  %v1234 = vsel %vm1182, %v1161, %v1088
  %v1236 = vsel %vm1182, %v1163, %v1090
  %v1238 = vsel %vm1182, %v1165, %v1092
  %v1240 = vsel %vm1182, %v1167, %v1094
  %v1242 = vsel %vm1182, %v1169, %v1096
  %v1244 = vsel %vm1182, %v1171, %v1098
  %v1246 = vsel %vm1182, %v1173, %v1100
  %v1248 = vsel %vm1182, %v1175, %v1102
  %v1250 = vsel %vm1182, %v1177, %v1104
  %v1252 = vsel %vm1182, %v1179, %v1106
  %v1254 = vsel %vm1182, %v1181, %v1108
  %1287 = vrot.lane.b32.xlu0 %v1186, 12
  %v1288 = vpop.permute.xlu0 %1287
  %1289 = vrot.lane.b32.xlu0 %v1188, 12
  %v1290 = vpop.permute.xlu0 %1289
  %1291 = vrot.lane.b32.xlu0 %v1190, 12
  %v1292 = vpop.permute.xlu0 %1291
  %1293 = vrot.lane.b32.xlu0 %v1192, 12
  %v1294 = vpop.permute.xlu0 %1293
  %1295 = vrot.lane.b32.xlu0 %v1194, 12
  %v1296 = vpop.permute.xlu0 %1295
  %1297 = vrot.lane.b32.xlu0 %v1196, 12
  %v1298 = vpop.permute.xlu0 %1297
  %1299 = vrot.lane.b32.xlu0 %v1198, 12
  %v1300 = vpop.permute.xlu0 %1299
  %1301 = vrot.lane.b32.xlu0 %v1200, 12
  %v1302 = vpop.permute.xlu0 %1301
  %1303 = vrot.lane.b32.xlu0 %v1202, 12
  %v1304 = vpop.permute.xlu0 %1303
  %1305 = vrot.lane.b32.xlu0 %v1204, 12
  %v1306 = vpop.permute.xlu0 %1305
  %1307 = vrot.lane.b32.xlu0 %v1206, 12
  %v1308 = vpop.permute.xlu0 %1307
  %1309 = vrot.lane.b32.xlu0 %v1208, 12
  %v1310 = vpop.permute.xlu0 %1309
  %1311 = vrot.lane.b32.xlu0 %v1210, 12
  %v1312 = vpop.permute.xlu0 %1311
  %1313 = vrot.lane.b32.xlu0 %v1212, 12
  %v1314 = vpop.permute.xlu0 %1313
  %1315 = vrot.lane.b32.xlu0 %v1214, 12
  %v1316 = vpop.permute.xlu0 %1315
  %1317 = vrot.lane.b32.xlu0 %v1216, 12
  %v1318 = vpop.permute.xlu0 %1317
  %1319 = vrot.lane.b32.xlu0 %v1222, 12
  %v1320 = vpop.permute.xlu0 %1319
  %1321 = vrot.lane.b32.xlu0 %v1224, 12
  %v1322 = vpop.permute.xlu0 %1321
  %1323 = vrot.lane.b32.xlu0 %v1226, 12
  %v1324 = vpop.permute.xlu0 %1323
  %1325 = vrot.lane.b32.xlu0 %v1228, 12
  %v1326 = vpop.permute.xlu0 %1325
  %1327 = vrot.lane.b32.xlu0 %v1230, 12
  %v1328 = vpop.permute.xlu0 %1327
  %1329 = vrot.lane.b32.xlu0 %v1232, 12
  %v1330 = vpop.permute.xlu0 %1329
  %1331 = vrot.lane.b32.xlu0 %v1234, 12
  %v1332 = vpop.permute.xlu0 %1331
  %1333 = vrot.lane.b32.xlu0 %v1236, 12
  %v1334 = vpop.permute.xlu0 %1333
  %1335 = vrot.lane.b32.xlu0 %v1238, 12
  %v1336 = vpop.permute.xlu0 %1335
  %1337 = vrot.lane.b32.xlu0 %v1240, 12
  %v1338 = vpop.permute.xlu0 %1337
  %1339 = vrot.lane.b32.xlu0 %v1242, 12
  %v1340 = vpop.permute.xlu0 %1339
  %1341 = vrot.lane.b32.xlu0 %v1244, 12
  %v1342 = vpop.permute.xlu0 %1341
  %1343 = vrot.lane.b32.xlu0 %v1246, 12
  %v1344 = vpop.permute.xlu0 %1343
  %1345 = vrot.lane.b32.xlu0 %v1248, 12
  %v1346 = vpop.permute.xlu0 %1345
  %1347 = vrot.lane.b32.xlu0 %v1250, 12
  %v1348 = vpop.permute.xlu0 %1347
  %1349 = vrot.lane.b32.xlu0 %v1252, 12
  %v1350 = vpop.permute.xlu0 %1349
  %1353 = vrot.lane.b32.xlu0 %v1188, 24
  %v1354 = vpop.permute.xlu0 %1353
  %1355 = vrot.lane.b32.xlu0 %v1190, 24
  %v1356 = vpop.permute.xlu0 %1355
  %1357 = vrot.lane.b32.xlu0 %v1192, 24
  %v1358 = vpop.permute.xlu0 %1357
  %1359 = vrot.lane.b32.xlu0 %v1194, 24
  %v1360 = vpop.permute.xlu0 %1359
  %1361 = vrot.lane.b32.xlu0 %v1196, 24
  %v1362 = vpop.permute.xlu0 %1361
  %1363 = vrot.lane.b32.xlu0 %v1198, 24
  %v1364 = vpop.permute.xlu0 %1363
  %1365 = vrot.lane.b32.xlu0 %v1200, 24
  %v1366 = vpop.permute.xlu0 %1365
  %1367 = vrot.lane.b32.xlu0 %v1202, 24
  %v1368 = vpop.permute.xlu0 %1367
  %1369 = vrot.lane.b32.xlu0 %v1204, 24
  %v1370 = vpop.permute.xlu0 %1369
  %1371 = vrot.lane.b32.xlu0 %v1206, 24
  %v1372 = vpop.permute.xlu0 %1371
  %1373 = vrot.lane.b32.xlu0 %v1208, 24
  %v1374 = vpop.permute.xlu0 %1373
  %1375 = vrot.lane.b32.xlu0 %v1210, 24
  %v1376 = vpop.permute.xlu0 %1375
  %1377 = vrot.lane.b32.xlu0 %v1212, 24
  %v1378 = vpop.permute.xlu0 %1377
  %1379 = vrot.lane.b32.xlu0 %v1214, 24
  %v1380 = vpop.permute.xlu0 %1379
  %1381 = vrot.lane.b32.xlu0 %v1216, 24
  %v1382 = vpop.permute.xlu0 %1381
  %1383 = vrot.lane.b32.xlu0 %v1218, 24
  %v1384 = vpop.permute.xlu0 %1383
  %1385 = vrot.lane.b32.xlu0 %v1224, 24
  %v1386 = vpop.permute.xlu0 %1385
  %1387 = vrot.lane.b32.xlu0 %v1226, 24
  %v1388 = vpop.permute.xlu0 %1387
  %1389 = vrot.lane.b32.xlu0 %v1228, 24
  %v1390 = vpop.permute.xlu0 %1389
  %1391 = vrot.lane.b32.xlu0 %v1230, 24
  %v1392 = vpop.permute.xlu0 %1391
  %1393 = vrot.lane.b32.xlu0 %v1232, 24
  %v1394 = vpop.permute.xlu0 %1393
  %1395 = vrot.lane.b32.xlu0 %v1234, 24
  %v1396 = vpop.permute.xlu0 %1395
  %1397 = vrot.lane.b32.xlu0 %v1236, 24
  %v1398 = vpop.permute.xlu0 %1397
  %1399 = vrot.lane.b32.xlu0 %v1238, 24
  %v1400 = vpop.permute.xlu0 %1399
  %1401 = vrot.lane.b32.xlu0 %v1240, 24
  %v1402 = vpop.permute.xlu0 %1401
  %1403 = vrot.lane.b32.xlu0 %v1242, 24
  %v1404 = vpop.permute.xlu0 %1403
  %1405 = vrot.lane.b32.xlu0 %v1244, 24
  %v1406 = vpop.permute.xlu0 %1405
  %1407 = vrot.lane.b32.xlu0 %v1246, 24
  %v1408 = vpop.permute.xlu0 %1407
  %1409 = vrot.lane.b32.xlu0 %v1248, 24
  %v1410 = vpop.permute.xlu0 %1409
  %1411 = vrot.lane.b32.xlu0 %v1250, 24
  %v1412 = vpop.permute.xlu0 %1411
  %1413 = vrot.lane.b32.xlu0 %v1252, 24
  %v1414 = vpop.permute.xlu0 %1413
  %1415 = vrot.lane.b32.xlu0 %v1254, 24
  %v1416 = vpop.permute.xlu0 %1415
  %vm1417 = vcmask 97280
  %v1419 = vsel %vm1417, %v1184, %v1288
  %v1421 = vsel %vm1417, %v1186, %v1290
  %v1423 = vsel %vm1417, %v1188, %v1292
  %v1425 = vsel %vm1417, %v1190, %v1294
  %v1427 = vsel %vm1417, %v1192, %v1296
  %v1429 = vsel %vm1417, %v1194, %v1298
  %v1431 = vsel %vm1417, %v1196, %v1300
  %v1433 = vsel %vm1417, %v1198, %v1302
  %v1435 = vsel %vm1417, %v1200, %v1304
  %v1437 = vsel %vm1417, %v1202, %v1306
  %v1439 = vsel %vm1417, %v1204, %v1308
  %v1441 = vsel %vm1417, %v1206, %v1310
  %v1443 = vsel %vm1417, %v1208, %v1312
  %v1445 = vsel %vm1417, %v1210, %v1314
  %v1447 = vsel %vm1417, %v1212, %v1316
  %v1449 = vsel %vm1417, %v1214, %v1318
  %v1451 = vsel %vm1417, %v1220, %v1320
  %v1453 = vsel %vm1417, %v1222, %v1322
  %v1455 = vsel %vm1417, %v1224, %v1324
  %v1457 = vsel %vm1417, %v1226, %v1326
  %v1459 = vsel %vm1417, %v1228, %v1328
  %v1461 = vsel %vm1417, %v1230, %v1330
  %v1463 = vsel %vm1417, %v1232, %v1332
  %v1465 = vsel %vm1417, %v1234, %v1334
  %v1467 = vsel %vm1417, %v1236, %v1336
  %v1469 = vsel %vm1417, %v1238, %v1338
  %v1471 = vsel %vm1417, %v1240, %v1340
  %v1473 = vsel %vm1417, %v1242, %v1342
  %v1475 = vsel %vm1417, %v1244, %v1344
  %v1477 = vsel %vm1417, %v1246, %v1346
  %v1479 = vsel %vm1417, %v1248, %v1348
  %v1481 = vsel %vm1417, %v1250, %v1350
  %vm1482 = vcmask 195584
  %v1484 = vsel %vm1482, %v1419, %v1354
  %v1486 = vsel %vm1482, %v1421, %v1356
  %v1488 = vsel %vm1482, %v1423, %v1358
  %v1490 = vsel %vm1482, %v1425, %v1360
  %v1492 = vsel %vm1482, %v1427, %v1362
  %v1494 = vsel %vm1482, %v1429, %v1364
  %v1496 = vsel %vm1482, %v1431, %v1366
  %v1498 = vsel %vm1482, %v1433, %v1368
  %v1500 = vsel %vm1482, %v1435, %v1370
  %v1502 = vsel %vm1482, %v1437, %v1372
  %v1504 = vsel %vm1482, %v1439, %v1374
  %v1506 = vsel %vm1482, %v1441, %v1376
  %v1508 = vsel %vm1482, %v1443, %v1378
  %v1510 = vsel %vm1482, %v1445, %v1380
  %v1512 = vsel %vm1482, %v1447, %v1382
  %v1514 = vsel %vm1482, %v1449, %v1384
  %v1516 = vsel %vm1482, %v1451, %v1386
  %v1518 = vsel %vm1482, %v1453, %v1388
  %v1520 = vsel %vm1482, %v1455, %v1390
  %v1522 = vsel %vm1482, %v1457, %v1392
  %v1524 = vsel %vm1482, %v1459, %v1394
  %v1526 = vsel %vm1482, %v1461, %v1396
  %v1528 = vsel %vm1482, %v1463, %v1398
  %v1530 = vsel %vm1482, %v1465, %v1400
  %v1532 = vsel %vm1482, %v1467, %v1402
  %v1534 = vsel %vm1482, %v1469, %v1404
  %v1536 = vsel %vm1482, %v1471, %v1406
  %v1538 = vsel %vm1482, %v1473, %v1408
  %v1540 = vsel %vm1482, %v1475, %v1410
  %v1542 = vsel %vm1482, %v1477, %v1412
  %v1544 = vsel %vm1482, %v1479, %v1414
  %v1546 = vsel %vm1482, %v1481, %v1416
  %v1547 = vld [vmem:[%s1] sm:$0xf]
  %v1548 = vld [vmem:[%s1 + $0x4] sm:$0xf]
  %v1549 = vld [vmem:[%s1 + $0x8] sm:$0xf]
  %v1550 = vld [vmem:[%s1 + $0xc] sm:$0xf]
  %v1551 = vld [vmem:[%s1 + $0x10] sm:$0x3]
  %v1552 = vld [vmem:[%s2] sm:$0x1]
  %v1554 = vlaneseq
  %v1555 = vshrl.u32 %v1554, 7
  %v1556 = vsub.s32 0, %v1555
  %v1557 = vrot.slane %v1552, %v1556
  %v1564 = vunpack.c.l.b16 %v1547
  %v1565 = vunpack.c.l.b16 %v1548
  %v1566 = vunpack.c.l.b16 %v1549
  %v1567 = vunpack.c.l.b16 %v1550
  %v1568 = vunpack.c.l.b16 %v1551
  %v1569 = vpack.c.b16 %v1565, %v1564
  %v1570 = vpack.c.b16 %v1567, %v1566
  %v1571 = vpack.c.b16 %v1568, %v1568
  %vm1574 = vcmask 293888
  %v1575 = vsel %vm1574, %v1484, 0
  %v1577 = vsel %vm1574, %v1486, 0
  %v1579 = vsel %vm1574, %v1488, 0
  %v1581 = vsel %vm1574, %v1490, 0
  %v1583 = vsel %vm1574, %v1492, 0
  %v1585 = vsel %vm1574, %v1494, 0
  %v1587 = vsel %vm1574, %v1496, 0
  %v1589 = vsel %vm1574, %v1498, 0
  %v1591 = vsel %vm1574, %v1500, 0
  %v1593 = vsel %vm1574, %v1502, 0
  %v1595 = vsel %vm1574, %v1504, 0
  %v1597 = vsel %vm1574, %v1506, 0
  %v1599 = vsel %vm1574, %v1508, 0
  %v1601 = vsel %vm1574, %v1510, 0
  %v1603 = vsel %vm1574, %v1512, 0
  %v1605 = vsel %vm1574, %v1514, 0
  %v1607 = vsel %vm1574, %v1516, 0
  %v1609 = vsel %vm1574, %v1518, 0
  %v1611 = vsel %vm1574, %v1520, 0
  %v1613 = vsel %vm1574, %v1522, 0
  %v1615 = vsel %vm1574, %v1524, 0
  %v1617 = vsel %vm1574, %v1526, 0
  %v1619 = vsel %vm1574, %v1528, 0
  %v1621 = vsel %vm1574, %v1530, 0
  %v1623 = vsel %vm1574, %v1532, 0
  %v1625 = vsel %vm1574, %v1534, 0
  %v1627 = vsel %vm1574, %v1536, 0
  %v1629 = vsel %vm1574, %v1538, 0
  %v1631 = vsel %vm1574, %v1540, 0
  %v1633 = vsel %vm1574, %v1542, 0
  %v1635 = vsel %vm1574, %v1544, 0
  %v1637 = vsel %vm1574, %v1546, 0
  %vm1639 = vcmask 1041408
  %v1641 = vsel %vm1639, %v1571, 0
  %1643 = vmatprep.subr.bf16.mxu0 0
  %1644 = vmatpush1.bf16.msra.mxu0 %v1569
  %1645 = vmatprep.subr.bf16.mxu0 0
  %1646 = vmatpush1.bf16.msra.mxu0 %v1570
  %1647 = vmatprep.subr.bf16.mxu0 0
  %1648 = vmatpush1.bf16.msra.mxu0 %v1641
  %1649 = vmatprep.subr.bf16.mxu0 0
  %1650 = vmatpush1.bf16.msra.mxu0 0
  %1651 = vmatprep.subr.bf16.mxu0 0
  %1652 = vmatpush1.bf16.msra.mxu0 0
  %1653 = vmatprep.subr.bf16.mxu0 0
  %1654 = vmatpush1.bf16.msra.mxu0 0
  %1655 = vmatprep.subr.bf16.mxu0 0
  %1656 = vmatpush1.bf16.msra.mxu0 0
  %1657 = vmatprep.subr.bf16.mxu0 0
  %1658 = vmatpush1.bf16.msra.mxu0 0
  %1659 = vmatprep.subr.bf16.mxu0 0
  %1660 = vmatpush1.bf16.msra.mxu0 0
  %1661 = vmatprep.subr.bf16.mxu0 0
  %1662 = vmatpush1.bf16.msra.mxu0 0
  %1663 = vmatprep.subr.bf16.mxu0 0
  %1664 = vmatpush1.bf16.msra.mxu0 0
  %1665 = vmatprep.subr.bf16.mxu0 0
  %1666 = vmatpush1.bf16.msra.mxu0 0
  %1667 = vmatprep.subr.bf16.mxu0 0
  %1668 = vmatpush1.bf16.msra.mxu0 0
  %1669 = vmatprep.subr.bf16.mxu0 0
  %1670 = vmatpush1.bf16.msra.mxu0 0
  %1671 = vmatprep.subr.bf16.mxu0 0
  %1672 = vmatpush1.bf16.msra.mxu0 0
  %1673 = vmatprep.subr.bf16.mxu0 0
  %1674 = vmatpush1.bf16.msra.mxu0 0
  %1675 = vmatprep.mubr.bf16.mxu0 0
  %1676 = vmatmul.mubr.bf16.gmra.mrb[0].mxu0 %v1575
  %v1677 = vpop.f32.mrb[0].mxu0
  %v1678 = vadd.f32 %v1557, %v1677
  %v1679 = vpop.f32.mrb[0].mxu0
  %v1680 = vpop.f32.mrb[0].mxu0
  %v1681 = vadd.f32 %v1557, %v1680
  %v1682 = vpop.f32.mrb[0].mxu0
  %1683 = vmatprep.mubr.bf16.mxu0 0
  %1684 = vmatmul.mubr.bf16.gmra.mrb[0].mxu0 %v1577
  %v1685 = vpop.f32.mrb[0].mxu0
  %v1686 = vadd.f32 %v1557, %v1685
  %v1687 = vpop.f32.mrb[0].mxu0
  %v1688 = vpop.f32.mrb[0].mxu0
  %v1689 = vadd.f32 %v1557, %v1688
  %v1690 = vpop.f32.mrb[0].mxu0
  %1691 = vmatprep.mubr.bf16.mxu0 0
  %1692 = vmatmul.mubr.bf16.gmra.mrb[0].mxu0 %v1579
  %v1693 = vpop.f32.mrb[0].mxu0
  %v1694 = vadd.f32 %v1557, %v1693
  %v1695 = vpop.f32.mrb[0].mxu0
  %v1696 = vpop.f32.mrb[0].mxu0
  %v1697 = vadd.f32 %v1557, %v1696
  %v1698 = vpop.f32.mrb[0].mxu0
  %1699 = vmatprep.mubr.bf16.mxu0 0
  %1700 = vmatmul.mubr.bf16.gmra.mrb[0].mxu0 %v1581
  %v1701 = vpop.f32.mrb[0].mxu0
  %v1702 = vadd.f32 %v1557, %v1701
  %v1703 = vpop.f32.mrb[0].mxu0
  %v1704 = vpop.f32.mrb[0].mxu0
  %v1705 = vadd.f32 %v1557, %v1704
  %v1706 = vpop.f32.mrb[0].mxu0
  %1707 = vmatprep.mubr.bf16.mxu0 0
  %1708 = vmatmul.mubr.bf16.gmra.mrb[0].mxu0 %v1583
  %v1709 = vpop.f32.mrb[0].mxu0
  %v1710 = vadd.f32 %v1557, %v1709
  %v1711 = vpop.f32.mrb[0].mxu0
  %v1712 = vpop.f32.mrb[0].mxu0
  %v1713 = vadd.f32 %v1557, %v1712
  %v1714 = vpop.f32.mrb[0].mxu0
  %1715 = vmatprep.mubr.bf16.mxu0 0
  %1716 = vmatmul.mubr.bf16.gmra.mrb[0].mxu0 %v1585
  %v1717 = vpop.f32.mrb[0].mxu0
  %v1718 = vadd.f32 %v1557, %v1717
  %v1719 = vpop.f32.mrb[0].mxu0
  %v1720 = vpop.f32.mrb[0].mxu0
  %v1721 = vadd.f32 %v1557, %v1720
  %v1722 = vpop.f32.mrb[0].mxu0
  %1723 = vmatprep.mubr.bf16.mxu0 0
  %1724 = vmatmul.mubr.bf16.gmra.mrb[0].mxu0 %v1587
  %v1725 = vpop.f32.mrb[0].mxu0
  %v1726 = vadd.f32 %v1557, %v1725
  %v1727 = vpop.f32.mrb[0].mxu0
  %v1728 = vpop.f32.mrb[0].mxu0
  %v1729 = vadd.f32 %v1557, %v1728
  %v1730 = vpop.f32.mrb[0].mxu0
  %1731 = vmatprep.mubr.bf16.mxu0 0
  %1732 = vmatmul.mubr.bf16.gmra.mrb[0].mxu0 %v1589
  %v1733 = vpop.f32.mrb[0].mxu0
  %v1734 = vadd.f32 %v1557, %v1733
  %v1735 = vpop.f32.mrb[0].mxu0
  %v1736 = vpop.f32.mrb[0].mxu0
  %v1737 = vadd.f32 %v1557, %v1736
  %v1738 = vpop.f32.mrb[0].mxu0
  %1739 = vmatprep.mubr.bf16.mxu0 0
  %1740 = vmatmul.mubr.bf16.gmra.mrb[0].mxu0 %v1591
  %v1741 = vpop.f32.mrb[0].mxu0
  %v1742 = vadd.f32 %v1557, %v1741
  %v1743 = vpop.f32.mrb[0].mxu0
  %v1744 = vpop.f32.mrb[0].mxu0
  %v1745 = vadd.f32 %v1557, %v1744
  %v1746 = vpop.f32.mrb[0].mxu0
  %1747 = vmatprep.mubr.bf16.mxu0 0
  %1748 = vmatmul.mubr.bf16.gmra.mrb[0].mxu0 %v1593
  %v1749 = vpop.f32.mrb[0].mxu0
  %v1750 = vadd.f32 %v1557, %v1749
  %v1751 = vpop.f32.mrb[0].mxu0
  %v1752 = vpop.f32.mrb[0].mxu0
  %v1753 = vadd.f32 %v1557, %v1752
  %v1754 = vpop.f32.mrb[0].mxu0
  %1755 = vmatprep.mubr.bf16.mxu0 0
  %1756 = vmatmul.mubr.bf16.gmra.mrb[0].mxu0 %v1595
  %v1757 = vpop.f32.mrb[0].mxu0
  %v1758 = vadd.f32 %v1557, %v1757
  %v1759 = vpop.f32.mrb[0].mxu0
  %v1760 = vpop.f32.mrb[0].mxu0
  %v1761 = vadd.f32 %v1557, %v1760
  %v1762 = vpop.f32.mrb[0].mxu0
  %1763 = vmatprep.mubr.bf16.mxu0 0
  %1764 = vmatmul.mubr.bf16.gmra.mrb[0].mxu0 %v1597
  %v1765 = vpop.f32.mrb[0].mxu0
  %v1766 = vadd.f32 %v1557, %v1765
  %v1767 = vpop.f32.mrb[0].mxu0
  %v1768 = vpop.f32.mrb[0].mxu0
  %v1769 = vadd.f32 %v1557, %v1768
  %v1770 = vpop.f32.mrb[0].mxu0
  %1771 = vmatprep.mubr.bf16.mxu0 0
  %1772 = vmatmul.mubr.bf16.gmra.mrb[0].mxu0 %v1599
  %v1773 = vpop.f32.mrb[0].mxu0
  %v1774 = vadd.f32 %v1557, %v1773
  %v1775 = vpop.f32.mrb[0].mxu0
  %v1776 = vpop.f32.mrb[0].mxu0
  %v1777 = vadd.f32 %v1557, %v1776
  %v1778 = vpop.f32.mrb[0].mxu0
  %1779 = vmatprep.mubr.bf16.mxu0 0
  %1780 = vmatmul.mubr.bf16.gmra.mrb[0].mxu0 %v1601
  %v1781 = vpop.f32.mrb[0].mxu0
  %v1782 = vadd.f32 %v1557, %v1781
  %v1783 = vpop.f32.mrb[0].mxu0
  %v1784 = vpop.f32.mrb[0].mxu0
  %v1785 = vadd.f32 %v1557, %v1784
  %v1786 = vpop.f32.mrb[0].mxu0
  %1787 = vmatprep.mubr.bf16.mxu0 0
  %1788 = vmatmul.mubr.bf16.gmra.mrb[0].mxu0 %v1603
  %v1789 = vpop.f32.mrb[0].mxu0
  %v1790 = vadd.f32 %v1557, %v1789
  %v1791 = vpop.f32.mrb[0].mxu0
  %v1792 = vpop.f32.mrb[0].mxu0
  %v1793 = vadd.f32 %v1557, %v1792
  %v1794 = vpop.f32.mrb[0].mxu0
  %1795 = vmatprep.mubr.bf16.mxu0 0
  %1796 = vmatmul.mubr.bf16.gmra.mrb[0].mxu0 %v1605
  %v1797 = vpop.f32.mrb[0].mxu0
  %v1798 = vadd.f32 %v1557, %v1797
  %v1799 = vpop.f32.mrb[0].mxu0
  %v1800 = vpop.f32.mrb[0].mxu0
  %v1801 = vadd.f32 %v1557, %v1800
  %v1802 = vpop.f32.mrb[0].mxu0
  %1803 = vmatprep.mubr.bf16.mxu0 0
  %1804 = vmatmul.mubr.bf16.gmra.mrb[0].mxu0 %v1607
  %v1805 = vpop.f32.mrb[0].mxu0
  %v1806 = vadd.f32 %v1557, %v1805
  %v1807 = vpop.f32.mrb[0].mxu0
  %v1808 = vpop.f32.mrb[0].mxu0
  %v1809 = vadd.f32 %v1557, %v1808
  %v1810 = vpop.f32.mrb[0].mxu0
  %1811 = vmatprep.mubr.bf16.mxu0 0
  %1812 = vmatmul.mubr.bf16.gmra.mrb[0].mxu0 %v1609
  %v1813 = vpop.f32.mrb[0].mxu0
  %v1814 = vadd.f32 %v1557, %v1813
  %v1815 = vpop.f32.mrb[0].mxu0
  %v1816 = vpop.f32.mrb[0].mxu0
  %v1817 = vadd.f32 %v1557, %v1816
  %v1818 = vpop.f32.mrb[0].mxu0
  %1819 = vmatprep.mubr.bf16.mxu0 0
  %1820 = vmatmul.mubr.bf16.gmra.mrb[0].mxu0 %v1611
  %v1821 = vpop.f32.mrb[0].mxu0
  %v1822 = vadd.f32 %v1557, %v1821
  %v1823 = vpop.f32.mrb[0].mxu0
  %v1824 = vpop.f32.mrb[0].mxu0
  %v1825 = vadd.f32 %v1557, %v1824
  %v1826 = vpop.f32.mrb[0].mxu0
  %1827 = vmatprep.mubr.bf16.mxu0 0
  %1828 = vmatmul.mubr.bf16.gmra.mrb[0].mxu0 %v1613
  %v1829 = vpop.f32.mrb[0].mxu0
  %v1830 = vadd.f32 %v1557, %v1829
  %v1831 = vpop.f32.mrb[0].mxu0
  %v1832 = vpop.f32.mrb[0].mxu0
  %v1833 = vadd.f32 %v1557, %v1832
  %v1834 = vpop.f32.mrb[0].mxu0
  %1835 = vmatprep.mubr.bf16.mxu0 0
  %1836 = vmatmul.mubr.bf16.gmra.mrb[0].mxu0 %v1615
  %v1837 = vpop.f32.mrb[0].mxu0
  %v1838 = vadd.f32 %v1557, %v1837
  %v1839 = vpop.f32.mrb[0].mxu0
  %v1840 = vpop.f32.mrb[0].mxu0
  %v1841 = vadd.f32 %v1557, %v1840
  %v1842 = vpop.f32.mrb[0].mxu0
  %1843 = vmatprep.mubr.bf16.mxu0 0
  %1844 = vmatmul.mubr.bf16.gmra.mrb[0].mxu0 %v1617
  %v1845 = vpop.f32.mrb[0].mxu0
  %v1846 = vadd.f32 %v1557, %v1845
  %v1847 = vpop.f32.mrb[0].mxu0
  %v1848 = vpop.f32.mrb[0].mxu0
  %v1849 = vadd.f32 %v1557, %v1848
  %v1850 = vpop.f32.mrb[0].mxu0
  %1851 = vmatprep.mubr.bf16.mxu0 0
  %1852 = vmatmul.mubr.bf16.gmra.mrb[0].mxu0 %v1619
  %v1853 = vpop.f32.mrb[0].mxu0
  %v1854 = vadd.f32 %v1557, %v1853
  %v1855 = vpop.f32.mrb[0].mxu0
  %v1856 = vpop.f32.mrb[0].mxu0
  %v1857 = vadd.f32 %v1557, %v1856
  %v1858 = vpop.f32.mrb[0].mxu0
  %1859 = vmatprep.mubr.bf16.mxu0 0
  %1860 = vmatmul.mubr.bf16.gmra.mrb[0].mxu0 %v1621
  %v1861 = vpop.f32.mrb[0].mxu0
  %v1862 = vadd.f32 %v1557, %v1861
  %v1863 = vpop.f32.mrb[0].mxu0
  %v1864 = vpop.f32.mrb[0].mxu0
  %v1865 = vadd.f32 %v1557, %v1864
  %v1866 = vpop.f32.mrb[0].mxu0
  %1867 = vmatprep.mubr.bf16.mxu0 0
  %1868 = vmatmul.mubr.bf16.gmra.mrb[0].mxu0 %v1623
  %v1869 = vpop.f32.mrb[0].mxu0
  %v1870 = vadd.f32 %v1557, %v1869
  %v1871 = vpop.f32.mrb[0].mxu0
  %v1872 = vpop.f32.mrb[0].mxu0
  %v1873 = vadd.f32 %v1557, %v1872
  %v1874 = vpop.f32.mrb[0].mxu0
  %1875 = vmatprep.mubr.bf16.mxu0 0
  %1876 = vmatmul.mubr.bf16.gmra.mrb[0].mxu0 %v1625
  %v1877 = vpop.f32.mrb[0].mxu0
  %v1878 = vadd.f32 %v1557, %v1877
  %v1879 = vpop.f32.mrb[0].mxu0
  %v1880 = vpop.f32.mrb[0].mxu0
  %v1881 = vadd.f32 %v1557, %v1880
  %v1882 = vpop.f32.mrb[0].mxu0
  %1883 = vmatprep.mubr.bf16.mxu0 0
  %1884 = vmatmul.mubr.bf16.gmra.mrb[0].mxu0 %v1627
  %v1885 = vpop.f32.mrb[0].mxu0
  %v1886 = vadd.f32 %v1557, %v1885
  %v1887 = vpop.f32.mrb[0].mxu0
  %v1888 = vpop.f32.mrb[0].mxu0
  %v1889 = vadd.f32 %v1557, %v1888
  %v1890 = vpop.f32.mrb[0].mxu0
  %1891 = vmatprep.mubr.bf16.mxu0 0
  %1892 = vmatmul.mubr.bf16.gmra.mrb[0].mxu0 %v1629
  %v1893 = vpop.f32.mrb[0].mxu0
  %v1894 = vadd.f32 %v1557, %v1893
  %v1895 = vpop.f32.mrb[0].mxu0
  %v1896 = vpop.f32.mrb[0].mxu0
  %v1897 = vadd.f32 %v1557, %v1896
  %v1898 = vpop.f32.mrb[0].mxu0
  %1899 = vmatprep.mubr.bf16.mxu0 0
  %1900 = vmatmul.mubr.bf16.gmra.mrb[0].mxu0 %v1631
  %v1901 = vpop.f32.mrb[0].mxu0
  %v1902 = vadd.f32 %v1557, %v1901
  %v1903 = vpop.f32.mrb[0].mxu0
  %v1904 = vpop.f32.mrb[0].mxu0
  %v1905 = vadd.f32 %v1557, %v1904
  %v1906 = vpop.f32.mrb[0].mxu0
  %1907 = vmatprep.mubr.bf16.mxu0 0
  %1908 = vmatmul.mubr.bf16.gmra.mrb[0].mxu0 %v1633
  %v1909 = vpop.f32.mrb[0].mxu0
  %v1910 = vadd.f32 %v1557, %v1909
  %v1911 = vpop.f32.mrb[0].mxu0
  %v1912 = vpop.f32.mrb[0].mxu0
  %v1913 = vadd.f32 %v1557, %v1912
  %v1914 = vpop.f32.mrb[0].mxu0
  %1915 = vmatprep.mubr.bf16.mxu0 0
  %1916 = vmatmul.mubr.bf16.gmra.mrb[0].mxu0 %v1635
  %v1917 = vpop.f32.mrb[0].mxu0
  %v1918 = vadd.f32 %v1557, %v1917
  %v1919 = vpop.f32.mrb[0].mxu0
  %v1920 = vpop.f32.mrb[0].mxu0
  %v1921 = vadd.f32 %v1557, %v1920
  %v1922 = vpop.f32.mrb[0].mxu0
  %1923 = vmatprep.mubr.bf16.mxu0 0
  %1924 = vmatmul.mubr.bf16.gmra.mrb[0].mxu0 %v1637
  %v1925 = vpop.f32.mrb[0].mxu0
  %v1926 = vadd.f32 %v1557, %v1925
  %v1927 = vpop.f32.mrb[0].mxu0
  %v1928 = vpop.f32.mrb[0].mxu0
  %v1929 = vadd.f32 %v1557, %v1928
  %v1930 = vpop.f32.mrb[0].mxu0
  %1931 = vdwg.mxu0
  %v1932 = vmax.f32 %v1678, 0.0
  %v1933 = vmax.f32 %v1681, 0.0
  %v1934 = vmax.f32 %v1686, 0.0
  %v1935 = vmax.f32 %v1689, 0.0
  %v1936 = vmax.f32 %v1694, 0.0
  %v1937 = vmax.f32 %v1697, 0.0
  %v1938 = vmax.f32 %v1702, 0.0
  %v1939 = vmax.f32 %v1705, 0.0
  %v1940 = vmax.f32 %v1710, 0.0
  %v1941 = vmax.f32 %v1713, 0.0
  %v1942 = vmax.f32 %v1718, 0.0
  %v1943 = vmax.f32 %v1721, 0.0
  %v1944 = vmax.f32 %v1726, 0.0
  %v1945 = vmax.f32 %v1729, 0.0
  %v1946 = vmax.f32 %v1734, 0.0
  %v1947 = vmax.f32 %v1737, 0.0
  %v1948 = vmax.f32 %v1742, 0.0
  %v1949 = vmax.f32 %v1745, 0.0
  %v1950 = vmax.f32 %v1750, 0.0
  %v1951 = vmax.f32 %v1753, 0.0
  %v1952 = vmax.f32 %v1758, 0.0
  %v1953 = vmax.f32 %v1761, 0.0
  %v1954 = vmax.f32 %v1766, 0.0
  %v1955 = vmax.f32 %v1769, 0.0
  %v1956 = vmax.f32 %v1774, 0.0
  %v1957 = vmax.f32 %v1777, 0.0
  %v1958 = vmax.f32 %v1782, 0.0
  %v1959 = vmax.f32 %v1785, 0.0
  %v1960 = vmax.f32 %v1790, 0.0
  %v1961 = vmax.f32 %v1793, 0.0
  %v1962 = vmax.f32 %v1798, 0.0
  %v1963 = vmax.f32 %v1801, 0.0
  %v1964 = vmax.f32 %v1806, 0.0
  %v1965 = vmax.f32 %v1809, 0.0
  %v1966 = vmax.f32 %v1814, 0.0
  %v1967 = vmax.f32 %v1817, 0.0
  %v1968 = vmax.f32 %v1822, 0.0
  %v1969 = vmax.f32 %v1825, 0.0
  %v1970 = vmax.f32 %v1830, 0.0
  %v1971 = vmax.f32 %v1833, 0.0
  %v1972 = vmax.f32 %v1838, 0.0
  %v1973 = vmax.f32 %v1841, 0.0
  %v1974 = vmax.f32 %v1846, 0.0
  %v1975 = vmax.f32 %v1849, 0.0
  %v1976 = vmax.f32 %v1854, 0.0
  %v1977 = vmax.f32 %v1857, 0.0
  %v1978 = vmax.f32 %v1862, 0.0
  %v1979 = vmax.f32 %v1865, 0.0
  %v1980 = vmax.f32 %v1870, 0.0
  %v1981 = vmax.f32 %v1873, 0.0
  %v1982 = vmax.f32 %v1878, 0.0
  %v1983 = vmax.f32 %v1881, 0.0
  %v1984 = vmax.f32 %v1886, 0.0
  %v1985 = vmax.f32 %v1889, 0.0
  %v1986 = vmax.f32 %v1894, 0.0
  %v1987 = vmax.f32 %v1897, 0.0
  %v1988 = vmax.f32 %v1902, 0.0
  %v1989 = vmax.f32 %v1905, 0.0
  %v1990 = vmax.f32 %v1910, 0.0
  %v1991 = vmax.f32 %v1913, 0.0
  %v1992 = vmax.f32 %v1918, 0.0
  %v1993 = vmax.f32 %v1921, 0.0
  %v1994 = vmax.f32 %v1926, 0.0
  %v1995 = vmax.f32 %v1929, 0.0
  %vm1996 = vcmask 257024
  %1997 = vst.msk [vmem:[#allocation2] sm:$0xf] %vm1996, 0
  %1998 = vst.msk [vmem:[#allocation2 + $0x4] sm:$0xf] %vm1996, 0
  %vm1999 = vcmask 254976
  %2000 = vst.msk [vmem:[#allocation2 + $0x8] sm:$0x3] %vm1999, 0
  %2001 = vst.msk [vmem:[#allocation2 + $0xd8] sm:$0xf] %vm1996, 0
  %2002 = vst.msk [vmem:[#allocation2 + $0xdc] sm:$0xf] %vm1996, 0
  %2003 = vst.msk [vmem:[#allocation2 + $0xe0] sm:$0x3] %vm1999, 0
  %s2004 = scalar_lea.vmem [#allocation2], 204
  %2005 = vst.msk [vmem:[%s2004] sm:$0xf] %vm1996, 0
  %2006 = vst.msk [vmem:[%s2004 + $0x4] sm:$0xf] %vm1996, 0
  %2007 = vst.msk [vmem:[%s2004 + $0x8] sm:$0x3] %vm1999, 0
  %2008 = vst.msk [vmem:[%s2004 + $0xd8] sm:$0xf] %vm1996, 0
  %2009 = vst.msk [vmem:[%s2004 + $0xdc] sm:$0xf] %vm1996, 0
  %2010 = vst.msk [vmem:[%s2004 + $0xe0] sm:$0x3] %vm1999, 0
  %vm2011 = vcmask 253952
  %2012 = vst.msk [vmem:[#allocation2] sm:$0x1] %vm2011, 0
  %2013 = vst.msk [vmem:[#allocation2 + $0xc] sm:$0x1] %vm2011, 0
  %2014 = vst.msk [vmem:[#allocation2 + $0x18] sm:$0x1] %vm2011, 0
  %2015 = vst.msk [vmem:[#allocation2 + $0x24] sm:$0x1] %vm2011, 0
  %2016 = vst.msk [vmem:[#allocation2 + $0x30] sm:$0x1] %vm2011, 0
  %2017 = vst.msk [vmem:[#allocation2 + $0x3c] sm:$0x1] %vm2011, 0
  %2018 = vst.msk [vmem:[#allocation2 + $0x48] sm:$0x1] %vm2011, 0
  %2019 = vst.msk [vmem:[#allocation2 + $0x54] sm:$0x1] %vm2011, 0
  %2020 = vst.msk [vmem:[#allocation2 + $0x60] sm:$0x1] %vm2011, 0
  %2021 = vst.msk [vmem:[#allocation2 + $0x6c] sm:$0x1] %vm2011, 0
  %2022 = vst.msk [vmem:[#allocation2 + $0x78] sm:$0x1] %vm2011, 0
  %2023 = vst.msk [vmem:[#allocation2 + $0x84] sm:$0x1] %vm2011, 0
  %2024 = vst.msk [vmem:[#allocation2 + $0x90] sm:$0x1] %vm2011, 0
  %2025 = vst.msk [vmem:[#allocation2 + $0x9c] sm:$0x1] %vm2011, 0
  %2026 = vst.msk [vmem:[#allocation2 + $0xa8] sm:$0x1] %vm2011, 0
  %2027 = vst.msk [vmem:[#allocation2 + $0xb4] sm:$0x1] %vm2011, 0
  %2028 = vst.msk [vmem:[#allocation2 + $0xc0] sm:$0x1] %vm2011, 0
  %2029 = vst.msk [vmem:[#allocation2 + $0xcc] sm:$0x1] %vm2011, 0
  %2030 = vst.msk [vmem:[#allocation2 + $0xd8] sm:$0x1] %vm2011, 0
  %2031 = vst.msk [vmem:[#allocation2 + $0xe4] sm:$0x1] %vm2011, 0
  %2032 = vst.msk [vmem:[#allocation2 + $0xf0] sm:$0x1] %vm2011, 0
  %2033 = vst.msk [vmem:[#allocation2 + $0xfc] sm:$0x1] %vm2011, 0
  %2034 = vst.msk [vmem:[#allocation2 + $0x108] sm:$0x1] %vm2011, 0
  %2035 = vst.msk [vmem:[#allocation2 + $0x114] sm:$0x1] %vm2011, 0
  %2036 = vst.msk [vmem:[#allocation2 + $0x120] sm:$0x1] %vm2011, 0
  %2037 = vst.msk [vmem:[#allocation2 + $0x12c] sm:$0x1] %vm2011, 0
  %2038 = vst.msk [vmem:[#allocation2 + $0x138] sm:$0x1] %vm2011, 0
  %2039 = vst.msk [vmem:[#allocation2 + $0x144] sm:$0x1] %vm2011, 0
  %2040 = vst.msk [vmem:[#allocation2 + $0x150] sm:$0x1] %vm2011, 0
  %2041 = vst.msk [vmem:[#allocation2 + $0x15c] sm:$0x1] %vm2011, 0
  %2042 = vst.msk [vmem:[#allocation2 + $0x168] sm:$0x1] %vm2011, 0
  %2043 = vst.msk [vmem:[#allocation2 + $0x174] sm:$0x1] %vm2011, 0
  %2044 = vst.msk [vmem:[#allocation2 + $0x180] sm:$0x1] %vm2011, 0
  %2045 = vst.msk [vmem:[#allocation2 + $0x18c] sm:$0x1] %vm2011, 0
  %2046 = vst.msk [vmem:[#allocation2 + $0x198] sm:$0x1] %vm2011, 0
  %2047 = vst.msk [vmem:[#allocation2 + $0x1a4] sm:$0x1] %vm2011, 0
  %vm2048 = vcmask 254977
  %2049 = vst.msk [vmem:[#allocation2 + $0x8] sm:$0x2] %vm2048, 0
  %2050 = vst.msk [vmem:[#allocation2 + $0x14] sm:$0x2] %vm2048, 0
  %2051 = vst.msk [vmem:[#allocation2 + $0x20] sm:$0x2] %vm2048, 0
  %2052 = vst.msk [vmem:[#allocation2 + $0x2c] sm:$0x2] %vm2048, 0
  %2053 = vst.msk [vmem:[#allocation2 + $0x38] sm:$0x2] %vm2048, 0
  %2054 = vst.msk [vmem:[#allocation2 + $0x44] sm:$0x2] %vm2048, 0
  %2055 = vst.msk [vmem:[#allocation2 + $0x50] sm:$0x2] %vm2048, 0
  %2056 = vst.msk [vmem:[#allocation2 + $0x5c] sm:$0x2] %vm2048, 0
  %2057 = vst.msk [vmem:[#allocation2 + $0x68] sm:$0x2] %vm2048, 0
  %2058 = vst.msk [vmem:[#allocation2 + $0x74] sm:$0x2] %vm2048, 0
  %2059 = vst.msk [vmem:[#allocation2 + $0x80] sm:$0x2] %vm2048, 0
  %2060 = vst.msk [vmem:[#allocation2 + $0x8c] sm:$0x2] %vm2048, 0
  %2061 = vst.msk [vmem:[#allocation2 + $0x98] sm:$0x2] %vm2048, 0
  %2062 = vst.msk [vmem:[#allocation2 + $0xa4] sm:$0x2] %vm2048, 0
  %2063 = vst.msk [vmem:[#allocation2 + $0xb0] sm:$0x2] %vm2048, 0
  %2064 = vst.msk [vmem:[#allocation2 + $0xbc] sm:$0x2] %vm2048, 0
  %2065 = vst.msk [vmem:[#allocation2 + $0xc8] sm:$0x2] %vm2048, 0
  %2066 = vst.msk [vmem:[#allocation2 + $0xd4] sm:$0x2] %vm2048, 0
  %2067 = vst.msk [vmem:[#allocation2 + $0xe0] sm:$0x2] %vm2048, 0
  %2068 = vst.msk [vmem:[#allocation2 + $0xec] sm:$0x2] %vm2048, 0
  %2069 = vst.msk [vmem:[#allocation2 + $0xf8] sm:$0x2] %vm2048, 0
  %2070 = vst.msk [vmem:[#allocation2 + $0x104] sm:$0x2] %vm2048, 0
  %2071 = vst.msk [vmem:[#allocation2 + $0x110] sm:$0x2] %vm2048, 0
  %2072 = vst.msk [vmem:[#allocation2 + $0x11c] sm:$0x2] %vm2048, 0
  %2073 = vst.msk [vmem:[#allocation2 + $0x128] sm:$0x2] %vm2048, 0
  %2074 = vst.msk [vmem:[#allocation2 + $0x134] sm:$0x2] %vm2048, 0
  %2075 = vst.msk [vmem:[#allocation2 + $0x140] sm:$0x2] %vm2048, 0
  %2076 = vst.msk [vmem:[#allocation2 + $0x14c] sm:$0x2] %vm2048, 0
  %2077 = vst.msk [vmem:[#allocation2 + $0x158] sm:$0x2] %vm2048, 0
  %2078 = vst.msk [vmem:[#allocation2 + $0x164] sm:$0x2] %vm2048, 0
  %2079 = vst.msk [vmem:[#allocation2 + $0x170] sm:$0x2] %vm2048, 0
  %2080 = vst.msk [vmem:[#allocation2 + $0x17c] sm:$0x2] %vm2048, 0
  %2081 = vst.msk [vmem:[#allocation2 + $0x188] sm:$0x2] %vm2048, 0
  %2082 = vst.msk [vmem:[#allocation2 + $0x194] sm:$0x2] %vm2048, 0
  %2083 = vst.msk [vmem:[#allocation2 + $0x1a0] sm:$0x2] %vm2048, 0
  %2084 = vst.msk [vmem:[#allocation2 + $0x1ac] sm:$0x2] %vm2048, 0
  %v2085 = vpack.c.bf16 %v1933, %v1932
  %v2086 = vpack.c.bf16 %v1935, %v1934
  %v2087 = vpack.c.bf16 %v1937, %v1936
  %v2088 = vpack.c.bf16 %v1939, %v1938
  %v2089 = vpack.c.bf16 %v1941, %v1940
  %v2090 = vpack.c.bf16 %v1943, %v1942
  %v2091 = vpack.c.bf16 %v1945, %v1944
  %v2092 = vpack.c.bf16 %v1947, %v1946
  %v2093 = vpack.c.bf16 %v1949, %v1948
  %v2094 = vpack.c.bf16 %v1951, %v1950
  %v2095 = vpack.c.bf16 %v1953, %v1952
  %v2096 = vpack.c.bf16 %v1955, %v1954
  %v2097 = vpack.c.bf16 %v1957, %v1956
  %v2098 = vpack.c.bf16 %v1959, %v1958
  %v2099 = vpack.c.bf16 %v1961, %v1960
  %v2100 = vpack.c.bf16 %v1963, %v1962
  %v2101 = vpack.c.bf16 %v1965, %v1964
  %v2102 = vpack.c.bf16 %v1967, %v1966
  %v2103 = vpack.c.bf16 %v1969, %v1968
  %v2104 = vpack.c.bf16 %v1971, %v1970
  %v2105 = vpack.c.bf16 %v1973, %v1972
  %v2106 = vpack.c.bf16 %v1975, %v1974
  %v2107 = vpack.c.bf16 %v1977, %v1976
  %v2108 = vpack.c.bf16 %v1979, %v1978
  %v2109 = vpack.c.bf16 %v1981, %v1980
  %v2110 = vpack.c.bf16 %v1983, %v1982
  %v2111 = vpack.c.bf16 %v1985, %v1984
  %v2112 = vpack.c.bf16 %v1987, %v1986
  %v2113 = vpack.c.bf16 %v1989, %v1988
  %v2114 = vpack.c.bf16 %v1991, %v1990
  %v2115 = vpack.c.bf16 %v1993, %v1992
  %v2116 = vpack.c.bf16 %v1995, %v1994
  %v2149 = vunpack.c.l.b16 %v2085
  %v2150 = vunpack.c.h.b16 %v2085
  %v2151 = vunpack.c.l.b16 %v2086
  %v2152 = vunpack.c.h.b16 %v2086
  %v2153 = vunpack.c.l.b16 %v2087
  %v2154 = vunpack.c.h.b16 %v2087
  %v2155 = vunpack.c.l.b16 %v2088
  %v2156 = vunpack.c.h.b16 %v2088
  %v2157 = vunpack.c.l.b16 %v2089
  %v2158 = vunpack.c.h.b16 %v2089
  %v2159 = vunpack.c.l.b16 %v2090
  %v2160 = vunpack.c.h.b16 %v2090
  %v2161 = vunpack.c.l.b16 %v2091
  %v2162 = vunpack.c.h.b16 %v2091
  %v2163 = vunpack.c.l.b16 %v2092
  %v2164 = vunpack.c.h.b16 %v2092
  %v2165 = vunpack.c.l.b16 %v2093
  %v2166 = vunpack.c.h.b16 %v2093
  %v2167 = vunpack.c.l.b16 %v2094
  %v2168 = vunpack.c.h.b16 %v2094
  %v2169 = vunpack.c.l.b16 %v2095
  %v2170 = vunpack.c.h.b16 %v2095
  %v2171 = vunpack.c.l.b16 %v2096
  %v2172 = vunpack.c.h.b16 %v2096
  %v2173 = vunpack.c.l.b16 %v2097
  %v2174 = vunpack.c.h.b16 %v2097
  %v2175 = vunpack.c.l.b16 %v2098
  %v2176 = vunpack.c.h.b16 %v2098
  %v2177 = vunpack.c.l.b16 %v2099
  %v2178 = vunpack.c.h.b16 %v2099
  %v2179 = vunpack.c.l.b16 %v2100
  %v2180 = vunpack.c.h.b16 %v2100
  %v2181 = vunpack.c.l.b16 %v2101
  %v2182 = vunpack.c.h.b16 %v2101
  %v2183 = vunpack.c.l.b16 %v2102
  %v2184 = vunpack.c.h.b16 %v2102
  %v2185 = vunpack.c.l.b16 %v2103
  %v2186 = vunpack.c.h.b16 %v2103
  %v2187 = vunpack.c.l.b16 %v2104
  %v2188 = vunpack.c.h.b16 %v2104
  %v2189 = vunpack.c.l.b16 %v2105
  %v2190 = vunpack.c.h.b16 %v2105
  %v2191 = vunpack.c.l.b16 %v2106
  %v2192 = vunpack.c.h.b16 %v2106
  %v2193 = vunpack.c.l.b16 %v2107
  %v2194 = vunpack.c.h.b16 %v2107
  %v2195 = vunpack.c.l.b16 %v2108
  %v2196 = vunpack.c.h.b16 %v2108
  %v2197 = vunpack.c.l.b16 %v2109
  %v2198 = vunpack.c.h.b16 %v2109
  %v2199 = vunpack.c.l.b16 %v2110
  %v2200 = vunpack.c.h.b16 %v2110
  %v2201 = vunpack.c.l.b16 %v2111
  %v2202 = vunpack.c.h.b16 %v2111
  %v2203 = vunpack.c.l.b16 %v2112
  %v2204 = vunpack.c.h.b16 %v2112
  %v2205 = vunpack.c.l.b16 %v2113
  %v2206 = vunpack.c.h.b16 %v2113
  %v2207 = vunpack.c.l.b16 %v2114
  %v2208 = vunpack.c.h.b16 %v2114
  %v2209 = vunpack.c.l.b16 %v2115
  %v2210 = vunpack.c.h.b16 %v2115
  %v2211 = vunpack.c.l.b16 %v2116
  %v2212 = vunpack.c.h.b16 %v2116
  %v2213 = vpack.c.b16 %v2149, %v2149
  %v2214 = vpack.c.b16 %v2150, %v2150
  %v2215 = vpack.c.b16 %v2151, %v2151
  %v2216 = vpack.c.b16 %v2152, %v2152
  %v2217 = vpack.c.b16 %v2153, %v2153
  %v2218 = vpack.c.b16 %v2154, %v2154
  %v2219 = vpack.c.b16 %v2155, %v2155
  %v2220 = vpack.c.b16 %v2156, %v2156
  %v2221 = vpack.c.b16 %v2157, %v2157
  %v2222 = vpack.c.b16 %v2158, %v2158
  %v2223 = vpack.c.b16 %v2159, %v2159
  %v2224 = vpack.c.b16 %v2160, %v2160
  %v2225 = vpack.c.b16 %v2161, %v2161
  %v2226 = vpack.c.b16 %v2162, %v2162
  %v2227 = vpack.c.b16 %v2163, %v2163
  %v2228 = vpack.c.b16 %v2164, %v2164
  %v2229 = vpack.c.b16 %v2165, %v2165
  %v2230 = vpack.c.b16 %v2166, %v2166
  %v2231 = vpack.c.b16 %v2167, %v2167
  %v2232 = vpack.c.b16 %v2168, %v2168
  %v2233 = vpack.c.b16 %v2169, %v2169
  %v2234 = vpack.c.b16 %v2170, %v2170
  %v2235 = vpack.c.b16 %v2171, %v2171
  %v2236 = vpack.c.b16 %v2172, %v2172
  %v2237 = vpack.c.b16 %v2173, %v2173
  %v2238 = vpack.c.b16 %v2174, %v2174
  %v2239 = vpack.c.b16 %v2175, %v2175
  %v2240 = vpack.c.b16 %v2176, %v2176
  %v2241 = vpack.c.b16 %v2177, %v2177
  %v2242 = vpack.c.b16 %v2178, %v2178
  %v2243 = vpack.c.b16 %v2179, %v2179
  %v2244 = vpack.c.b16 %v2180, %v2180
  %v2245 = vpack.c.b16 %v2181, %v2181
  %v2246 = vpack.c.b16 %v2182, %v2182
  %v2247 = vpack.c.b16 %v2183, %v2183
  %v2248 = vpack.c.b16 %v2184, %v2184
  %v2249 = vpack.c.b16 %v2185, %v2185
  %v2250 = vpack.c.b16 %v2186, %v2186
  %v2251 = vpack.c.b16 %v2187, %v2187
  %v2252 = vpack.c.b16 %v2188, %v2188
  %v2253 = vpack.c.b16 %v2189, %v2189
  %v2254 = vpack.c.b16 %v2190, %v2190
  %v2255 = vpack.c.b16 %v2191, %v2191
  %v2256 = vpack.c.b16 %v2192, %v2192
  %v2257 = vpack.c.b16 %v2193, %v2193
  %v2258 = vpack.c.b16 %v2194, %v2194
  %v2259 = vpack.c.b16 %v2195, %v2195
  %v2260 = vpack.c.b16 %v2196, %v2196
  %v2261 = vpack.c.b16 %v2197, %v2197
  %v2262 = vpack.c.b16 %v2198, %v2198
  %v2263 = vpack.c.b16 %v2199, %v2199
  %v2264 = vpack.c.b16 %v2200, %v2200
  %v2265 = vpack.c.b16 %v2201, %v2201
  %v2266 = vpack.c.b16 %v2202, %v2202
  %v2267 = vpack.c.b16 %v2203, %v2203
  %v2268 = vpack.c.b16 %v2204, %v2204
  %v2269 = vpack.c.b16 %v2205, %v2205
  %v2270 = vpack.c.b16 %v2206, %v2206
  %v2271 = vpack.c.b16 %v2207, %v2207
  %v2272 = vpack.c.b16 %v2208, %v2208
  %v2273 = vpack.c.b16 %v2209, %v2209
  %v2274 = vpack.c.b16 %v2210, %v2210
  %v2275 = vpack.c.b16 %v2211, %v2211
  %v2276 = vpack.c.b16 %v2212, %v2212
  %vm2277 = vcmask 1040384
  %vm2278 = vcmask 1044484
  %vm2279 = vmor %vm2277, %vm2278
  %v2280 = vrot.slane %v2213, 7
  %v2281 = vrot.slane %v2280, 4
  %v2282 = vrot.slane %v2214, 7
  %v2283 = vsel %vm2279, %v2281, %v2282
  %v2284 = vrot.slane %v2282, 4
  %v2285 = vrot.slane %v2215, 7
  %v2286 = vrot.slane %v2285, 4
  %v2287 = vrot.slane %v2216, 7
  %v2288 = vsel %vm2279, %v2286, %v2287
  %v2289 = vrot.slane %v2287, 4
  %v2290 = vrot.slane %v2217, 7
  %v2291 = vrot.slane %v2290, 4
  %v2292 = vrot.slane %v2218, 7
  %v2293 = vsel %vm2279, %v2291, %v2292
  %v2294 = vrot.slane %v2292, 4
  %v2295 = vrot.slane %v2219, 7
  %v2296 = vrot.slane %v2295, 4
  %v2297 = vrot.slane %v2220, 7
  %v2298 = vsel %vm2279, %v2296, %v2297
  %v2299 = vrot.slane %v2297, 4
  %v2300 = vrot.slane %v2221, 7
  %v2301 = vrot.slane %v2300, 4
  %v2302 = vrot.slane %v2222, 7
  %v2303 = vsel %vm2279, %v2301, %v2302
  %v2304 = vrot.slane %v2302, 4
  %v2305 = vrot.slane %v2223, 7
  %v2306 = vrot.slane %v2305, 4
  %v2307 = vrot.slane %v2224, 7
  %v2308 = vsel %vm2279, %v2306, %v2307
  %v2309 = vrot.slane %v2307, 4
  %v2310 = vrot.slane %v2225, 7
  %v2311 = vrot.slane %v2310, 4
  %v2312 = vrot.slane %v2226, 7
  %v2313 = vsel %vm2279, %v2311, %v2312
  %v2314 = vrot.slane %v2312, 4
  %v2315 = vrot.slane %v2227, 7
  %v2316 = vrot.slane %v2315, 4
  %v2317 = vrot.slane %v2228, 7
  %v2318 = vsel %vm2279, %v2316, %v2317
  %v2319 = vrot.slane %v2317, 4
  %v2320 = vrot.slane %v2229, 7
  %v2321 = vrot.slane %v2320, 4
  %v2322 = vrot.slane %v2230, 7
  %v2323 = vsel %vm2279, %v2321, %v2322
  %v2324 = vrot.slane %v2322, 4
  %v2325 = vrot.slane %v2231, 7
  %v2326 = vrot.slane %v2325, 4
  %v2327 = vrot.slane %v2232, 7
  %v2328 = vsel %vm2279, %v2326, %v2327
  %v2329 = vrot.slane %v2327, 4
  %v2330 = vrot.slane %v2233, 7
  %v2331 = vrot.slane %v2330, 4
  %v2332 = vrot.slane %v2234, 7
  %v2333 = vsel %vm2279, %v2331, %v2332
  %v2334 = vrot.slane %v2332, 4
  %v2335 = vrot.slane %v2235, 7
  %v2336 = vrot.slane %v2335, 4
  %v2337 = vrot.slane %v2236, 7
  %v2338 = vsel %vm2279, %v2336, %v2337
  %v2339 = vrot.slane %v2337, 4
  %v2340 = vrot.slane %v2237, 7
  %v2341 = vrot.slane %v2340, 4
  %v2342 = vrot.slane %v2238, 7
  %v2343 = vsel %vm2279, %v2341, %v2342
  %v2344 = vrot.slane %v2342, 4
  %v2345 = vrot.slane %v2239, 7
  %v2346 = vrot.slane %v2345, 4
  %v2347 = vrot.slane %v2240, 7
  %v2348 = vsel %vm2279, %v2346, %v2347
  %v2349 = vrot.slane %v2347, 4
  %v2350 = vrot.slane %v2241, 7
  %v2351 = vrot.slane %v2350, 4
  %v2352 = vrot.slane %v2242, 7
  %v2353 = vsel %vm2279, %v2351, %v2352
  %v2354 = vrot.slane %v2352, 4
  %v2355 = vrot.slane %v2243, 7
  %v2356 = vrot.slane %v2355, 4
  %v2357 = vrot.slane %v2244, 7
  %v2358 = vsel %vm2279, %v2356, %v2357
  %v2359 = vrot.slane %v2357, 4
  %v2360 = vrot.slane %v2245, 7
  %v2361 = vrot.slane %v2360, 4
  %v2362 = vrot.slane %v2246, 7
  %v2363 = vsel %vm2279, %v2361, %v2362
  %v2364 = vrot.slane %v2362, 4
  %v2365 = vrot.slane %v2247, 7
  %v2366 = vrot.slane %v2365, 4
  %v2367 = vrot.slane %v2248, 7
  %v2368 = vsel %vm2279, %v2366, %v2367
  %v2369 = vrot.slane %v2367, 4
  %v2370 = vrot.slane %v2249, 7
  %v2371 = vrot.slane %v2370, 4
  %v2372 = vrot.slane %v2250, 7
  %v2373 = vsel %vm2279, %v2371, %v2372
  %v2374 = vrot.slane %v2372, 4
  %v2375 = vrot.slane %v2251, 7
  %v2376 = vrot.slane %v2375, 4
  %v2377 = vrot.slane %v2252, 7
  %v2378 = vsel %vm2279, %v2376, %v2377
  %v2379 = vrot.slane %v2377, 4
  %v2380 = vrot.slane %v2253, 7
  %v2381 = vrot.slane %v2380, 4
  %v2382 = vrot.slane %v2254, 7
  %v2383 = vsel %vm2279, %v2381, %v2382
  %v2384 = vrot.slane %v2382, 4
  %v2385 = vrot.slane %v2255, 7
  %v2386 = vrot.slane %v2385, 4
  %v2387 = vrot.slane %v2256, 7
  %v2388 = vsel %vm2279, %v2386, %v2387
  %v2389 = vrot.slane %v2387, 4
  %v2390 = vrot.slane %v2257, 7
  %v2391 = vrot.slane %v2390, 4
  %v2392 = vrot.slane %v2258, 7
  %v2393 = vsel %vm2279, %v2391, %v2392
  %v2394 = vrot.slane %v2392, 4
  %v2395 = vrot.slane %v2259, 7
  %v2396 = vrot.slane %v2395, 4
  %v2397 = vrot.slane %v2260, 7
  %v2398 = vsel %vm2279, %v2396, %v2397
  %v2399 = vrot.slane %v2397, 4
  %v2400 = vrot.slane %v2261, 7
  %v2401 = vrot.slane %v2400, 4
  %v2402 = vrot.slane %v2262, 7
  %v2403 = vsel %vm2279, %v2401, %v2402
  %v2404 = vrot.slane %v2402, 4
  %v2405 = vrot.slane %v2263, 7
  %v2406 = vrot.slane %v2405, 4
  %v2407 = vrot.slane %v2264, 7
  %v2408 = vsel %vm2279, %v2406, %v2407
  %v2409 = vrot.slane %v2407, 4
  %v2410 = vrot.slane %v2265, 7
  %v2411 = vrot.slane %v2410, 4
  %v2412 = vrot.slane %v2266, 7
  %v2413 = vsel %vm2279, %v2411, %v2412
  %v2414 = vrot.slane %v2412, 4
  %v2415 = vrot.slane %v2267, 7
  %v2416 = vrot.slane %v2415, 4
  %v2417 = vrot.slane %v2268, 7
  %v2418 = vsel %vm2279, %v2416, %v2417
  %v2419 = vrot.slane %v2417, 4
  %v2420 = vrot.slane %v2269, 7
  %v2421 = vrot.slane %v2420, 4
  %v2422 = vrot.slane %v2270, 7
  %v2423 = vsel %vm2279, %v2421, %v2422
  %v2424 = vrot.slane %v2422, 4
  %v2425 = vrot.slane %v2271, 7
  %v2426 = vrot.slane %v2425, 4
  %v2427 = vrot.slane %v2272, 7
  %v2428 = vsel %vm2279, %v2426, %v2427
  %v2429 = vrot.slane %v2427, 4
  %v2430 = vrot.slane %v2273, 7
  %v2431 = vrot.slane %v2430, 4
  %v2432 = vrot.slane %v2274, 7
  %v2433 = vsel %vm2279, %v2431, %v2432
  %v2434 = vrot.slane %v2432, 4
  %v2435 = vrot.slane %v2275, 7
  %v2436 = vrot.slane %v2435, 4
  %v2437 = vrot.slane %v2276, 7
  %v2438 = vsel %vm2279, %v2436, %v2437
  %v2439 = vrot.slane %v2437, 4
  %s2536 = scalar_lea.vmem [#allocation2], 12
  %vm2537 = vcmask 257025
  %2538 = vst.msk [vmem:[%s2536] sm:$0xe] %vm2537, %v2280
  %2539 = vst.msk [vmem:[%s2536 + $0x4] sm:$0xf] %vm1996, %v2283
  %2540 = vst.msk [vmem:[%s2536 + $0x8] sm:$0x1] %vm2011, %v2284
  %2541 = vst.msk [vmem:[%s2536 + $0xc] sm:$0xe] %vm2537, %v2285
  %2542 = vst.msk [vmem:[%s2536 + $0x10] sm:$0xf] %vm1996, %v2288
  %2543 = vst.msk [vmem:[%s2536 + $0x14] sm:$0x1] %vm2011, %v2289
  %2544 = vst.msk [vmem:[%s2536 + $0x18] sm:$0xe] %vm2537, %v2290
  %2545 = vst.msk [vmem:[%s2536 + $0x1c] sm:$0xf] %vm1996, %v2293
  %2546 = vst.msk [vmem:[%s2536 + $0x20] sm:$0x1] %vm2011, %v2294
  %2547 = vst.msk [vmem:[%s2536 + $0x24] sm:$0xe] %vm2537, %v2295
  %2548 = vst.msk [vmem:[%s2536 + $0x28] sm:$0xf] %vm1996, %v2298
  %2549 = vst.msk [vmem:[%s2536 + $0x2c] sm:$0x1] %vm2011, %v2299
  %2550 = vst.msk [vmem:[%s2536 + $0x30] sm:$0xe] %vm2537, %v2300
  %2551 = vst.msk [vmem:[%s2536 + $0x34] sm:$0xf] %vm1996, %v2303
  %2552 = vst.msk [vmem:[%s2536 + $0x38] sm:$0x1] %vm2011, %v2304
  %2553 = vst.msk [vmem:[%s2536 + $0x3c] sm:$0xe] %vm2537, %v2305
  %2554 = vst.msk [vmem:[%s2536 + $0x40] sm:$0xf] %vm1996, %v2308
  %2555 = vst.msk [vmem:[%s2536 + $0x44] sm:$0x1] %vm2011, %v2309
  %2556 = vst.msk [vmem:[%s2536 + $0x48] sm:$0xe] %vm2537, %v2310
  %2557 = vst.msk [vmem:[%s2536 + $0x4c] sm:$0xf] %vm1996, %v2313
  %2558 = vst.msk [vmem:[%s2536 + $0x50] sm:$0x1] %vm2011, %v2314
  %2559 = vst.msk [vmem:[%s2536 + $0x54] sm:$0xe] %vm2537, %v2315
  %2560 = vst.msk [vmem:[%s2536 + $0x58] sm:$0xf] %vm1996, %v2318
  %2561 = vst.msk [vmem:[%s2536 + $0x5c] sm:$0x1] %vm2011, %v2319
  %2562 = vst.msk [vmem:[%s2536 + $0x60] sm:$0xe] %vm2537, %v2320
  %2563 = vst.msk [vmem:[%s2536 + $0x64] sm:$0xf] %vm1996, %v2323
  %2564 = vst.msk [vmem:[%s2536 + $0x68] sm:$0x1] %vm2011, %v2324
  %2565 = vst.msk [vmem:[%s2536 + $0x6c] sm:$0xe] %vm2537, %v2325
  %2566 = vst.msk [vmem:[%s2536 + $0x70] sm:$0xf] %vm1996, %v2328
  %2567 = vst.msk [vmem:[%s2536 + $0x74] sm:$0x1] %vm2011, %v2329
  %2568 = vst.msk [vmem:[%s2536 + $0x78] sm:$0xe] %vm2537, %v2330
  %2569 = vst.msk [vmem:[%s2536 + $0x7c] sm:$0xf] %vm1996, %v2333
  %2570 = vst.msk [vmem:[%s2536 + $0x80] sm:$0x1] %vm2011, %v2334
  %2571 = vst.msk [vmem:[%s2536 + $0x84] sm:$0xe] %vm2537, %v2335
  %2572 = vst.msk [vmem:[%s2536 + $0x88] sm:$0xf] %vm1996, %v2338
  %2573 = vst.msk [vmem:[%s2536 + $0x8c] sm:$0x1] %vm2011, %v2339
  %2574 = vst.msk [vmem:[%s2536 + $0x90] sm:$0xe] %vm2537, %v2340
  %2575 = vst.msk [vmem:[%s2536 + $0x94] sm:$0xf] %vm1996, %v2343
  %2576 = vst.msk [vmem:[%s2536 + $0x98] sm:$0x1] %vm2011, %v2344
  %2577 = vst.msk [vmem:[%s2536 + $0x9c] sm:$0xe] %vm2537, %v2345
  %2578 = vst.msk [vmem:[%s2536 + $0xa0] sm:$0xf] %vm1996, %v2348
  %2579 = vst.msk [vmem:[%s2536 + $0xa4] sm:$0x1] %vm2011, %v2349
  %2580 = vst.msk [vmem:[%s2536 + $0xa8] sm:$0xe] %vm2537, %v2350
  %2581 = vst.msk [vmem:[%s2536 + $0xac] sm:$0xf] %vm1996, %v2353
  %2582 = vst.msk [vmem:[%s2536 + $0xb0] sm:$0x1] %vm2011, %v2354
  %2583 = vst.msk [vmem:[%s2536 + $0xb4] sm:$0xe] %vm2537, %v2355
  %2584 = vst.msk [vmem:[%s2536 + $0xb8] sm:$0xf] %vm1996, %v2358
  %2585 = vst.msk [vmem:[%s2536 + $0xbc] sm:$0x1] %vm2011, %v2359
  %2586 = vst.msk [vmem:[%s2536 + $0xd8] sm:$0xe] %vm2537, %v2360
  %2587 = vst.msk [vmem:[%s2536 + $0xdc] sm:$0xf] %vm1996, %v2363
  %2588 = vst.msk [vmem:[%s2536 + $0xe0] sm:$0x1] %vm2011, %v2364
  %2589 = vst.msk [vmem:[%s2536 + $0xe4] sm:$0xe] %vm2537, %v2365
  %2590 = vst.msk [vmem:[%s2536 + $0xe8] sm:$0xf] %vm1996, %v2368
  %2591 = vst.msk [vmem:[%s2536 + $0xec] sm:$0x1] %vm2011, %v2369
  %2592 = vst.msk [vmem:[%s2536 + $0xf0] sm:$0xe] %vm2537, %v2370
  %2593 = vst.msk [vmem:[%s2536 + $0xf4] sm:$0xf] %vm1996, %v2373
  %2594 = vst.msk [vmem:[%s2536 + $0xf8] sm:$0x1] %vm2011, %v2374
  %2595 = vst.msk [vmem:[%s2536 + $0xfc] sm:$0xe] %vm2537, %v2375
  %2596 = vst.msk [vmem:[%s2536 + $0x100] sm:$0xf] %vm1996, %v2378
  %2597 = vst.msk [vmem:[%s2536 + $0x104] sm:$0x1] %vm2011, %v2379
  %2598 = vst.msk [vmem:[%s2536 + $0x108] sm:$0xe] %vm2537, %v2380
  %2599 = vst.msk [vmem:[%s2536 + $0x10c] sm:$0xf] %vm1996, %v2383
  %2600 = vst.msk [vmem:[%s2536 + $0x110] sm:$0x1] %vm2011, %v2384
  %2601 = vst.msk [vmem:[%s2536 + $0x114] sm:$0xe] %vm2537, %v2385
  %2602 = vst.msk [vmem:[%s2536 + $0x118] sm:$0xf] %vm1996, %v2388
  %2603 = vst.msk [vmem:[%s2536 + $0x11c] sm:$0x1] %vm2011, %v2389
  %2604 = vst.msk [vmem:[%s2536 + $0x120] sm:$0xe] %vm2537, %v2390
  %2605 = vst.msk [vmem:[%s2536 + $0x124] sm:$0xf] %vm1996, %v2393
  %2606 = vst.msk [vmem:[%s2536 + $0x128] sm:$0x1] %vm2011, %v2394
  %2607 = vst.msk [vmem:[%s2536 + $0x12c] sm:$0xe] %vm2537, %v2395
  %2608 = vst.msk [vmem:[%s2536 + $0x130] sm:$0xf] %vm1996, %v2398
  %2609 = vst.msk [vmem:[%s2536 + $0x134] sm:$0x1] %vm2011, %v2399
  %2610 = vst.msk [vmem:[%s2536 + $0x138] sm:$0xe] %vm2537, %v2400
  %2611 = vst.msk [vmem:[%s2536 + $0x13c] sm:$0xf] %vm1996, %v2403
  %2612 = vst.msk [vmem:[%s2536 + $0x140] sm:$0x1] %vm2011, %v2404
  %2613 = vst.msk [vmem:[%s2536 + $0x144] sm:$0xe] %vm2537, %v2405
  %2614 = vst.msk [vmem:[%s2536 + $0x148] sm:$0xf] %vm1996, %v2408
  %2615 = vst.msk [vmem:[%s2536 + $0x14c] sm:$0x1] %vm2011, %v2409
  %2616 = vst.msk [vmem:[%s2536 + $0x150] sm:$0xe] %vm2537, %v2410
  %2617 = vst.msk [vmem:[%s2536 + $0x154] sm:$0xf] %vm1996, %v2413
  %2618 = vst.msk [vmem:[%s2536 + $0x158] sm:$0x1] %vm2011, %v2414
  %2619 = vst.msk [vmem:[%s2536 + $0x15c] sm:$0xe] %vm2537, %v2415
  %2620 = vst.msk [vmem:[%s2536 + $0x160] sm:$0xf] %vm1996, %v2418
  %2621 = vst.msk [vmem:[%s2536 + $0x164] sm:$0x1] %vm2011, %v2419
  %2622 = vst.msk [vmem:[%s2536 + $0x168] sm:$0xe] %vm2537, %v2420
  %2623 = vst.msk [vmem:[%s2536 + $0x16c] sm:$0xf] %vm1996, %v2423
  %2624 = vst.msk [vmem:[%s2536 + $0x170] sm:$0x1] %vm2011, %v2424
  %2625 = vst.msk [vmem:[%s2536 + $0x174] sm:$0xe] %vm2537, %v2425
  %2626 = vst.msk [vmem:[%s2536 + $0x178] sm:$0xf] %vm1996, %v2428
  %2627 = vst.msk [vmem:[%s2536 + $0x17c] sm:$0x1] %vm2011, %v2429
  %2628 = vst.msk [vmem:[%s2536 + $0x180] sm:$0xe] %vm2537, %v2430
  %2629 = vst.msk [vmem:[%s2536 + $0x184] sm:$0xf] %vm1996, %v2433
  %2630 = vst.msk [vmem:[%s2536 + $0x188] sm:$0x1] %vm2011, %v2434
  %2631 = vst.msk [vmem:[%s2536 + $0x18c] sm:$0xe] %vm2537, %v2435
  %2632 = vst.msk [vmem:[%s2536 + $0x190] sm:$0xf] %vm1996, %v2438
  %2633 = vst.msk [vmem:[%s2536 + $0x194] sm:$0x1] %vm2011, %v2439
  %v2634 = vld [vmem:[#allocation2] sm:$0xf]
  %v2635 = vld [vmem:[#allocation2 + $0x4] sm:$0xf]
  %v2636 = vld [vmem:[#allocation2 + $0x8] sm:$0x3]
  %v2637 = vld [vmem:[#allocation2 + $0xc] sm:$0xf]
  %v2638 = vld [vmem:[#allocation2 + $0x10] sm:$0xf]
  %v2639 = vld [vmem:[#allocation2 + $0x14] sm:$0x3]
  %v2640 = vld [vmem:[#allocation2 + $0x18] sm:$0xf]
  %v2641 = vld [vmem:[#allocation2 + $0x1c] sm:$0xf]
  %v2642 = vld [vmem:[#allocation2 + $0x20] sm:$0x3]
  %v2643 = vld [vmem:[#allocation2 + $0x24] sm:$0xf]
  %v2644 = vld [vmem:[#allocation2 + $0x28] sm:$0xf]
  %v2645 = vld [vmem:[#allocation2 + $0x2c] sm:$0x3]
  %v2646 = vld [vmem:[#allocation2 + $0x30] sm:$0xf]
  %v2647 = vld [vmem:[#allocation2 + $0x34] sm:$0xf]
  %v2648 = vld [vmem:[#allocation2 + $0x38] sm:$0x3]
  %v2649 = vld [vmem:[#allocation2 + $0x3c] sm:$0xf]
  %v2650 = vld [vmem:[#allocation2 + $0x40] sm:$0xf]
  %v2651 = vld [vmem:[#allocation2 + $0x44] sm:$0x3]
  %v2652 = vld [vmem:[#allocation2 + $0x48] sm:$0xf]
  %v2653 = vld [vmem:[#allocation2 + $0x4c] sm:$0xf]
  %v2654 = vld [vmem:[#allocation2 + $0x50] sm:$0x3]
  %v2655 = vld [vmem:[#allocation2 + $0x54] sm:$0xf]
  %v2656 = vld [vmem:[#allocation2 + $0x58] sm:$0xf]
  %v2657 = vld [vmem:[#allocation2 + $0x5c] sm:$0x3]
  %v2658 = vld [vmem:[#allocation2 + $0x60] sm:$0xf]
  %v2659 = vld [vmem:[#allocation2 + $0x64] sm:$0xf]
  %v2660 = vld [vmem:[#allocation2 + $0x68] sm:$0x3]
  %v2661 = vld [vmem:[#allocation2 + $0x6c] sm:$0xf]
  %v2662 = vld [vmem:[#allocation2 + $0x70] sm:$0xf]
  %v2663 = vld [vmem:[#allocation2 + $0x74] sm:$0x3]
  %v2664 = vld [vmem:[#allocation2 + $0x78] sm:$0xf]
  %v2665 = vld [vmem:[#allocation2 + $0x7c] sm:$0xf]
  %v2666 = vld [vmem:[#allocation2 + $0x80] sm:$0x3]
  %v2667 = vld [vmem:[#allocation2 + $0x84] sm:$0xf]
  %v2668 = vld [vmem:[#allocation2 + $0x88] sm:$0xf]
  %v2669 = vld [vmem:[#allocation2 + $0x8c] sm:$0x3]
  %v2670 = vld [vmem:[#allocation2 + $0x90] sm:$0xf]
  %v2671 = vld [vmem:[#allocation2 + $0x94] sm:$0xf]
  %v2672 = vld [vmem:[#allocation2 + $0x98] sm:$0x3]
  %v2673 = vld [vmem:[#allocation2 + $0x9c] sm:$0xf]
  %v2674 = vld [vmem:[#allocation2 + $0xa0] sm:$0xf]
  %v2675 = vld [vmem:[#allocation2 + $0xa4] sm:$0x3]
  %v2676 = vld [vmem:[#allocation2 + $0xa8] sm:$0xf]
  %v2677 = vld [vmem:[#allocation2 + $0xac] sm:$0xf]
  %v2678 = vld [vmem:[#allocation2 + $0xb0] sm:$0x3]
  %v2679 = vld [vmem:[#allocation2 + $0xb4] sm:$0xf]
  %v2680 = vld [vmem:[#allocation2 + $0xb8] sm:$0xf]
  %v2681 = vld [vmem:[#allocation2 + $0xbc] sm:$0x3]
  %v2682 = vld [vmem:[#allocation2 + $0xc0] sm:$0xf]
  %v2683 = vld [vmem:[#allocation2 + $0xc4] sm:$0xf]
  %v2684 = vld [vmem:[#allocation2 + $0xc8] sm:$0x3]
  %v2685 = vld [vmem:[#allocation2 + $0xcc] sm:$0xf]
  %v2686 = vld [vmem:[#allocation2 + $0xd0] sm:$0xf]
  %v2687 = vld [vmem:[#allocation2 + $0xd4] sm:$0x3]
  %v2688 = vld [vmem:[#allocation2 + $0xd8] sm:$0xf]
  %v2689 = vld [vmem:[#allocation2 + $0xdc] sm:$0xf]
  %v2690 = vld [vmem:[#allocation2 + $0xe0] sm:$0x3]
  %v2691 = vld [vmem:[#allocation2 + $0xe4] sm:$0xf]
  %v2692 = vld [vmem:[#allocation2 + $0xe8] sm:$0xf]
  %v2693 = vld [vmem:[#allocation2 + $0xec] sm:$0x3]
  %v2694 = vld [vmem:[#allocation2 + $0xf0] sm:$0xf]
  %v2695 = vld [vmem:[#allocation2 + $0xf4] sm:$0xf]
  %v2696 = vld [vmem:[#allocation2 + $0xf8] sm:$0x3]
  %v2697 = vld [vmem:[#allocation2 + $0xfc] sm:$0xf]
  %v2698 = vld [vmem:[#allocation2 + $0x100] sm:$0xf]
  %v2699 = vld [vmem:[#allocation2 + $0x104] sm:$0x3]
  %v2700 = vld [vmem:[#allocation2 + $0x108] sm:$0xf]
  %v2701 = vld [vmem:[#allocation2 + $0x10c] sm:$0xf]
  %v2702 = vld [vmem:[#allocation2 + $0x110] sm:$0x3]
  %v2703 = vld [vmem:[#allocation2 + $0x114] sm:$0xf]
  %v2704 = vld [vmem:[#allocation2 + $0x118] sm:$0xf]
  %v2705 = vld [vmem:[#allocation2 + $0x11c] sm:$0x3]
  %v2706 = vld [vmem:[#allocation2 + $0x120] sm:$0xf]
  %v2707 = vld [vmem:[#allocation2 + $0x124] sm:$0xf]
  %v2708 = vld [vmem:[#allocation2 + $0x128] sm:$0x3]
  %v2709 = vld [vmem:[#allocation2 + $0x12c] sm:$0xf]
  %v2710 = vld [vmem:[#allocation2 + $0x130] sm:$0xf]
  %v2711 = vld [vmem:[#allocation2 + $0x134] sm:$0x3]
  %v2712 = vld [vmem:[#allocation2 + $0x138] sm:$0xf]
  %v2713 = vld [vmem:[#allocation2 + $0x13c] sm:$0xf]
  %v2714 = vld [vmem:[#allocation2 + $0x140] sm:$0x3]
  %v2715 = vld [vmem:[#allocation2 + $0x144] sm:$0xf]
  %v2716 = vld [vmem:[#allocation2 + $0x148] sm:$0xf]
  %v2717 = vld [vmem:[#allocation2 + $0x14c] sm:$0x3]
  %v2718 = vld [vmem:[#allocation2 + $0x150] sm:$0xf]
  %v2719 = vld [vmem:[#allocation2 + $0x154] sm:$0xf]
  %v2720 = vld [vmem:[#allocation2 + $0x158] sm:$0x3]
  %v2721 = vld [vmem:[#allocation2 + $0x15c] sm:$0xf]
  %v2722 = vld [vmem:[#allocation2 + $0x160] sm:$0xf]
  %v2723 = vld [vmem:[#allocation2 + $0x164] sm:$0x3]
  %v2724 = vld [vmem:[#allocation2 + $0x168] sm:$0xf]
  %v2725 = vld [vmem:[#allocation2 + $0x16c] sm:$0xf]
  %v2726 = vld [vmem:[#allocation2 + $0x170] sm:$0x3]
  %v2727 = vld [vmem:[#allocation2 + $0x174] sm:$0xf]
  %v2728 = vld [vmem:[#allocation2 + $0x178] sm:$0xf]
  %v2729 = vld [vmem:[#allocation2 + $0x17c] sm:$0x3]
  %v2730 = vld [vmem:[#allocation2 + $0x180] sm:$0xf]
  %v2731 = vld [vmem:[#allocation2 + $0x184] sm:$0xf]
  %v2732 = vld [vmem:[#allocation2 + $0x188] sm:$0x3]
  %v2733 = vld [vmem:[#allocation2 + $0x18c] sm:$0xf]
  %v2734 = vld [vmem:[#allocation2 + $0x190] sm:$0xf]
  %v2735 = vld [vmem:[#allocation2 + $0x194] sm:$0x3]
  %v2736 = vld [vmem:[#allocation2 + $0x198] sm:$0xf]
  %v2737 = vld [vmem:[#allocation2 + $0x19c] sm:$0xf]
  %v2738 = vld [vmem:[#allocation2 + $0x1a0] sm:$0x3]
  %v2739 = vld [vmem:[#allocation2 + $0x1a4] sm:$0xf]
  %v2740 = vld [vmem:[#allocation2 + $0x1a8] sm:$0xf]
  %v2741 = vld [vmem:[#allocation2 + $0x1ac] sm:$0x3]
  %v2850 = vunpack.c.l.b16 %v2634
  %v2851 = vunpack.c.l.b16 %v2635
  %v2852 = vunpack.c.l.b16 %v2636
  %v2853 = vunpack.c.l.b16 %v2637
  %v2854 = vunpack.c.l.b16 %v2638
  %v2855 = vunpack.c.l.b16 %v2639
  %v2856 = vunpack.c.l.b16 %v2640
  %v2857 = vunpack.c.l.b16 %v2641
  %v2858 = vunpack.c.l.b16 %v2642
  %v2859 = vunpack.c.l.b16 %v2643
  %v2860 = vunpack.c.l.b16 %v2644
  %v2861 = vunpack.c.l.b16 %v2645
  %v2862 = vunpack.c.l.b16 %v2646
  %v2863 = vunpack.c.l.b16 %v2647
  %v2864 = vunpack.c.l.b16 %v2648
  %v2865 = vunpack.c.l.b16 %v2649
  %v2866 = vunpack.c.l.b16 %v2650
  %v2867 = vunpack.c.l.b16 %v2651
  %v2868 = vunpack.c.l.b16 %v2652
  %v2869 = vunpack.c.l.b16 %v2653
  %v2870 = vunpack.c.l.b16 %v2654
  %v2871 = vunpack.c.l.b16 %v2655
  %v2872 = vunpack.c.l.b16 %v2656
  %v2873 = vunpack.c.l.b16 %v2657
  %v2874 = vunpack.c.l.b16 %v2658
  %v2875 = vunpack.c.l.b16 %v2659
  %v2876 = vunpack.c.l.b16 %v2660
  %v2877 = vunpack.c.l.b16 %v2661
  %v2878 = vunpack.c.l.b16 %v2662
  %v2879 = vunpack.c.l.b16 %v2663
  %v2880 = vunpack.c.l.b16 %v2664
  %v2881 = vunpack.c.l.b16 %v2665
  %v2882 = vunpack.c.l.b16 %v2666
  %v2883 = vunpack.c.l.b16 %v2667
  %v2884 = vunpack.c.l.b16 %v2668
  %v2885 = vunpack.c.l.b16 %v2669
  %v2886 = vunpack.c.l.b16 %v2670
  %v2887 = vunpack.c.l.b16 %v2671
  %v2888 = vunpack.c.l.b16 %v2672
  %v2889 = vunpack.c.l.b16 %v2673
  %v2890 = vunpack.c.l.b16 %v2674
  %v2891 = vunpack.c.l.b16 %v2675
  %v2892 = vunpack.c.l.b16 %v2676
  %v2893 = vunpack.c.l.b16 %v2677
  %v2894 = vunpack.c.l.b16 %v2678
  %v2895 = vunpack.c.l.b16 %v2679
  %v2896 = vunpack.c.l.b16 %v2680
  %v2897 = vunpack.c.l.b16 %v2681
  %v2898 = vunpack.c.l.b16 %v2682
  %v2899 = vunpack.c.l.b16 %v2683
  %v2900 = vunpack.c.l.b16 %v2684
  %v2901 = vunpack.c.l.b16 %v2685
  %v2902 = vunpack.c.l.b16 %v2686
  %v2903 = vunpack.c.l.b16 %v2687
  %v2904 = vunpack.c.l.b16 %v2688
  %v2905 = vunpack.c.l.b16 %v2689
  %v2906 = vunpack.c.l.b16 %v2690
  %v2907 = vunpack.c.l.b16 %v2691
  %v2908 = vunpack.c.l.b16 %v2692
  %v2909 = vunpack.c.l.b16 %v2693
  %v2910 = vunpack.c.l.b16 %v2694
  %v2911 = vunpack.c.l.b16 %v2695
  %v2912 = vunpack.c.l.b16 %v2696
  %v2913 = vunpack.c.l.b16 %v2697
  %v2914 = vunpack.c.l.b16 %v2698
  %v2915 = vunpack.c.l.b16 %v2699
  %v2916 = vunpack.c.l.b16 %v2700
  %v2917 = vunpack.c.l.b16 %v2701
  %v2918 = vunpack.c.l.b16 %v2702
  %v2919 = vunpack.c.l.b16 %v2703
  %v2920 = vunpack.c.l.b16 %v2704
  %v2921 = vunpack.c.l.b16 %v2705
  %v2922 = vunpack.c.l.b16 %v2706
  %v2923 = vunpack.c.l.b16 %v2707
  %v2924 = vunpack.c.l.b16 %v2708
  %v2925 = vunpack.c.l.b16 %v2709
  %v2926 = vunpack.c.l.b16 %v2710
  %v2927 = vunpack.c.l.b16 %v2711
  %v2928 = vunpack.c.l.b16 %v2712
  %v2929 = vunpack.c.l.b16 %v2713
  %v2930 = vunpack.c.l.b16 %v2714
  %v2931 = vunpack.c.l.b16 %v2715
  %v2932 = vunpack.c.l.b16 %v2716
  %v2933 = vunpack.c.l.b16 %v2717
  %v2934 = vunpack.c.l.b16 %v2718
  %v2935 = vunpack.c.l.b16 %v2719
  %v2936 = vunpack.c.l.b16 %v2720
  %v2937 = vunpack.c.l.b16 %v2721
  %v2938 = vunpack.c.l.b16 %v2722
  %v2939 = vunpack.c.l.b16 %v2723
  %v2940 = vunpack.c.l.b16 %v2724
  %v2941 = vunpack.c.l.b16 %v2725
  %v2942 = vunpack.c.l.b16 %v2726
  %v2943 = vunpack.c.l.b16 %v2727
  %v2944 = vunpack.c.l.b16 %v2728
  %v2945 = vunpack.c.l.b16 %v2729
  %v2946 = vunpack.c.l.b16 %v2730
  %v2947 = vunpack.c.l.b16 %v2731
  %v2948 = vunpack.c.l.b16 %v2732
  %v2949 = vunpack.c.l.b16 %v2733
  %v2950 = vunpack.c.l.b16 %v2734
  %v2951 = vunpack.c.l.b16 %v2735
  %v2952 = vunpack.c.l.b16 %v2736
  %v2953 = vunpack.c.l.b16 %v2737
  %v2954 = vunpack.c.l.b16 %v2738
  %v2955 = vunpack.c.l.b16 %v2739
  %v2956 = vunpack.c.l.b16 %v2740
  %v2957 = vunpack.c.l.b16 %v2741
  %v2958 = vpack.c.b16 %v2851, %v2850
  %v2959 = vpack.c.b16 %v2852, %v2852
  %v2960 = vpack.c.b16 %v2854, %v2853
  %v2961 = vpack.c.b16 %v2855, %v2855
  %v2962 = vpack.c.b16 %v2857, %v2856
  %v2963 = vpack.c.b16 %v2858, %v2858
  %v2964 = vpack.c.b16 %v2860, %v2859
  %v2965 = vpack.c.b16 %v2861, %v2861
  %v2966 = vpack.c.b16 %v2863, %v2862
  %v2967 = vpack.c.b16 %v2864, %v2864
  %v2968 = vpack.c.b16 %v2866, %v2865
  %v2969 = vpack.c.b16 %v2867, %v2867
  %v2970 = vpack.c.b16 %v2869, %v2868
  %v2971 = vpack.c.b16 %v2870, %v2870
  %v2972 = vpack.c.b16 %v2872, %v2871
  %v2973 = vpack.c.b16 %v2873, %v2873
  %v2974 = vpack.c.b16 %v2875, %v2874
  %v2975 = vpack.c.b16 %v2876, %v2876
  %v2976 = vpack.c.b16 %v2878, %v2877
  %v2977 = vpack.c.b16 %v2879, %v2879
  %v2978 = vpack.c.b16 %v2881, %v2880
  %v2979 = vpack.c.b16 %v2882, %v2882
  %v2980 = vpack.c.b16 %v2884, %v2883
  %v2981 = vpack.c.b16 %v2885, %v2885
  %v2982 = vpack.c.b16 %v2887, %v2886
  %v2983 = vpack.c.b16 %v2888, %v2888
  %v2984 = vpack.c.b16 %v2890, %v2889
  %v2985 = vpack.c.b16 %v2891, %v2891
  %v2986 = vpack.c.b16 %v2893, %v2892
  %v2987 = vpack.c.b16 %v2894, %v2894
  %v2988 = vpack.c.b16 %v2896, %v2895
  %v2989 = vpack.c.b16 %v2897, %v2897
  %v2990 = vpack.c.b16 %v2899, %v2898
  %v2991 = vpack.c.b16 %v2900, %v2900
  %v2992 = vpack.c.b16 %v2902, %v2901
  %v2993 = vpack.c.b16 %v2903, %v2903
  %v2994 = vpack.c.b16 %v2905, %v2904
  %v2995 = vpack.c.b16 %v2906, %v2906
  %v2996 = vpack.c.b16 %v2908, %v2907
  %v2997 = vpack.c.b16 %v2909, %v2909
  %v2998 = vpack.c.b16 %v2911, %v2910
  %v2999 = vpack.c.b16 %v2912, %v2912
  %v3000 = vpack.c.b16 %v2914, %v2913
  %v3001 = vpack.c.b16 %v2915, %v2915
  %v3002 = vpack.c.b16 %v2917, %v2916
  %v3003 = vpack.c.b16 %v2918, %v2918
  %v3004 = vpack.c.b16 %v2920, %v2919
  %v3005 = vpack.c.b16 %v2921, %v2921
  %v3006 = vpack.c.b16 %v2923, %v2922
  %v3007 = vpack.c.b16 %v2924, %v2924
  %v3008 = vpack.c.b16 %v2926, %v2925
  %v3009 = vpack.c.b16 %v2927, %v2927
  %v3010 = vpack.c.b16 %v2929, %v2928
  %v3011 = vpack.c.b16 %v2930, %v2930
  %v3012 = vpack.c.b16 %v2932, %v2931
  %v3013 = vpack.c.b16 %v2933, %v2933
  %v3014 = vpack.c.b16 %v2935, %v2934
  %v3015 = vpack.c.b16 %v2936, %v2936
  %v3016 = vpack.c.b16 %v2938, %v2937
  %v3017 = vpack.c.b16 %v2939, %v2939
  %v3018 = vpack.c.b16 %v2941, %v2940
  %v3019 = vpack.c.b16 %v2942, %v2942
  %v3020 = vpack.c.b16 %v2944, %v2943
  %v3021 = vpack.c.b16 %v2945, %v2945
  %v3022 = vpack.c.b16 %v2947, %v2946
  %v3023 = vpack.c.b16 %v2948, %v2948
  %v3024 = vpack.c.b16 %v2950, %v2949
  %v3025 = vpack.c.b16 %v2951, %v2951
  %v3026 = vpack.c.b16 %v2953, %v2952
  %v3027 = vpack.c.b16 %v2954, %v2954
  %v3028 = vpack.c.b16 %v2956, %v2955
  %v3029 = vpack.c.b16 %v2957, %v2957
  %v3031 = vshrl.u32 %v2958, 16
  %v3033 = vshll.u32 %v2958, 16
  %v3035 = vrot.slane %v3033, 1
  %v3036 = vor.u32 %v3031, %v3035
  %v3038 = vshll.u32 %v2959, 16
  %v3040 = vrot.slane %v3038, 1
  %v3041 = vsel %vm423, %v3036, %v3040
  %v3042 = vshrl.u32 %v2959, 16
  %v3045 = vshrl.u32 %v2960, 16
  %v3047 = vshll.u32 %v2960, 16
  %v3049 = vrot.slane %v3047, 1
  %v3050 = vor.u32 %v3045, %v3049
  %v3052 = vshll.u32 %v2961, 16
  %v3054 = vrot.slane %v3052, 1
  %v3055 = vsel %vm423, %v3050, %v3054
  %v3056 = vshrl.u32 %v2961, 16
  %v3059 = vshrl.u32 %v2962, 16
  %v3061 = vshll.u32 %v2962, 16
  %v3063 = vrot.slane %v3061, 1
  %v3064 = vor.u32 %v3059, %v3063
  %v3066 = vshll.u32 %v2963, 16
  %v3068 = vrot.slane %v3066, 1
  %v3069 = vsel %vm423, %v3064, %v3068
  %v3070 = vshrl.u32 %v2963, 16
  %v3073 = vshrl.u32 %v2964, 16
  %v3075 = vshll.u32 %v2964, 16
  %v3077 = vrot.slane %v3075, 1
  %v3078 = vor.u32 %v3073, %v3077
  %v3080 = vshll.u32 %v2965, 16
  %v3082 = vrot.slane %v3080, 1
  %v3083 = vsel %vm423, %v3078, %v3082
  %v3084 = vshrl.u32 %v2965, 16
  %v3087 = vshrl.u32 %v2966, 16
  %v3089 = vshll.u32 %v2966, 16
  %v3091 = vrot.slane %v3089, 1
  %v3092 = vor.u32 %v3087, %v3091
  %v3094 = vshll.u32 %v2967, 16
  %v3096 = vrot.slane %v3094, 1
  %v3097 = vsel %vm423, %v3092, %v3096
  %v3098 = vshrl.u32 %v2967, 16
  %v3101 = vshrl.u32 %v2968, 16
  %v3103 = vshll.u32 %v2968, 16
  %v3105 = vrot.slane %v3103, 1
  %v3106 = vor.u32 %v3101, %v3105
  %v3108 = vshll.u32 %v2969, 16
  %v3110 = vrot.slane %v3108, 1
  %v3111 = vsel %vm423, %v3106, %v3110
  %v3112 = vshrl.u32 %v2969, 16
  %v3115 = vshrl.u32 %v2970, 16
  %v3117 = vshll.u32 %v2970, 16
  %v3119 = vrot.slane %v3117, 1
  %v3120 = vor.u32 %v3115, %v3119
  %v3122 = vshll.u32 %v2971, 16
  %v3124 = vrot.slane %v3122, 1
  %v3125 = vsel %vm423, %v3120, %v3124
  %v3126 = vshrl.u32 %v2971, 16
  %v3129 = vshrl.u32 %v2972, 16
  %v3131 = vshll.u32 %v2972, 16
  %v3133 = vrot.slane %v3131, 1
  %v3134 = vor.u32 %v3129, %v3133
  %v3136 = vshll.u32 %v2973, 16
  %v3138 = vrot.slane %v3136, 1
  %v3139 = vsel %vm423, %v3134, %v3138
  %v3140 = vshrl.u32 %v2973, 16
  %v3143 = vshrl.u32 %v2974, 16
  %v3145 = vshll.u32 %v2974, 16
  %v3147 = vrot.slane %v3145, 1
  %v3148 = vor.u32 %v3143, %v3147
  %v3150 = vshll.u32 %v2975, 16
  %v3152 = vrot.slane %v3150, 1
  %v3153 = vsel %vm423, %v3148, %v3152
  %v3154 = vshrl.u32 %v2975, 16
  %v3157 = vshrl.u32 %v2976, 16
  %v3159 = vshll.u32 %v2976, 16
  %v3161 = vrot.slane %v3159, 1
  %v3162 = vor.u32 %v3157, %v3161
  %v3164 = vshll.u32 %v2977, 16
  %v3166 = vrot.slane %v3164, 1
  %v3167 = vsel %vm423, %v3162, %v3166
  %v3168 = vshrl.u32 %v2977, 16
  %v3171 = vshrl.u32 %v2978, 16
  %v3173 = vshll.u32 %v2978, 16
  %v3175 = vrot.slane %v3173, 1
  %v3176 = vor.u32 %v3171, %v3175
  %v3178 = vshll.u32 %v2979, 16
  %v3180 = vrot.slane %v3178, 1
  %v3181 = vsel %vm423, %v3176, %v3180
  %v3182 = vshrl.u32 %v2979, 16
  %v3185 = vshrl.u32 %v2980, 16
  %v3187 = vshll.u32 %v2980, 16
  %v3189 = vrot.slane %v3187, 1
  %v3190 = vor.u32 %v3185, %v3189
  %v3192 = vshll.u32 %v2981, 16
  %v3194 = vrot.slane %v3192, 1
  %v3195 = vsel %vm423, %v3190, %v3194
  %v3196 = vshrl.u32 %v2981, 16
  %v3199 = vshrl.u32 %v2982, 16
  %v3201 = vshll.u32 %v2982, 16
  %v3203 = vrot.slane %v3201, 1
  %v3204 = vor.u32 %v3199, %v3203
  %v3206 = vshll.u32 %v2983, 16
  %v3208 = vrot.slane %v3206, 1
  %v3209 = vsel %vm423, %v3204, %v3208
  %v3210 = vshrl.u32 %v2983, 16
  %v3213 = vshrl.u32 %v2984, 16
  %v3215 = vshll.u32 %v2984, 16
  %v3217 = vrot.slane %v3215, 1
  %v3218 = vor.u32 %v3213, %v3217
  %v3220 = vshll.u32 %v2985, 16
  %v3222 = vrot.slane %v3220, 1
  %v3223 = vsel %vm423, %v3218, %v3222
  %v3224 = vshrl.u32 %v2985, 16
  %v3227 = vshrl.u32 %v2986, 16
  %v3229 = vshll.u32 %v2986, 16
  %v3231 = vrot.slane %v3229, 1
  %v3232 = vor.u32 %v3227, %v3231
  %v3234 = vshll.u32 %v2987, 16
  %v3236 = vrot.slane %v3234, 1
  %v3237 = vsel %vm423, %v3232, %v3236
  %v3238 = vshrl.u32 %v2987, 16
  %v3241 = vshrl.u32 %v2988, 16
  %v3243 = vshll.u32 %v2988, 16
  %v3245 = vrot.slane %v3243, 1
  %v3246 = vor.u32 %v3241, %v3245
  %v3248 = vshll.u32 %v2989, 16
  %v3250 = vrot.slane %v3248, 1
  %v3251 = vsel %vm423, %v3246, %v3250
  %v3252 = vshrl.u32 %v2989, 16
  %v3255 = vshrl.u32 %v2990, 16
  %v3257 = vshll.u32 %v2990, 16
  %v3259 = vrot.slane %v3257, 1
  %v3260 = vor.u32 %v3255, %v3259
  %v3262 = vshll.u32 %v2991, 16
  %v3264 = vrot.slane %v3262, 1
  %v3265 = vsel %vm423, %v3260, %v3264
  %v3266 = vshrl.u32 %v2991, 16
  %v3269 = vshrl.u32 %v2992, 16
  %v3271 = vshll.u32 %v2992, 16
  %v3273 = vrot.slane %v3271, 1
  %v3274 = vor.u32 %v3269, %v3273
  %v3276 = vshll.u32 %v2993, 16
  %v3278 = vrot.slane %v3276, 1
  %v3279 = vsel %vm423, %v3274, %v3278
  %v3280 = vshrl.u32 %v2993, 16
  %v3283 = vshrl.u32 %v2994, 16
  %v3285 = vshll.u32 %v2994, 16
  %v3287 = vrot.slane %v3285, 1
  %v3288 = vor.u32 %v3283, %v3287
  %v3290 = vshll.u32 %v2995, 16
  %v3292 = vrot.slane %v3290, 1
  %v3293 = vsel %vm423, %v3288, %v3292
  %v3294 = vshrl.u32 %v2995, 16
  %v3297 = vshrl.u32 %v2996, 16
  %v3299 = vshll.u32 %v2996, 16
  %v3301 = vrot.slane %v3299, 1
  %v3302 = vor.u32 %v3297, %v3301
  %v3304 = vshll.u32 %v2997, 16
  %v3306 = vrot.slane %v3304, 1
  %v3307 = vsel %vm423, %v3302, %v3306
  %v3308 = vshrl.u32 %v2997, 16
  %v3311 = vshrl.u32 %v2998, 16
  %v3313 = vshll.u32 %v2998, 16
  %v3315 = vrot.slane %v3313, 1
  %v3316 = vor.u32 %v3311, %v3315
  %v3318 = vshll.u32 %v2999, 16
  %v3320 = vrot.slane %v3318, 1
  %v3321 = vsel %vm423, %v3316, %v3320
  %v3322 = vshrl.u32 %v2999, 16
  %v3325 = vshrl.u32 %v3000, 16
  %v3327 = vshll.u32 %v3000, 16
  %v3329 = vrot.slane %v3327, 1
  %v3330 = vor.u32 %v3325, %v3329
  %v3332 = vshll.u32 %v3001, 16
  %v3334 = vrot.slane %v3332, 1
  %v3335 = vsel %vm423, %v3330, %v3334
  %v3336 = vshrl.u32 %v3001, 16
  %v3339 = vshrl.u32 %v3002, 16
  %v3341 = vshll.u32 %v3002, 16
  %v3343 = vrot.slane %v3341, 1
  %v3344 = vor.u32 %v3339, %v3343
  %v3346 = vshll.u32 %v3003, 16
  %v3348 = vrot.slane %v3346, 1
  %v3349 = vsel %vm423, %v3344, %v3348
  %v3350 = vshrl.u32 %v3003, 16
  %v3353 = vshrl.u32 %v3004, 16
  %v3355 = vshll.u32 %v3004, 16
  %v3357 = vrot.slane %v3355, 1
  %v3358 = vor.u32 %v3353, %v3357
  %v3360 = vshll.u32 %v3005, 16
  %v3362 = vrot.slane %v3360, 1
  %v3363 = vsel %vm423, %v3358, %v3362
  %v3364 = vshrl.u32 %v3005, 16
  %v3367 = vshrl.u32 %v3006, 16
  %v3369 = vshll.u32 %v3006, 16
  %v3371 = vrot.slane %v3369, 1
  %v3372 = vor.u32 %v3367, %v3371
  %v3374 = vshll.u32 %v3007, 16
  %v3376 = vrot.slane %v3374, 1
  %v3377 = vsel %vm423, %v3372, %v3376
  %v3378 = vshrl.u32 %v3007, 16
  %v3381 = vshrl.u32 %v3008, 16
  %v3383 = vshll.u32 %v3008, 16
  %v3385 = vrot.slane %v3383, 1
  %v3386 = vor.u32 %v3381, %v3385
  %v3388 = vshll.u32 %v3009, 16
  %v3390 = vrot.slane %v3388, 1
  %v3391 = vsel %vm423, %v3386, %v3390
  %v3392 = vshrl.u32 %v3009, 16
  %v3395 = vshrl.u32 %v3010, 16
  %v3397 = vshll.u32 %v3010, 16
  %v3399 = vrot.slane %v3397, 1
  %v3400 = vor.u32 %v3395, %v3399
  %v3402 = vshll.u32 %v3011, 16
  %v3404 = vrot.slane %v3402, 1
  %v3405 = vsel %vm423, %v3400, %v3404
  %v3406 = vshrl.u32 %v3011, 16
  %v3409 = vshrl.u32 %v3012, 16
  %v3411 = vshll.u32 %v3012, 16
  %v3413 = vrot.slane %v3411, 1
  %v3414 = vor.u32 %v3409, %v3413
  %v3416 = vshll.u32 %v3013, 16
  %v3418 = vrot.slane %v3416, 1
  %v3419 = vsel %vm423, %v3414, %v3418
  %v3420 = vshrl.u32 %v3013, 16
  %v3423 = vshrl.u32 %v3014, 16
  %v3425 = vshll.u32 %v3014, 16
  %v3427 = vrot.slane %v3425, 1
  %v3428 = vor.u32 %v3423, %v3427
  %v3430 = vshll.u32 %v3015, 16
  %v3432 = vrot.slane %v3430, 1
  %v3433 = vsel %vm423, %v3428, %v3432
  %v3434 = vshrl.u32 %v3015, 16
  %v3437 = vshrl.u32 %v3016, 16
  %v3439 = vshll.u32 %v3016, 16
  %v3441 = vrot.slane %v3439, 1
  %v3442 = vor.u32 %v3437, %v3441
  %v3444 = vshll.u32 %v3017, 16
  %v3446 = vrot.slane %v3444, 1
  %v3447 = vsel %vm423, %v3442, %v3446
  %v3448 = vshrl.u32 %v3017, 16
  %v3451 = vshrl.u32 %v3018, 16
  %v3453 = vshll.u32 %v3018, 16
  %v3455 = vrot.slane %v3453, 1
  %v3456 = vor.u32 %v3451, %v3455
  %v3458 = vshll.u32 %v3019, 16
  %v3460 = vrot.slane %v3458, 1
  %v3461 = vsel %vm423, %v3456, %v3460
  %v3462 = vshrl.u32 %v3019, 16
  %v3465 = vshrl.u32 %v3020, 16
  %v3467 = vshll.u32 %v3020, 16
  %v3469 = vrot.slane %v3467, 1
  %v3470 = vor.u32 %v3465, %v3469
  %v3472 = vshll.u32 %v3021, 16
  %v3474 = vrot.slane %v3472, 1
  %v3475 = vsel %vm423, %v3470, %v3474
  %v3476 = vshrl.u32 %v3021, 16
  %v3479 = vshrl.u32 %v3022, 16
  %v3481 = vshll.u32 %v3022, 16
  %v3483 = vrot.slane %v3481, 1
  %v3484 = vor.u32 %v3479, %v3483
  %v3486 = vshll.u32 %v3023, 16
  %v3488 = vrot.slane %v3486, 1
  %v3489 = vsel %vm423, %v3484, %v3488
  %v3490 = vshrl.u32 %v3023, 16
  %v3493 = vshrl.u32 %v3024, 16
  %v3495 = vshll.u32 %v3024, 16
  %v3497 = vrot.slane %v3495, 1
  %v3498 = vor.u32 %v3493, %v3497
  %v3500 = vshll.u32 %v3025, 16
  %v3502 = vrot.slane %v3500, 1
  %v3503 = vsel %vm423, %v3498, %v3502
  %v3504 = vshrl.u32 %v3025, 16
  %v3507 = vshrl.u32 %v3026, 16
  %v3509 = vshll.u32 %v3026, 16
  %v3511 = vrot.slane %v3509, 1
  %v3512 = vor.u32 %v3507, %v3511
  %v3514 = vshll.u32 %v3027, 16
  %v3516 = vrot.slane %v3514, 1
  %v3517 = vsel %vm423, %v3512, %v3516
  %v3518 = vshrl.u32 %v3027, 16
  %v3521 = vshrl.u32 %v3028, 16
  %v3523 = vshll.u32 %v3028, 16
  %v3525 = vrot.slane %v3523, 1
  %v3526 = vor.u32 %v3521, %v3525
  %v3528 = vshll.u32 %v3029, 16
  %v3530 = vrot.slane %v3528, 1
  %v3531 = vsel %vm423, %v3526, %v3530
  %v3532 = vshrl.u32 %v3029, 16
  %3534 = vrot.lane.b32.xlu0 %v3041, 32
  %v3535 = vpop.permute.xlu0 %3534
  %3536 = vrot.lane.b32.xlu0 %v3042, 32
  %v3537 = vpop.permute.xlu0 %3536
  %3538 = vrot.lane.b32.xlu0 %v3055, 32
  %v3539 = vpop.permute.xlu0 %3538
  %3540 = vrot.lane.b32.xlu0 %v3056, 32
  %v3541 = vpop.permute.xlu0 %3540
  %3542 = vrot.lane.b32.xlu0 %v3069, 32
  %v3543 = vpop.permute.xlu0 %3542
  %3544 = vrot.lane.b32.xlu0 %v3070, 32
  %v3545 = vpop.permute.xlu0 %3544
  %3546 = vrot.lane.b32.xlu0 %v3083, 32
  %v3547 = vpop.permute.xlu0 %3546
  %3548 = vrot.lane.b32.xlu0 %v3084, 32
  %v3549 = vpop.permute.xlu0 %3548
  %3550 = vrot.lane.b32.xlu0 %v3097, 32
  %v3551 = vpop.permute.xlu0 %3550
  %3552 = vrot.lane.b32.xlu0 %v3098, 32
  %v3553 = vpop.permute.xlu0 %3552
  %3554 = vrot.lane.b32.xlu0 %v3111, 32
  %v3555 = vpop.permute.xlu0 %3554
  %3556 = vrot.lane.b32.xlu0 %v3112, 32
  %v3557 = vpop.permute.xlu0 %3556
  %3558 = vrot.lane.b32.xlu0 %v3125, 32
  %v3559 = vpop.permute.xlu0 %3558
  %3560 = vrot.lane.b32.xlu0 %v3126, 32
  %v3561 = vpop.permute.xlu0 %3560
  %3562 = vrot.lane.b32.xlu0 %v3139, 32
  %v3563 = vpop.permute.xlu0 %3562
  %3564 = vrot.lane.b32.xlu0 %v3140, 32
  %v3565 = vpop.permute.xlu0 %3564
  %3566 = vrot.lane.b32.xlu0 %v3153, 32
  %v3567 = vpop.permute.xlu0 %3566
  %3568 = vrot.lane.b32.xlu0 %v3154, 32
  %v3569 = vpop.permute.xlu0 %3568
  %3570 = vrot.lane.b32.xlu0 %v3167, 32
  %v3571 = vpop.permute.xlu0 %3570
  %3572 = vrot.lane.b32.xlu0 %v3168, 32
  %v3573 = vpop.permute.xlu0 %3572
  %3574 = vrot.lane.b32.xlu0 %v3181, 32
  %v3575 = vpop.permute.xlu0 %3574
  %3576 = vrot.lane.b32.xlu0 %v3182, 32
  %v3577 = vpop.permute.xlu0 %3576
  %3578 = vrot.lane.b32.xlu0 %v3195, 32
  %v3579 = vpop.permute.xlu0 %3578
  %3580 = vrot.lane.b32.xlu0 %v3196, 32
  %v3581 = vpop.permute.xlu0 %3580
  %3582 = vrot.lane.b32.xlu0 %v3209, 32
  %v3583 = vpop.permute.xlu0 %3582
  %3584 = vrot.lane.b32.xlu0 %v3210, 32
  %v3585 = vpop.permute.xlu0 %3584
  %3586 = vrot.lane.b32.xlu0 %v3223, 32
  %v3587 = vpop.permute.xlu0 %3586
  %3588 = vrot.lane.b32.xlu0 %v3224, 32
  %v3589 = vpop.permute.xlu0 %3588
  %3590 = vrot.lane.b32.xlu0 %v3237, 32
  %v3591 = vpop.permute.xlu0 %3590
  %3592 = vrot.lane.b32.xlu0 %v3238, 32
  %v3593 = vpop.permute.xlu0 %3592
  %3594 = vrot.lane.b32.xlu0 %v3251, 32
  %v3595 = vpop.permute.xlu0 %3594
  %3596 = vrot.lane.b32.xlu0 %v3252, 32
  %v3597 = vpop.permute.xlu0 %3596
  %3598 = vrot.lane.b32.xlu0 %v3265, 32
  %v3599 = vpop.permute.xlu0 %3598
  %3600 = vrot.lane.b32.xlu0 %v3266, 32
  %v3601 = vpop.permute.xlu0 %3600
  %3602 = vrot.lane.b32.xlu0 %v3279, 32
  %v3603 = vpop.permute.xlu0 %3602
  %3604 = vrot.lane.b32.xlu0 %v3280, 32
  %v3605 = vpop.permute.xlu0 %3604
  %3606 = vrot.lane.b32.xlu0 %v3293, 32
  %v3607 = vpop.permute.xlu0 %3606
  %3608 = vrot.lane.b32.xlu0 %v3294, 32
  %v3609 = vpop.permute.xlu0 %3608
  %3610 = vrot.lane.b32.xlu0 %v3307, 32
  %v3611 = vpop.permute.xlu0 %3610
  %3612 = vrot.lane.b32.xlu0 %v3308, 32
  %v3613 = vpop.permute.xlu0 %3612
  %3614 = vrot.lane.b32.xlu0 %v3321, 32
  %v3615 = vpop.permute.xlu0 %3614
  %3616 = vrot.lane.b32.xlu0 %v3322, 32
  %v3617 = vpop.permute.xlu0 %3616
  %3618 = vrot.lane.b32.xlu0 %v3335, 32
  %v3619 = vpop.permute.xlu0 %3618
  %3620 = vrot.lane.b32.xlu0 %v3336, 32
  %v3621 = vpop.permute.xlu0 %3620
  %3622 = vrot.lane.b32.xlu0 %v3349, 32
  %v3623 = vpop.permute.xlu0 %3622
  %3624 = vrot.lane.b32.xlu0 %v3350, 32
  %v3625 = vpop.permute.xlu0 %3624
  %3626 = vrot.lane.b32.xlu0 %v3363, 32
  %v3627 = vpop.permute.xlu0 %3626
  %3628 = vrot.lane.b32.xlu0 %v3364, 32
  %v3629 = vpop.permute.xlu0 %3628
  %3630 = vrot.lane.b32.xlu0 %v3377, 32
  %v3631 = vpop.permute.xlu0 %3630
  %3632 = vrot.lane.b32.xlu0 %v3378, 32
  %v3633 = vpop.permute.xlu0 %3632
  %3634 = vrot.lane.b32.xlu0 %v3391, 32
  %v3635 = vpop.permute.xlu0 %3634
  %3636 = vrot.lane.b32.xlu0 %v3392, 32
  %v3637 = vpop.permute.xlu0 %3636
  %3638 = vrot.lane.b32.xlu0 %v3405, 32
  %v3639 = vpop.permute.xlu0 %3638
  %3640 = vrot.lane.b32.xlu0 %v3406, 32
  %v3641 = vpop.permute.xlu0 %3640
  %3642 = vrot.lane.b32.xlu0 %v3419, 32
  %v3643 = vpop.permute.xlu0 %3642
  %3644 = vrot.lane.b32.xlu0 %v3420, 32
  %v3645 = vpop.permute.xlu0 %3644
  %3646 = vrot.lane.b32.xlu0 %v3433, 32
  %v3647 = vpop.permute.xlu0 %3646
  %3648 = vrot.lane.b32.xlu0 %v3434, 32
  %v3649 = vpop.permute.xlu0 %3648
  %3650 = vrot.lane.b32.xlu0 %v3447, 32
  %v3651 = vpop.permute.xlu0 %3650
  %3652 = vrot.lane.b32.xlu0 %v3448, 32
  %v3653 = vpop.permute.xlu0 %3652
  %3654 = vrot.lane.b32.xlu0 %v3461, 32
  %v3655 = vpop.permute.xlu0 %3654
  %3656 = vrot.lane.b32.xlu0 %v3462, 32
  %v3657 = vpop.permute.xlu0 %3656
  %3658 = vrot.lane.b32.xlu0 %v3475, 32
  %v3659 = vpop.permute.xlu0 %3658
  %3660 = vrot.lane.b32.xlu0 %v3476, 32
  %v3661 = vpop.permute.xlu0 %3660
  %3662 = vrot.lane.b32.xlu0 %v3489, 32
  %v3663 = vpop.permute.xlu0 %3662
  %3664 = vrot.lane.b32.xlu0 %v3490, 32
  %v3665 = vpop.permute.xlu0 %3664
  %3666 = vrot.lane.b32.xlu0 %v3503, 32
  %v3667 = vpop.permute.xlu0 %3666
  %3668 = vrot.lane.b32.xlu0 %v3504, 32
  %v3669 = vpop.permute.xlu0 %3668
  %3670 = vrot.lane.b32.xlu0 %v3517, 32
  %v3671 = vpop.permute.xlu0 %3670
  %3672 = vrot.lane.b32.xlu0 %v3518, 32
  %v3673 = vpop.permute.xlu0 %3672
  %3674 = vrot.lane.b32.xlu0 %v3531, 32
  %v3675 = vpop.permute.xlu0 %3674
  %3676 = vrot.lane.b32.xlu0 %v3532, 32
  %v3677 = vpop.permute.xlu0 %3676
  %v3678 = vrot.slane %v2958, 1
  %v3679 = vrot.slane %v2959, 1
  %v3680 = vsel %vm928, %v3678, %v3679
  %v3681 = vrot.slane %v2960, 1
  %v3682 = vrot.slane %v2961, 1
  %v3683 = vsel %vm928, %v3681, %v3682
  %v3684 = vrot.slane %v2962, 1
  %v3685 = vrot.slane %v2963, 1
  %v3686 = vsel %vm928, %v3684, %v3685
  %v3687 = vrot.slane %v2964, 1
  %v3688 = vrot.slane %v2965, 1
  %v3689 = vsel %vm928, %v3687, %v3688
  %v3690 = vrot.slane %v2966, 1
  %v3691 = vrot.slane %v2967, 1
  %v3692 = vsel %vm928, %v3690, %v3691
  %v3693 = vrot.slane %v2968, 1
  %v3694 = vrot.slane %v2969, 1
  %v3695 = vsel %vm928, %v3693, %v3694
  %v3696 = vrot.slane %v2970, 1
  %v3697 = vrot.slane %v2971, 1
  %v3698 = vsel %vm928, %v3696, %v3697
  %v3699 = vrot.slane %v2972, 1
  %v3700 = vrot.slane %v2973, 1
  %v3701 = vsel %vm928, %v3699, %v3700
  %v3702 = vrot.slane %v2974, 1
  %v3703 = vrot.slane %v2975, 1
  %v3704 = vsel %vm928, %v3702, %v3703
  %v3705 = vrot.slane %v2976, 1
  %v3706 = vrot.slane %v2977, 1
  %v3707 = vsel %vm928, %v3705, %v3706
  %v3708 = vrot.slane %v2978, 1
  %v3709 = vrot.slane %v2979, 1
  %v3710 = vsel %vm928, %v3708, %v3709
  %v3711 = vrot.slane %v2980, 1
  %v3712 = vrot.slane %v2981, 1
  %v3713 = vsel %vm928, %v3711, %v3712
  %v3714 = vrot.slane %v2982, 1
  %v3715 = vrot.slane %v2983, 1
  %v3716 = vsel %vm928, %v3714, %v3715
  %v3717 = vrot.slane %v2984, 1
  %v3718 = vrot.slane %v2985, 1
  %v3719 = vsel %vm928, %v3717, %v3718
  %v3720 = vrot.slane %v2986, 1
  %v3721 = vrot.slane %v2987, 1
  %v3722 = vsel %vm928, %v3720, %v3721
  %v3723 = vrot.slane %v2988, 1
  %v3724 = vrot.slane %v2989, 1
  %v3725 = vsel %vm928, %v3723, %v3724
  %v3726 = vrot.slane %v2990, 1
  %v3727 = vrot.slane %v2991, 1
  %v3728 = vsel %vm928, %v3726, %v3727
  %v3729 = vrot.slane %v2992, 1
  %v3730 = vrot.slane %v2993, 1
  %v3731 = vsel %vm928, %v3729, %v3730
  %v3732 = vrot.slane %v2994, 1
  %v3733 = vrot.slane %v2995, 1
  %v3734 = vsel %vm928, %v3732, %v3733
  %v3735 = vrot.slane %v2996, 1
  %v3736 = vrot.slane %v2997, 1
  %v3737 = vsel %vm928, %v3735, %v3736
  %v3738 = vrot.slane %v2998, 1
  %v3739 = vrot.slane %v2999, 1
  %v3740 = vsel %vm928, %v3738, %v3739
  %v3741 = vrot.slane %v3000, 1
  %v3742 = vrot.slane %v3001, 1
  %v3743 = vsel %vm928, %v3741, %v3742
  %v3744 = vrot.slane %v3002, 1
  %v3745 = vrot.slane %v3003, 1
  %v3746 = vsel %vm928, %v3744, %v3745
  %v3747 = vrot.slane %v3004, 1
  %v3748 = vrot.slane %v3005, 1
  %v3749 = vsel %vm928, %v3747, %v3748
  %v3750 = vrot.slane %v3006, 1
  %v3751 = vrot.slane %v3007, 1
  %v3752 = vsel %vm928, %v3750, %v3751
  %v3753 = vrot.slane %v3008, 1
  %v3754 = vrot.slane %v3009, 1
  %v3755 = vsel %vm928, %v3753, %v3754
  %v3756 = vrot.slane %v3010, 1
  %v3757 = vrot.slane %v3011, 1
  %v3758 = vsel %vm928, %v3756, %v3757
  %v3759 = vrot.slane %v3012, 1
  %v3760 = vrot.slane %v3013, 1
  %v3761 = vsel %vm928, %v3759, %v3760
  %v3762 = vrot.slane %v3014, 1
  %v3763 = vrot.slane %v3015, 1
  %v3764 = vsel %vm928, %v3762, %v3763
  %v3765 = vrot.slane %v3016, 1
  %v3766 = vrot.slane %v3017, 1
  %v3767 = vsel %vm928, %v3765, %v3766
  %v3768 = vrot.slane %v3018, 1
  %v3769 = vrot.slane %v3019, 1
  %v3770 = vsel %vm928, %v3768, %v3769
  %v3771 = vrot.slane %v3020, 1
  %v3772 = vrot.slane %v3021, 1
  %v3773 = vsel %vm928, %v3771, %v3772
  %v3774 = vrot.slane %v3022, 1
  %v3775 = vrot.slane %v3023, 1
  %v3776 = vsel %vm928, %v3774, %v3775
  %v3777 = vrot.slane %v3024, 1
  %v3778 = vrot.slane %v3025, 1
  %v3779 = vsel %vm928, %v3777, %v3778
  %v3780 = vrot.slane %v3026, 1
  %v3781 = vrot.slane %v3027, 1
  %v3782 = vsel %vm928, %v3780, %v3781
  %v3783 = vrot.slane %v3028, 1
  %v3784 = vrot.slane %v3029, 1
  %v3785 = vsel %vm928, %v3783, %v3784
  %3786 = vrot.lane.b32.xlu0 %v3680, 64
  %v3787 = vpop.permute.xlu0 %3786
  %3788 = vrot.lane.b32.xlu0 %v3679, 64
  %v3789 = vpop.permute.xlu0 %3788
  %3790 = vrot.lane.b32.xlu0 %v3683, 64
  %v3791 = vpop.permute.xlu0 %3790
  %3792 = vrot.lane.b32.xlu0 %v3682, 64
  %v3793 = vpop.permute.xlu0 %3792
  %3794 = vrot.lane.b32.xlu0 %v3686, 64
  %v3795 = vpop.permute.xlu0 %3794
  %3796 = vrot.lane.b32.xlu0 %v3685, 64
  %v3797 = vpop.permute.xlu0 %3796
  %3798 = vrot.lane.b32.xlu0 %v3689, 64
  %v3799 = vpop.permute.xlu0 %3798
  %3800 = vrot.lane.b32.xlu0 %v3688, 64
  %v3801 = vpop.permute.xlu0 %3800
  %3802 = vrot.lane.b32.xlu0 %v3692, 64
  %v3803 = vpop.permute.xlu0 %3802
  %3804 = vrot.lane.b32.xlu0 %v3691, 64
  %v3805 = vpop.permute.xlu0 %3804
  %3806 = vrot.lane.b32.xlu0 %v3695, 64
  %v3807 = vpop.permute.xlu0 %3806
  %3808 = vrot.lane.b32.xlu0 %v3694, 64
  %v3809 = vpop.permute.xlu0 %3808
  %3810 = vrot.lane.b32.xlu0 %v3698, 64
  %v3811 = vpop.permute.xlu0 %3810
  %3812 = vrot.lane.b32.xlu0 %v3697, 64
  %v3813 = vpop.permute.xlu0 %3812
  %3814 = vrot.lane.b32.xlu0 %v3701, 64
  %v3815 = vpop.permute.xlu0 %3814
  %3816 = vrot.lane.b32.xlu0 %v3700, 64
  %v3817 = vpop.permute.xlu0 %3816
  %3818 = vrot.lane.b32.xlu0 %v3704, 64
  %v3819 = vpop.permute.xlu0 %3818
  %3820 = vrot.lane.b32.xlu0 %v3703, 64
  %v3821 = vpop.permute.xlu0 %3820
  %3822 = vrot.lane.b32.xlu0 %v3707, 64
  %v3823 = vpop.permute.xlu0 %3822
  %3824 = vrot.lane.b32.xlu0 %v3706, 64
  %v3825 = vpop.permute.xlu0 %3824
  %3826 = vrot.lane.b32.xlu0 %v3710, 64
  %v3827 = vpop.permute.xlu0 %3826
  %3828 = vrot.lane.b32.xlu0 %v3709, 64
  %v3829 = vpop.permute.xlu0 %3828
  %3830 = vrot.lane.b32.xlu0 %v3713, 64
  %v3831 = vpop.permute.xlu0 %3830
  %3832 = vrot.lane.b32.xlu0 %v3712, 64
  %v3833 = vpop.permute.xlu0 %3832
  %3834 = vrot.lane.b32.xlu0 %v3716, 64
  %v3835 = vpop.permute.xlu0 %3834
  %3836 = vrot.lane.b32.xlu0 %v3715, 64
  %v3837 = vpop.permute.xlu0 %3836
  %3838 = vrot.lane.b32.xlu0 %v3719, 64
  %v3839 = vpop.permute.xlu0 %3838
  %3840 = vrot.lane.b32.xlu0 %v3718, 64
  %v3841 = vpop.permute.xlu0 %3840
  %3842 = vrot.lane.b32.xlu0 %v3722, 64
  %v3843 = vpop.permute.xlu0 %3842
  %3844 = vrot.lane.b32.xlu0 %v3721, 64
  %v3845 = vpop.permute.xlu0 %3844
  %3846 = vrot.lane.b32.xlu0 %v3725, 64
  %v3847 = vpop.permute.xlu0 %3846
  %3848 = vrot.lane.b32.xlu0 %v3724, 64
  %v3849 = vpop.permute.xlu0 %3848
  %3850 = vrot.lane.b32.xlu0 %v3728, 64
  %v3851 = vpop.permute.xlu0 %3850
  %3852 = vrot.lane.b32.xlu0 %v3727, 64
  %v3853 = vpop.permute.xlu0 %3852
  %3854 = vrot.lane.b32.xlu0 %v3731, 64
  %v3855 = vpop.permute.xlu0 %3854
  %3856 = vrot.lane.b32.xlu0 %v3730, 64
  %v3857 = vpop.permute.xlu0 %3856
  %3858 = vrot.lane.b32.xlu0 %v3734, 64
  %v3859 = vpop.permute.xlu0 %3858
  %3860 = vrot.lane.b32.xlu0 %v3733, 64
  %v3861 = vpop.permute.xlu0 %3860
  %3862 = vrot.lane.b32.xlu0 %v3737, 64
  %v3863 = vpop.permute.xlu0 %3862
  %3864 = vrot.lane.b32.xlu0 %v3736, 64
  %v3865 = vpop.permute.xlu0 %3864
  %3866 = vrot.lane.b32.xlu0 %v3740, 64
  %v3867 = vpop.permute.xlu0 %3866
  %3868 = vrot.lane.b32.xlu0 %v3739, 64
  %v3869 = vpop.permute.xlu0 %3868
  %3870 = vrot.lane.b32.xlu0 %v3743, 64
  %v3871 = vpop.permute.xlu0 %3870
  %3872 = vrot.lane.b32.xlu0 %v3742, 64
  %v3873 = vpop.permute.xlu0 %3872
  %3874 = vrot.lane.b32.xlu0 %v3746, 64
  %v3875 = vpop.permute.xlu0 %3874
  %3876 = vrot.lane.b32.xlu0 %v3745, 64
  %v3877 = vpop.permute.xlu0 %3876
  %3878 = vrot.lane.b32.xlu0 %v3749, 64
  %v3879 = vpop.permute.xlu0 %3878
  %3880 = vrot.lane.b32.xlu0 %v3748, 64
  %v3881 = vpop.permute.xlu0 %3880
  %3882 = vrot.lane.b32.xlu0 %v3752, 64
  %v3883 = vpop.permute.xlu0 %3882
  %3884 = vrot.lane.b32.xlu0 %v3751, 64
  %v3885 = vpop.permute.xlu0 %3884
  %3886 = vrot.lane.b32.xlu0 %v3755, 64
  %v3887 = vpop.permute.xlu0 %3886
  %3888 = vrot.lane.b32.xlu0 %v3754, 64
  %v3889 = vpop.permute.xlu0 %3888
  %3890 = vrot.lane.b32.xlu0 %v3758, 64
  %v3891 = vpop.permute.xlu0 %3890
  %3892 = vrot.lane.b32.xlu0 %v3757, 64
  %v3893 = vpop.permute.xlu0 %3892
  %3894 = vrot.lane.b32.xlu0 %v3761, 64
  %v3895 = vpop.permute.xlu0 %3894
  %3896 = vrot.lane.b32.xlu0 %v3760, 64
  %v3897 = vpop.permute.xlu0 %3896
  %3898 = vrot.lane.b32.xlu0 %v3764, 64
  %v3899 = vpop.permute.xlu0 %3898
  %3900 = vrot.lane.b32.xlu0 %v3763, 64
  %v3901 = vpop.permute.xlu0 %3900
  %3902 = vrot.lane.b32.xlu0 %v3767, 64
  %v3903 = vpop.permute.xlu0 %3902
  %3904 = vrot.lane.b32.xlu0 %v3766, 64
  %v3905 = vpop.permute.xlu0 %3904
  %3906 = vrot.lane.b32.xlu0 %v3770, 64
  %v3907 = vpop.permute.xlu0 %3906
  %3908 = vrot.lane.b32.xlu0 %v3769, 64
  %v3909 = vpop.permute.xlu0 %3908
  %3910 = vrot.lane.b32.xlu0 %v3773, 64
  %v3911 = vpop.permute.xlu0 %3910
  %3912 = vrot.lane.b32.xlu0 %v3772, 64
  %v3913 = vpop.permute.xlu0 %3912
  %3914 = vrot.lane.b32.xlu0 %v3776, 64
  %v3915 = vpop.permute.xlu0 %3914
  %3916 = vrot.lane.b32.xlu0 %v3775, 64
  %v3917 = vpop.permute.xlu0 %3916
  %3918 = vrot.lane.b32.xlu0 %v3779, 64
  %v3919 = vpop.permute.xlu0 %3918
  %3920 = vrot.lane.b32.xlu0 %v3778, 64
  %v3921 = vpop.permute.xlu0 %3920
  %3922 = vrot.lane.b32.xlu0 %v3782, 64
  %v3923 = vpop.permute.xlu0 %3922
  %3924 = vrot.lane.b32.xlu0 %v3781, 64
  %v3925 = vpop.permute.xlu0 %3924
  %3926 = vrot.lane.b32.xlu0 %v3785, 64
  %v3927 = vpop.permute.xlu0 %3926
  %3928 = vrot.lane.b32.xlu0 %v3784, 64
  %v3929 = vpop.permute.xlu0 %3928
  %vm3930 = vcmask 261120
  %v3932 = vsel %vm3930, %v2958, %v3535
  %v3934 = vsel %vm3930, %v2959, %v3537
  %v3936 = vsel %vm3930, %v2960, %v3539
  %v3938 = vsel %vm3930, %v2961, %v3541
  %v3940 = vsel %vm3930, %v2962, %v3543
  %v3942 = vsel %vm3930, %v2963, %v3545
  %v3944 = vsel %vm3930, %v2964, %v3547
  %v3946 = vsel %vm3930, %v2965, %v3549
  %v3948 = vsel %vm3930, %v2966, %v3551
  %v3950 = vsel %vm3930, %v2967, %v3553
  %v3952 = vsel %vm3930, %v2968, %v3555
  %v3954 = vsel %vm3930, %v2969, %v3557
  %v3956 = vsel %vm3930, %v2970, %v3559
  %v3958 = vsel %vm3930, %v2971, %v3561
  %v3960 = vsel %vm3930, %v2972, %v3563
  %v3962 = vsel %vm3930, %v2973, %v3565
  %v3964 = vsel %vm3930, %v2974, %v3567
  %v3966 = vsel %vm3930, %v2975, %v3569
  %v3968 = vsel %vm3930, %v2976, %v3571
  %v3970 = vsel %vm3930, %v2977, %v3573
  %v3972 = vsel %vm3930, %v2978, %v3575
  %v3974 = vsel %vm3930, %v2979, %v3577
  %v3976 = vsel %vm3930, %v2980, %v3579
  %v3978 = vsel %vm3930, %v2981, %v3581
  %v3980 = vsel %vm3930, %v2982, %v3583
  %v3982 = vsel %vm3930, %v2983, %v3585
  %v3984 = vsel %vm3930, %v2984, %v3587
  %v3986 = vsel %vm3930, %v2985, %v3589
  %v3988 = vsel %vm3930, %v2986, %v3591
  %v3990 = vsel %vm3930, %v2987, %v3593
  %v3992 = vsel %vm3930, %v2988, %v3595
  %v3994 = vsel %vm3930, %v2989, %v3597
  %v3996 = vsel %vm3930, %v2990, %v3599
  %v3998 = vsel %vm3930, %v2991, %v3601
  %v4000 = vsel %vm3930, %v2992, %v3603
  %v4002 = vsel %vm3930, %v2993, %v3605
  %v4004 = vsel %vm3930, %v2994, %v3607
  %v4006 = vsel %vm3930, %v2995, %v3609
  %v4008 = vsel %vm3930, %v2996, %v3611
  %v4010 = vsel %vm3930, %v2997, %v3613
  %v4012 = vsel %vm3930, %v2998, %v3615
  %v4014 = vsel %vm3930, %v2999, %v3617
  %v4016 = vsel %vm3930, %v3000, %v3619
  %v4018 = vsel %vm3930, %v3001, %v3621
  %v4020 = vsel %vm3930, %v3002, %v3623
  %v4022 = vsel %vm3930, %v3003, %v3625
  %v4024 = vsel %vm3930, %v3004, %v3627
  %v4026 = vsel %vm3930, %v3005, %v3629
  %v4028 = vsel %vm3930, %v3006, %v3631
  %v4030 = vsel %vm3930, %v3007, %v3633
  %v4032 = vsel %vm3930, %v3008, %v3635
  %v4034 = vsel %vm3930, %v3009, %v3637
  %v4036 = vsel %vm3930, %v3010, %v3639
  %v4038 = vsel %vm3930, %v3011, %v3641
  %v4040 = vsel %vm3930, %v3012, %v3643
  %v4042 = vsel %vm3930, %v3013, %v3645
  %v4044 = vsel %vm3930, %v3014, %v3647
  %v4046 = vsel %vm3930, %v3015, %v3649
  %v4048 = vsel %vm3930, %v3016, %v3651
  %v4050 = vsel %vm3930, %v3017, %v3653
  %v4052 = vsel %vm3930, %v3018, %v3655
  %v4054 = vsel %vm3930, %v3019, %v3657
  %v4056 = vsel %vm3930, %v3020, %v3659
  %v4058 = vsel %vm3930, %v3021, %v3661
  %v4060 = vsel %vm3930, %v3022, %v3663
  %v4062 = vsel %vm3930, %v3023, %v3665
  %v4064 = vsel %vm3930, %v3024, %v3667
  %v4066 = vsel %vm3930, %v3025, %v3669
  %v4068 = vsel %vm3930, %v3026, %v3671
  %v4070 = vsel %vm3930, %v3027, %v3673
  %v4072 = vsel %vm3930, %v3028, %v3675
  %v4074 = vsel %vm3930, %v3029, %v3677
  %vm4075 = vcmask 523264
  %v4077 = vsel %vm4075, %v3932, %v3787
  %v4079 = vsel %vm4075, %v3934, %v3789
  %v4081 = vsel %vm4075, %v3936, %v3791
  %v4083 = vsel %vm4075, %v3938, %v3793
  %v4085 = vsel %vm4075, %v3940, %v3795
  %v4087 = vsel %vm4075, %v3942, %v3797
  %v4089 = vsel %vm4075, %v3944, %v3799
  %v4091 = vsel %vm4075, %v3946, %v3801
  %v4093 = vsel %vm4075, %v3948, %v3803
  %v4095 = vsel %vm4075, %v3950, %v3805
  %v4097 = vsel %vm4075, %v3952, %v3807
  %v4099 = vsel %vm4075, %v3954, %v3809
  %v4101 = vsel %vm4075, %v3956, %v3811
  %v4103 = vsel %vm4075, %v3958, %v3813
  %v4105 = vsel %vm4075, %v3960, %v3815
  %v4107 = vsel %vm4075, %v3962, %v3817
  %v4109 = vsel %vm4075, %v3964, %v3819
  %v4111 = vsel %vm4075, %v3966, %v3821
  %v4113 = vsel %vm4075, %v3968, %v3823
  %v4115 = vsel %vm4075, %v3970, %v3825
  %v4117 = vsel %vm4075, %v3972, %v3827
  %v4119 = vsel %vm4075, %v3974, %v3829
  %v4121 = vsel %vm4075, %v3976, %v3831
  %v4123 = vsel %vm4075, %v3978, %v3833
  %v4125 = vsel %vm4075, %v3980, %v3835
  %v4127 = vsel %vm4075, %v3982, %v3837
  %v4129 = vsel %vm4075, %v3984, %v3839
  %v4131 = vsel %vm4075, %v3986, %v3841
  %v4133 = vsel %vm4075, %v3988, %v3843
  %v4135 = vsel %vm4075, %v3990, %v3845
  %v4137 = vsel %vm4075, %v3992, %v3847
  %v4139 = vsel %vm4075, %v3994, %v3849
  %v4141 = vsel %vm4075, %v3996, %v3851
  %v4143 = vsel %vm4075, %v3998, %v3853
  %v4145 = vsel %vm4075, %v4000, %v3855
  %v4147 = vsel %vm4075, %v4002, %v3857
  %v4149 = vsel %vm4075, %v4004, %v3859
  %v4151 = vsel %vm4075, %v4006, %v3861
  %v4153 = vsel %vm4075, %v4008, %v3863
  %v4155 = vsel %vm4075, %v4010, %v3865
  %v4157 = vsel %vm4075, %v4012, %v3867
  %v4159 = vsel %vm4075, %v4014, %v3869
  %v4161 = vsel %vm4075, %v4016, %v3871
  %v4163 = vsel %vm4075, %v4018, %v3873
  %v4165 = vsel %vm4075, %v4020, %v3875
  %v4167 = vsel %vm4075, %v4022, %v3877
  %v4169 = vsel %vm4075, %v4024, %v3879
  %v4171 = vsel %vm4075, %v4026, %v3881
  %v4173 = vsel %vm4075, %v4028, %v3883
  %v4175 = vsel %vm4075, %v4030, %v3885
  %v4177 = vsel %vm4075, %v4032, %v3887
  %v4179 = vsel %vm4075, %v4034, %v3889
  %v4181 = vsel %vm4075, %v4036, %v3891
  %v4183 = vsel %vm4075, %v4038, %v3893
  %v4185 = vsel %vm4075, %v4040, %v3895
  %v4187 = vsel %vm4075, %v4042, %v3897
  %v4189 = vsel %vm4075, %v4044, %v3899
  %v4191 = vsel %vm4075, %v4046, %v3901
  %v4193 = vsel %vm4075, %v4048, %v3903
  %v4195 = vsel %vm4075, %v4050, %v3905
  %v4197 = vsel %vm4075, %v4052, %v3907
  %v4199 = vsel %vm4075, %v4054, %v3909
  %v4201 = vsel %vm4075, %v4056, %v3911
  %v4203 = vsel %vm4075, %v4058, %v3913
  %v4205 = vsel %vm4075, %v4060, %v3915
  %v4207 = vsel %vm4075, %v4062, %v3917
  %v4209 = vsel %vm4075, %v4064, %v3919
  %v4211 = vsel %vm4075, %v4066, %v3921
  %v4213 = vsel %vm4075, %v4068, %v3923
  %v4215 = vsel %vm4075, %v4070, %v3925
  %v4217 = vsel %vm4075, %v4072, %v3927
  %v4219 = vsel %vm4075, %v4074, %v3929
  %v4220 = vshrl.u32 %v4077, 16
  %v4222 = vshll.u32 %v4077, 16
  %v4224 = vrot.slane %v4222, 1
  %v4225 = vor.u32 %v4220, %v4224
  %v4226 = vshll.u32 %v4079, 16
  %v4228 = vrot.slane %v4226, 1
  %v4229 = vsel %vm423, %v4225, %v4228
  %v4230 = vshrl.u32 %v4081, 16
  %v4232 = vshll.u32 %v4081, 16
  %v4234 = vrot.slane %v4232, 1
  %v4235 = vor.u32 %v4230, %v4234
  %v4236 = vshll.u32 %v4083, 16
  %v4238 = vrot.slane %v4236, 1
  %v4239 = vsel %vm423, %v4235, %v4238
  %v4240 = vshrl.u32 %v4085, 16
  %v4242 = vshll.u32 %v4085, 16
  %v4244 = vrot.slane %v4242, 1
  %v4245 = vor.u32 %v4240, %v4244
  %v4246 = vshll.u32 %v4087, 16
  %v4248 = vrot.slane %v4246, 1
  %v4249 = vsel %vm423, %v4245, %v4248
  %v4250 = vshrl.u32 %v4089, 16
  %v4252 = vshll.u32 %v4089, 16
  %v4254 = vrot.slane %v4252, 1
  %v4255 = vor.u32 %v4250, %v4254
  %v4256 = vshll.u32 %v4091, 16
  %v4258 = vrot.slane %v4256, 1
  %v4259 = vsel %vm423, %v4255, %v4258
  %v4260 = vshrl.u32 %v4093, 16
  %v4262 = vshll.u32 %v4093, 16
  %v4264 = vrot.slane %v4262, 1
  %v4265 = vor.u32 %v4260, %v4264
  %v4266 = vshll.u32 %v4095, 16
  %v4268 = vrot.slane %v4266, 1
  %v4269 = vsel %vm423, %v4265, %v4268
  %v4270 = vshrl.u32 %v4097, 16
  %v4272 = vshll.u32 %v4097, 16
  %v4274 = vrot.slane %v4272, 1
  %v4275 = vor.u32 %v4270, %v4274
  %v4276 = vshll.u32 %v4099, 16
  %v4278 = vrot.slane %v4276, 1
  %v4279 = vsel %vm423, %v4275, %v4278
  %v4280 = vshrl.u32 %v4101, 16
  %v4282 = vshll.u32 %v4101, 16
  %v4284 = vrot.slane %v4282, 1
  %v4285 = vor.u32 %v4280, %v4284
  %v4286 = vshll.u32 %v4103, 16
  %v4288 = vrot.slane %v4286, 1
  %v4289 = vsel %vm423, %v4285, %v4288
  %v4290 = vshrl.u32 %v4105, 16
  %v4292 = vshll.u32 %v4105, 16
  %v4294 = vrot.slane %v4292, 1
  %v4295 = vor.u32 %v4290, %v4294
  %v4296 = vshll.u32 %v4107, 16
  %v4298 = vrot.slane %v4296, 1
  %v4299 = vsel %vm423, %v4295, %v4298
  %v4300 = vshrl.u32 %v4109, 16
  %v4302 = vshll.u32 %v4109, 16
  %v4304 = vrot.slane %v4302, 1
  %v4305 = vor.u32 %v4300, %v4304
  %v4306 = vshll.u32 %v4111, 16
  %v4308 = vrot.slane %v4306, 1
  %v4309 = vsel %vm423, %v4305, %v4308
  %v4310 = vshrl.u32 %v4113, 16
  %v4312 = vshll.u32 %v4113, 16
  %v4314 = vrot.slane %v4312, 1
  %v4315 = vor.u32 %v4310, %v4314
  %v4316 = vshll.u32 %v4115, 16
  %v4318 = vrot.slane %v4316, 1
  %v4319 = vsel %vm423, %v4315, %v4318
  %v4320 = vshrl.u32 %v4117, 16
  %v4322 = vshll.u32 %v4117, 16
  %v4324 = vrot.slane %v4322, 1
  %v4325 = vor.u32 %v4320, %v4324
  %v4326 = vshll.u32 %v4119, 16
  %v4328 = vrot.slane %v4326, 1
  %v4329 = vsel %vm423, %v4325, %v4328
  %v4330 = vshrl.u32 %v4121, 16
  %v4332 = vshll.u32 %v4121, 16
  %v4334 = vrot.slane %v4332, 1
  %v4335 = vor.u32 %v4330, %v4334
  %v4336 = vshll.u32 %v4123, 16
  %v4338 = vrot.slane %v4336, 1
  %v4339 = vsel %vm423, %v4335, %v4338
  %v4340 = vshrl.u32 %v4125, 16
  %v4342 = vshll.u32 %v4125, 16
  %v4344 = vrot.slane %v4342, 1
  %v4345 = vor.u32 %v4340, %v4344
  %v4346 = vshll.u32 %v4127, 16
  %v4348 = vrot.slane %v4346, 1
  %v4349 = vsel %vm423, %v4345, %v4348
  %v4350 = vshrl.u32 %v4129, 16
  %v4352 = vshll.u32 %v4129, 16
  %v4354 = vrot.slane %v4352, 1
  %v4355 = vor.u32 %v4350, %v4354
  %v4356 = vshll.u32 %v4131, 16
  %v4358 = vrot.slane %v4356, 1
  %v4359 = vsel %vm423, %v4355, %v4358
  %v4360 = vshrl.u32 %v4133, 16
  %v4362 = vshll.u32 %v4133, 16
  %v4364 = vrot.slane %v4362, 1
  %v4365 = vor.u32 %v4360, %v4364
  %v4366 = vshll.u32 %v4135, 16
  %v4368 = vrot.slane %v4366, 1
  %v4369 = vsel %vm423, %v4365, %v4368
  %v4370 = vshrl.u32 %v4137, 16
  %v4372 = vshll.u32 %v4137, 16
  %v4374 = vrot.slane %v4372, 1
  %v4375 = vor.u32 %v4370, %v4374
  %v4376 = vshll.u32 %v4139, 16
  %v4378 = vrot.slane %v4376, 1
  %v4379 = vsel %vm423, %v4375, %v4378
  %v4380 = vshrl.u32 %v4149, 16
  %v4382 = vshll.u32 %v4149, 16
  %v4384 = vrot.slane %v4382, 1
  %v4385 = vor.u32 %v4380, %v4384
  %v4386 = vshll.u32 %v4151, 16
  %v4388 = vrot.slane %v4386, 1
  %v4389 = vsel %vm423, %v4385, %v4388
  %v4390 = vshrl.u32 %v4153, 16
  %v4392 = vshll.u32 %v4153, 16
  %v4394 = vrot.slane %v4392, 1
  %v4395 = vor.u32 %v4390, %v4394
  %v4396 = vshll.u32 %v4155, 16
  %v4398 = vrot.slane %v4396, 1
  %v4399 = vsel %vm423, %v4395, %v4398
  %v4400 = vshrl.u32 %v4157, 16
  %v4402 = vshll.u32 %v4157, 16
  %v4404 = vrot.slane %v4402, 1
  %v4405 = vor.u32 %v4400, %v4404
  %v4406 = vshll.u32 %v4159, 16
  %v4408 = vrot.slane %v4406, 1
  %v4409 = vsel %vm423, %v4405, %v4408
  %v4410 = vshrl.u32 %v4161, 16
  %v4412 = vshll.u32 %v4161, 16
  %v4414 = vrot.slane %v4412, 1
  %v4415 = vor.u32 %v4410, %v4414
  %v4416 = vshll.u32 %v4163, 16
  %v4418 = vrot.slane %v4416, 1
  %v4419 = vsel %vm423, %v4415, %v4418
  %v4420 = vshrl.u32 %v4165, 16
  %v4422 = vshll.u32 %v4165, 16
  %v4424 = vrot.slane %v4422, 1
  %v4425 = vor.u32 %v4420, %v4424
  %v4426 = vshll.u32 %v4167, 16
  %v4428 = vrot.slane %v4426, 1
  %v4429 = vsel %vm423, %v4425, %v4428
  %v4430 = vshrl.u32 %v4169, 16
  %v4432 = vshll.u32 %v4169, 16
  %v4434 = vrot.slane %v4432, 1
  %v4435 = vor.u32 %v4430, %v4434
  %v4436 = vshll.u32 %v4171, 16
  %v4438 = vrot.slane %v4436, 1
  %v4439 = vsel %vm423, %v4435, %v4438
  %v4440 = vshrl.u32 %v4173, 16
  %v4442 = vshll.u32 %v4173, 16
  %v4444 = vrot.slane %v4442, 1
  %v4445 = vor.u32 %v4440, %v4444
  %v4446 = vshll.u32 %v4175, 16
  %v4448 = vrot.slane %v4446, 1
  %v4449 = vsel %vm423, %v4445, %v4448
  %v4450 = vshrl.u32 %v4177, 16
  %v4452 = vshll.u32 %v4177, 16
  %v4454 = vrot.slane %v4452, 1
  %v4455 = vor.u32 %v4450, %v4454
  %v4456 = vshll.u32 %v4179, 16
  %v4458 = vrot.slane %v4456, 1
  %v4459 = vsel %vm423, %v4455, %v4458
  %v4460 = vshrl.u32 %v4181, 16
  %v4462 = vshll.u32 %v4181, 16
  %v4464 = vrot.slane %v4462, 1
  %v4465 = vor.u32 %v4460, %v4464
  %v4466 = vshll.u32 %v4183, 16
  %v4468 = vrot.slane %v4466, 1
  %v4469 = vsel %vm423, %v4465, %v4468
  %v4470 = vshrl.u32 %v4185, 16
  %v4472 = vshll.u32 %v4185, 16
  %v4474 = vrot.slane %v4472, 1
  %v4475 = vor.u32 %v4470, %v4474
  %v4476 = vshll.u32 %v4187, 16
  %v4478 = vrot.slane %v4476, 1
  %v4479 = vsel %vm423, %v4475, %v4478
  %v4480 = vshrl.u32 %v4189, 16
  %v4482 = vshll.u32 %v4189, 16
  %v4484 = vrot.slane %v4482, 1
  %v4485 = vor.u32 %v4480, %v4484
  %v4486 = vshll.u32 %v4191, 16
  %v4488 = vrot.slane %v4486, 1
  %v4489 = vsel %vm423, %v4485, %v4488
  %v4490 = vshrl.u32 %v4193, 16
  %v4492 = vshll.u32 %v4193, 16
  %v4494 = vrot.slane %v4492, 1
  %v4495 = vor.u32 %v4490, %v4494
  %v4496 = vshll.u32 %v4195, 16
  %v4498 = vrot.slane %v4496, 1
  %v4499 = vsel %vm423, %v4495, %v4498
  %v4500 = vshrl.u32 %v4197, 16
  %v4502 = vshll.u32 %v4197, 16
  %v4504 = vrot.slane %v4502, 1
  %v4505 = vor.u32 %v4500, %v4504
  %v4506 = vshll.u32 %v4199, 16
  %v4508 = vrot.slane %v4506, 1
  %v4509 = vsel %vm423, %v4505, %v4508
  %v4510 = vshrl.u32 %v4201, 16
  %v4512 = vshll.u32 %v4201, 16
  %v4514 = vrot.slane %v4512, 1
  %v4515 = vor.u32 %v4510, %v4514
  %v4516 = vshll.u32 %v4203, 16
  %v4518 = vrot.slane %v4516, 1
  %v4519 = vsel %vm423, %v4515, %v4518
  %v4520 = vshrl.u32 %v4205, 16
  %v4522 = vshll.u32 %v4205, 16
  %v4524 = vrot.slane %v4522, 1
  %v4525 = vor.u32 %v4520, %v4524
  %v4526 = vshll.u32 %v4207, 16
  %v4528 = vrot.slane %v4526, 1
  %v4529 = vsel %vm423, %v4525, %v4528
  %v4530 = vshrl.u32 %v4209, 16
  %v4532 = vshll.u32 %v4209, 16
  %v4534 = vrot.slane %v4532, 1
  %v4535 = vor.u32 %v4530, %v4534
  %v4536 = vshll.u32 %v4211, 16
  %v4538 = vrot.slane %v4536, 1
  %v4539 = vsel %vm423, %v4535, %v4538
  %v4540 = vld [vmem:[%s3] sm:$0xf]
  %v4541 = vld [vmem:[%s3 + $0x4] sm:$0xf]
  %v4542 = vld [vmem:[%s3 + $0x8] sm:$0xf]
  %v4543 = vld [vmem:[%s3 + $0xc] sm:$0xf]
  %v4544 = vld [vmem:[%s3 + $0x10] sm:$0xf]
  %v4545 = vld [vmem:[%s3 + $0x14] sm:$0xf]
  %v4546 = vld [vmem:[%s3 + $0x18] sm:$0xf]
  %v4547 = vld [vmem:[%s3 + $0x1c] sm:$0xf]
  %v4548 = vld [vmem:[%s3 + $0x20] sm:$0xf]
  %v4549 = vld [vmem:[%s3 + $0x24] sm:$0xf]
  %v4550 = vld [vmem:[%s3 + $0x28] sm:$0xf]
  %v4551 = vld [vmem:[%s3 + $0x2c] sm:$0xf]
  %v4552 = vshrl.u32 %v4141, 16
  %v4554 = vshll.u32 %v4141, 16
  %v4556 = vrot.slane %v4554, 1
  %v4557 = vor.u32 %v4552, %v4556
  %v4558 = vshll.u32 %v4143, 16
  %v4560 = vrot.slane %v4558, 1
  %v4561 = vsel %vm423, %v4557, %v4560
  %v4562 = vshrl.u32 %v4213, 16
  %v4564 = vshll.u32 %v4213, 16
  %v4566 = vrot.slane %v4564, 1
  %v4567 = vor.u32 %v4562, %v4566
  %v4568 = vshll.u32 %v4215, 16
  %v4570 = vrot.slane %v4568, 1
  %v4571 = vsel %vm423, %v4567, %v4570
  %s4572 = scalar_lea.vmem %s3, 48
  %v4573 = vld [vmem:[%s4572] sm:$0xf]
  %v4574 = vld [vmem:[%s4572 + $0x4] sm:$0xf]
  %v4575 = vld [vmem:[%s4572 + $0x8] sm:$0xf]
  %v4576 = vld [vmem:[%s4572 + $0xc] sm:$0xf]
  %v4577 = vld [vmem:[%s4572 + $0x10] sm:$0xf]
  %v4578 = vld [vmem:[%s4572 + $0x14] sm:$0xf]
  %v4579 = vld [vmem:[%s4572 + $0x18] sm:$0xf]
  %v4580 = vld [vmem:[%s4572 + $0x1c] sm:$0xf]
  %v4581 = vld [vmem:[%s4572 + $0x20] sm:$0xf]
  %v4582 = vld [vmem:[%s4572 + $0x24] sm:$0xf]
  %v4583 = vld [vmem:[%s4572 + $0x28] sm:$0xf]
  %v4584 = vld [vmem:[%s4572 + $0x2c] sm:$0xf]
  %v4597 = vunpack.c.l.b16 %v4573
  %v4598 = vunpack.c.l.b16 %v4574
  %v4599 = vunpack.c.l.b16 %v4575
  %v4600 = vunpack.c.l.b16 %v4576
  %v4601 = vunpack.c.l.b16 %v4577
  %v4602 = vunpack.c.l.b16 %v4578
  %v4603 = vunpack.c.l.b16 %v4579
  %v4604 = vunpack.c.l.b16 %v4580
  %v4605 = vunpack.c.l.b16 %v4581
  %v4606 = vunpack.c.l.b16 %v4582
  %v4607 = vunpack.c.l.b16 %v4583
  %v4608 = vunpack.c.l.b16 %v4584
  %v4609 = vpack.c.b16 %v4598, %v4597
  %v4610 = vpack.c.b16 %v4600, %v4599
  %v4611 = vpack.c.b16 %v4602, %v4601
  %v4612 = vpack.c.b16 %v4604, %v4603
  %v4613 = vpack.c.b16 %v4606, %v4605
  %v4614 = vpack.c.b16 %v4608, %v4607
  %vm4621 = vcmask 785408
  %v4623 = vsel %vm4621, %v4239, 0
  %v4626 = vsel %vm4621, %v4249, 0
  %v4629 = vsel %vm4621, %v4259, 0
  %v4632 = vsel %vm4621, %v4269, 0
  %v4635 = vsel %vm4621, %v4279, 0
  %v4638 = vsel %vm4621, %v4289, 0
  %v4641 = vsel %vm4621, %v4299, 0
  %v4644 = vsel %vm4621, %v4309, 0
  %v4647 = vsel %vm4621, %v4319, 0
  %v4650 = vsel %vm4621, %v4329, 0
  %v4653 = vsel %vm4621, %v4339, 0
  %v4656 = vsel %vm4621, %v4349, 0
  %v4659 = vsel %vm4621, %v4359, 0
  %v4662 = vsel %vm4621, %v4369, 0
  %v4665 = vsel %vm4621, %v4379, 0
  %v4668 = vsel %vm4621, %v4561, 0
  %v4671 = vsel %vm4621, %v4399, 0
  %v4674 = vsel %vm4621, %v4409, 0
  %v4677 = vsel %vm4621, %v4419, 0
  %v4680 = vsel %vm4621, %v4429, 0
  %v4683 = vsel %vm4621, %v4439, 0
  %v4686 = vsel %vm4621, %v4449, 0
  %v4689 = vsel %vm4621, %v4459, 0
  %v4692 = vsel %vm4621, %v4469, 0
  %v4695 = vsel %vm4621, %v4479, 0
  %v4698 = vsel %vm4621, %v4489, 0
  %v4701 = vsel %vm4621, %v4499, 0
  %v4704 = vsel %vm4621, %v4509, 0
  %v4707 = vsel %vm4621, %v4519, 0
  %v4710 = vsel %vm4621, %v4529, 0
  %v4713 = vsel %vm4621, %v4539, 0
  %v4716 = vsel %vm4621, %v4571, 0
  %4718 = vmatprep.subr.bf16.mxu0 0
  %4719 = vmatpush1.bf16.msra.mxu0 %v4609
  %4720 = vmatprep.subr.bf16.mxu0 0
  %4721 = vmatpush1.bf16.msra.mxu0 %v4610
  %4722 = vmatprep.subr.bf16.mxu0 0
  %4723 = vmatpush1.bf16.msra.mxu0 %v4611
  %4724 = vmatprep.subr.bf16.mxu0 0
  %4725 = vmatpush1.bf16.msra.mxu0 %v4612
  %4726 = vmatprep.subr.bf16.mxu0 0
  %4727 = vmatpush1.bf16.msra.mxu0 %v4613
  %4728 = vmatprep.subr.bf16.mxu0 0
  %4729 = vmatpush1.bf16.msra.mxu0 %v4614
  %4730 = vmatprep.subr.bf16.mxu0 0
  %4731 = vmatpush1.bf16.msra.mxu0 0
  %4732 = vmatprep.subr.bf16.mxu0 0
  %4733 = vmatpush1.bf16.msra.mxu0 0
  %4734 = vmatprep.subr.bf16.mxu0 0
  %4735 = vmatpush1.bf16.msra.mxu0 0
  %4736 = vmatprep.subr.bf16.mxu0 0
  %4737 = vmatpush1.bf16.msra.mxu0 0
  %4738 = vmatprep.subr.bf16.mxu0 0
  %4739 = vmatpush1.bf16.msra.mxu0 0
  %4740 = vmatprep.subr.bf16.mxu0 0
  %4741 = vmatpush1.bf16.msra.mxu0 0
  %4742 = vmatprep.subr.bf16.mxu0 0
  %4743 = vmatpush1.bf16.msra.mxu0 0
  %4744 = vmatprep.subr.bf16.mxu0 0
  %4745 = vmatpush1.bf16.msra.mxu0 0
  %4746 = vmatprep.subr.bf16.mxu0 0
  %4747 = vmatpush1.bf16.msra.mxu0 0
  %4748 = vmatprep.subr.bf16.mxu0 0
  %4749 = vmatpush1.bf16.msra.mxu0 0
  %4750 = vmatprep.mubr.bf16.mxu0 0
  %4751 = vmatmul.mubr.bf16.gmra.mrb[0].mxu0 %v4623
  %v4752 = vpop.f32.mrb[0].mxu0
  %v4753 = vadd.f32 0.0, %v4752
  %v4754 = vpop.f32.mrb[0].mxu0
  %v4755 = vpop.f32.mrb[0].mxu0
  %v4756 = vadd.f32 0.0, %v4755
  %v4757 = vpop.f32.mrb[0].mxu0
  %4758 = vmatprep.mubr.bf16.mxu0 0
  %4759 = vmatmul.mubr.bf16.gmra.mrb[0].mxu0 %v4626
  %v4760 = vpop.f32.mrb[0].mxu0
  %v4761 = vadd.f32 0.0, %v4760
  %v4762 = vpop.f32.mrb[0].mxu0
  %v4763 = vpop.f32.mrb[0].mxu0
  %v4764 = vadd.f32 0.0, %v4763
  %v4765 = vpop.f32.mrb[0].mxu0
  %4766 = vmatprep.mubr.bf16.mxu0 0
  %4767 = vmatmul.mubr.bf16.gmra.mrb[0].mxu0 %v4629
  %v4768 = vpop.f32.mrb[0].mxu0
  %v4769 = vadd.f32 0.0, %v4768
  %v4770 = vpop.f32.mrb[0].mxu0
  %v4771 = vpop.f32.mrb[0].mxu0
  %v4772 = vadd.f32 0.0, %v4771
  %v4773 = vpop.f32.mrb[0].mxu0
  %4774 = vmatprep.mubr.bf16.mxu0 0
  %4775 = vmatmul.mubr.bf16.gmra.mrb[0].mxu0 %v4632
  %v4776 = vpop.f32.mrb[0].mxu0
  %v4777 = vadd.f32 0.0, %v4776
  %v4778 = vpop.f32.mrb[0].mxu0
  %v4779 = vpop.f32.mrb[0].mxu0
  %v4780 = vadd.f32 0.0, %v4779
  %v4781 = vpop.f32.mrb[0].mxu0
  %4782 = vmatprep.mubr.bf16.mxu0 0
  %4783 = vmatmul.mubr.bf16.gmra.mrb[0].mxu0 %v4635
  %v4784 = vpop.f32.mrb[0].mxu0
  %v4785 = vadd.f32 0.0, %v4784
  %v4786 = vpop.f32.mrb[0].mxu0
  %v4787 = vpop.f32.mrb[0].mxu0
  %v4788 = vadd.f32 0.0, %v4787
  %v4789 = vpop.f32.mrb[0].mxu0
  %4790 = vmatprep.mubr.bf16.mxu0 0
  %4791 = vmatmul.mubr.bf16.gmra.mrb[0].mxu0 %v4638
  %v4792 = vpop.f32.mrb[0].mxu0
  %v4793 = vadd.f32 0.0, %v4792
  %v4794 = vpop.f32.mrb[0].mxu0
  %v4795 = vpop.f32.mrb[0].mxu0
  %v4796 = vadd.f32 0.0, %v4795
  %v4797 = vpop.f32.mrb[0].mxu0
  %4798 = vmatprep.mubr.bf16.mxu0 0
  %4799 = vmatmul.mubr.bf16.gmra.mrb[0].mxu0 %v4641
  %v4800 = vpop.f32.mrb[0].mxu0
  %v4801 = vadd.f32 0.0, %v4800
  %v4802 = vpop.f32.mrb[0].mxu0
  %v4803 = vpop.f32.mrb[0].mxu0
  %v4804 = vadd.f32 0.0, %v4803
  %v4805 = vpop.f32.mrb[0].mxu0
  %4806 = vmatprep.mubr.bf16.mxu0 0
  %4807 = vmatmul.mubr.bf16.gmra.mrb[0].mxu0 %v4644
  %v4808 = vpop.f32.mrb[0].mxu0
  %v4809 = vadd.f32 0.0, %v4808
  %v4810 = vpop.f32.mrb[0].mxu0
  %v4811 = vpop.f32.mrb[0].mxu0
  %v4812 = vadd.f32 0.0, %v4811
  %v4813 = vpop.f32.mrb[0].mxu0
  %4814 = vmatprep.mubr.bf16.mxu0 0
  %4815 = vmatmul.mubr.bf16.gmra.mrb[0].mxu0 %v4647
  %v4816 = vpop.f32.mrb[0].mxu0
  %v4817 = vadd.f32 0.0, %v4816
  %v4818 = vpop.f32.mrb[0].mxu0
  %v4819 = vpop.f32.mrb[0].mxu0
  %v4820 = vadd.f32 0.0, %v4819
  %v4821 = vpop.f32.mrb[0].mxu0
  %4822 = vmatprep.mubr.bf16.mxu0 0
  %4823 = vmatmul.mubr.bf16.gmra.mrb[0].mxu0 %v4650
  %v4824 = vpop.f32.mrb[0].mxu0
  %v4825 = vadd.f32 0.0, %v4824
  %v4826 = vpop.f32.mrb[0].mxu0
  %v4827 = vpop.f32.mrb[0].mxu0
  %v4828 = vadd.f32 0.0, %v4827
  %v4829 = vpop.f32.mrb[0].mxu0
  %4830 = vmatprep.mubr.bf16.mxu0 0
  %4831 = vmatmul.mubr.bf16.gmra.mrb[0].mxu0 %v4653
  %v4832 = vpop.f32.mrb[0].mxu0
  %v4833 = vadd.f32 0.0, %v4832
  %v4834 = vpop.f32.mrb[0].mxu0
  %v4835 = vpop.f32.mrb[0].mxu0
  %v4836 = vadd.f32 0.0, %v4835
  %v4837 = vpop.f32.mrb[0].mxu0
  %4838 = vmatprep.mubr.bf16.mxu0 0
  %4839 = vmatmul.mubr.bf16.gmra.mrb[0].mxu0 %v4656
  %v4840 = vpop.f32.mrb[0].mxu0
  %v4841 = vadd.f32 0.0, %v4840
  %v4842 = vpop.f32.mrb[0].mxu0
  %v4843 = vpop.f32.mrb[0].mxu0
  %v4844 = vadd.f32 0.0, %v4843
  %v4845 = vpop.f32.mrb[0].mxu0
  %4846 = vmatprep.mubr.bf16.mxu0 0
  %4847 = vmatmul.mubr.bf16.gmra.mrb[0].mxu0 %v4659
  %v4848 = vpop.f32.mrb[0].mxu0
  %v4849 = vadd.f32 0.0, %v4848
  %v4850 = vpop.f32.mrb[0].mxu0
  %v4851 = vpop.f32.mrb[0].mxu0
  %v4852 = vadd.f32 0.0, %v4851
  %v4853 = vpop.f32.mrb[0].mxu0
  %4854 = vmatprep.mubr.bf16.mxu0 0
  %4855 = vmatmul.mubr.bf16.gmra.mrb[0].mxu0 %v4662
  %v4856 = vpop.f32.mrb[0].mxu0
  %v4857 = vadd.f32 0.0, %v4856
  %v4858 = vpop.f32.mrb[0].mxu0
  %v4859 = vpop.f32.mrb[0].mxu0
  %v4860 = vadd.f32 0.0, %v4859
  %v4861 = vpop.f32.mrb[0].mxu0
  %4862 = vmatprep.mubr.bf16.mxu0 0
  %4863 = vmatmul.mubr.bf16.gmra.mrb[0].mxu0 %v4665
  %v4864 = vpop.f32.mrb[0].mxu0
  %v4865 = vadd.f32 0.0, %v4864
  %v4866 = vpop.f32.mrb[0].mxu0
  %v4867 = vpop.f32.mrb[0].mxu0
  %v4868 = vadd.f32 0.0, %v4867
  %v4869 = vpop.f32.mrb[0].mxu0
  %4870 = vmatprep.mubr.bf16.mxu0 0
  %4871 = vmatmul.mubr.bf16.gmra.mrb[0].mxu0 %v4668
  %v4872 = vpop.f32.mrb[0].mxu0
  %v4873 = vadd.f32 0.0, %v4872
  %v4874 = vpop.f32.mrb[0].mxu0
  %v4875 = vpop.f32.mrb[0].mxu0
  %v4876 = vadd.f32 0.0, %v4875
  %v4877 = vpop.f32.mrb[0].mxu0
  %4878 = vmatprep.mubr.bf16.mxu0 0
  %4879 = vmatmul.mubr.bf16.gmra.mrb[0].mxu0 %v4671
  %v4880 = vpop.f32.mrb[0].mxu0
  %v4881 = vadd.f32 0.0, %v4880
  %v4882 = vpop.f32.mrb[0].mxu0
  %v4883 = vpop.f32.mrb[0].mxu0
  %v4884 = vadd.f32 0.0, %v4883
  %v4885 = vpop.f32.mrb[0].mxu0
  %4886 = vmatprep.mubr.bf16.mxu0 0
  %4887 = vmatmul.mubr.bf16.gmra.mrb[0].mxu0 %v4674
  %v4888 = vpop.f32.mrb[0].mxu0
  %v4889 = vadd.f32 0.0, %v4888
  %v4890 = vpop.f32.mrb[0].mxu0
  %v4891 = vpop.f32.mrb[0].mxu0
  %v4892 = vadd.f32 0.0, %v4891
  %v4893 = vpop.f32.mrb[0].mxu0
  %4894 = vmatprep.mubr.bf16.mxu0 0
  %4895 = vmatmul.mubr.bf16.gmra.mrb[0].mxu0 %v4677
  %v4896 = vpop.f32.mrb[0].mxu0
  %v4897 = vadd.f32 0.0, %v4896
  %v4898 = vpop.f32.mrb[0].mxu0
  %v4899 = vpop.f32.mrb[0].mxu0
  %v4900 = vadd.f32 0.0, %v4899
  %v4901 = vpop.f32.mrb[0].mxu0
  %4902 = vmatprep.mubr.bf16.mxu0 0
  %4903 = vmatmul.mubr.bf16.gmra.mrb[0].mxu0 %v4680
  %v4904 = vpop.f32.mrb[0].mxu0
  %v4905 = vadd.f32 0.0, %v4904
  %v4906 = vpop.f32.mrb[0].mxu0
  %v4907 = vpop.f32.mrb[0].mxu0
  %v4908 = vadd.f32 0.0, %v4907
  %v4909 = vpop.f32.mrb[0].mxu0
  %4910 = vmatprep.mubr.bf16.mxu0 0
  %4911 = vmatmul.mubr.bf16.gmra.mrb[0].mxu0 %v4683
  %v4912 = vpop.f32.mrb[0].mxu0
  %v4913 = vadd.f32 0.0, %v4912
  %v4914 = vpop.f32.mrb[0].mxu0
  %v4915 = vpop.f32.mrb[0].mxu0
  %v4916 = vadd.f32 0.0, %v4915
  %v4917 = vpop.f32.mrb[0].mxu0
  %4918 = vmatprep.mubr.bf16.mxu0 0
  %4919 = vmatmul.mubr.bf16.gmra.mrb[0].mxu0 %v4686
  %v4920 = vpop.f32.mrb[0].mxu0
  %v4921 = vadd.f32 0.0, %v4920
  %v4922 = vpop.f32.mrb[0].mxu0
  %v4923 = vpop.f32.mrb[0].mxu0
  %v4924 = vadd.f32 0.0, %v4923
  %v4925 = vpop.f32.mrb[0].mxu0
  %4926 = vmatprep.mubr.bf16.mxu0 0
  %4927 = vmatmul.mubr.bf16.gmra.mrb[0].mxu0 %v4689
  %v4928 = vpop.f32.mrb[0].mxu0
  %v4929 = vadd.f32 0.0, %v4928
  %v4930 = vpop.f32.mrb[0].mxu0
  %v4931 = vpop.f32.mrb[0].mxu0
  %v4932 = vadd.f32 0.0, %v4931
  %v4933 = vpop.f32.mrb[0].mxu0
  %4934 = vmatprep.mubr.bf16.mxu0 0
  %4935 = vmatmul.mubr.bf16.gmra.mrb[0].mxu0 %v4692
  %v4936 = vpop.f32.mrb[0].mxu0
  %v4937 = vadd.f32 0.0, %v4936
  %v4938 = vpop.f32.mrb[0].mxu0
  %v4939 = vpop.f32.mrb[0].mxu0
  %v4940 = vadd.f32 0.0, %v4939
  %v4941 = vpop.f32.mrb[0].mxu0
  %4942 = vmatprep.mubr.bf16.mxu0 0
  %4943 = vmatmul.mubr.bf16.gmra.mrb[0].mxu0 %v4695
  %v4944 = vpop.f32.mrb[0].mxu0
  %v4945 = vadd.f32 0.0, %v4944
  %v4946 = vpop.f32.mrb[0].mxu0
  %v4947 = vpop.f32.mrb[0].mxu0
  %v4948 = vadd.f32 0.0, %v4947
  %v4949 = vpop.f32.mrb[0].mxu0
  %4950 = vmatprep.mubr.bf16.mxu0 0
  %4951 = vmatmul.mubr.bf16.gmra.mrb[0].mxu0 %v4698
  %v4952 = vpop.f32.mrb[0].mxu0
  %v4953 = vadd.f32 0.0, %v4952
  %v4954 = vpop.f32.mrb[0].mxu0
  %v4955 = vpop.f32.mrb[0].mxu0
  %v4956 = vadd.f32 0.0, %v4955
  %v4957 = vpop.f32.mrb[0].mxu0
  %4958 = vmatprep.mubr.bf16.mxu0 0
  %4959 = vmatmul.mubr.bf16.gmra.mrb[0].mxu0 %v4701
  %v4960 = vpop.f32.mrb[0].mxu0
  %v4961 = vadd.f32 0.0, %v4960
  %v4962 = vpop.f32.mrb[0].mxu0
  %v4963 = vpop.f32.mrb[0].mxu0
  %v4964 = vadd.f32 0.0, %v4963
  %v4965 = vpop.f32.mrb[0].mxu0
  %4966 = vmatprep.mubr.bf16.mxu0 0
  %4967 = vmatmul.mubr.bf16.gmra.mrb[0].mxu0 %v4704
  %v4968 = vpop.f32.mrb[0].mxu0
  %v4969 = vadd.f32 0.0, %v4968
  %v4970 = vpop.f32.mrb[0].mxu0
  %v4971 = vpop.f32.mrb[0].mxu0
  %v4972 = vadd.f32 0.0, %v4971
  %v4973 = vpop.f32.mrb[0].mxu0
  %4974 = vmatprep.mubr.bf16.mxu0 0
  %4975 = vmatmul.mubr.bf16.gmra.mrb[0].mxu0 %v4707
  %v4976 = vpop.f32.mrb[0].mxu0
  %v4977 = vadd.f32 0.0, %v4976
  %v4978 = vpop.f32.mrb[0].mxu0
  %v4979 = vpop.f32.mrb[0].mxu0
  %v4980 = vadd.f32 0.0, %v4979
  %v4981 = vpop.f32.mrb[0].mxu0
  %4982 = vmatprep.mubr.bf16.mxu0 0
  %4983 = vmatmul.mubr.bf16.gmra.mrb[0].mxu0 %v4710
  %v4984 = vpop.f32.mrb[0].mxu0
  %v4985 = vadd.f32 0.0, %v4984
  %v4986 = vpop.f32.mrb[0].mxu0
  %v4987 = vpop.f32.mrb[0].mxu0
  %v4988 = vadd.f32 0.0, %v4987
  %v4989 = vpop.f32.mrb[0].mxu0
  %4990 = vmatprep.mubr.bf16.mxu0 0
  %4991 = vmatmul.mubr.bf16.gmra.mrb[0].mxu0 %v4713
  %v4992 = vpop.f32.mrb[0].mxu0
  %v4993 = vadd.f32 0.0, %v4992
  %v4994 = vpop.f32.mrb[0].mxu0
  %v4995 = vpop.f32.mrb[0].mxu0
  %v4996 = vadd.f32 0.0, %v4995
  %v4997 = vpop.f32.mrb[0].mxu0
  %4998 = vmatprep.mubr.bf16.mxu0 0
  %4999 = vmatmul.mubr.bf16.gmra.mrb[0].mxu0 %v4716
  %v5000 = vpop.f32.mrb[0].mxu0
  %v5001 = vadd.f32 0.0, %v5000
  %v5002 = vpop.f32.mrb[0].mxu0
  %v5003 = vpop.f32.mrb[0].mxu0
  %v5004 = vadd.f32 0.0, %v5003
  %v5005 = vpop.f32.mrb[0].mxu0
  %5006 = vdwg.mxu0
  %v5019 = vunpack.c.l.b16 %v4540
  %v5020 = vunpack.c.l.b16 %v4541
  %v5021 = vunpack.c.l.b16 %v4542
  %v5022 = vunpack.c.l.b16 %v4543
  %v5023 = vunpack.c.l.b16 %v4544
  %v5024 = vunpack.c.l.b16 %v4545
  %v5025 = vunpack.c.l.b16 %v4546
  %v5026 = vunpack.c.l.b16 %v4547
  %v5027 = vunpack.c.l.b16 %v4548
  %v5028 = vunpack.c.l.b16 %v4549
  %v5029 = vunpack.c.l.b16 %v4550
  %v5030 = vunpack.c.l.b16 %v4551
  %v5031 = vpack.c.b16 %v5020, %v5019
  %v5032 = vpack.c.b16 %v5022, %v5021
  %v5033 = vpack.c.b16 %v5024, %v5023
  %v5034 = vpack.c.b16 %v5026, %v5025
  %v5035 = vpack.c.b16 %v5028, %v5027
  %v5036 = vpack.c.b16 %v5030, %v5029
  %v5044 = vsel %vm4621, %v4229, 0
  %v5047 = vsel %vm4621, %v4389, 0
  %5049 = vmatprep.subr.bf16.mxu0 0
  %5050 = vmatpush1.bf16.msra.mxu0 %v5031
  %5051 = vmatprep.subr.bf16.mxu0 0
  %5052 = vmatpush1.bf16.msra.mxu0 %v5032
  %5053 = vmatprep.subr.bf16.mxu0 0
  %5054 = vmatpush1.bf16.msra.mxu0 %v5033
  %5055 = vmatprep.subr.bf16.mxu0 0
  %5056 = vmatpush1.bf16.msra.mxu0 %v5034
  %5057 = vmatprep.subr.bf16.mxu0 0
  %5058 = vmatpush1.bf16.msra.mxu0 %v5035
  %5059 = vmatprep.subr.bf16.mxu0 0
  %5060 = vmatpush1.bf16.msra.mxu0 %v5036
  %5061 = vmatprep.subr.bf16.mxu0 0
  %5062 = vmatpush1.bf16.msra.mxu0 0
  %5063 = vmatprep.subr.bf16.mxu0 0
  %5064 = vmatpush1.bf16.msra.mxu0 0
  %5065 = vmatprep.subr.bf16.mxu0 0
  %5066 = vmatpush1.bf16.msra.mxu0 0
  %5067 = vmatprep.subr.bf16.mxu0 0
  %5068 = vmatpush1.bf16.msra.mxu0 0
  %5069 = vmatprep.subr.bf16.mxu0 0
  %5070 = vmatpush1.bf16.msra.mxu0 0
  %5071 = vmatprep.subr.bf16.mxu0 0
  %5072 = vmatpush1.bf16.msra.mxu0 0
  %5073 = vmatprep.subr.bf16.mxu0 0
  %5074 = vmatpush1.bf16.msra.mxu0 0
  %5075 = vmatprep.subr.bf16.mxu0 0
  %5076 = vmatpush1.bf16.msra.mxu0 0
  %5077 = vmatprep.subr.bf16.mxu0 0
  %5078 = vmatpush1.bf16.msra.mxu0 0
  %5079 = vmatprep.subr.bf16.mxu0 0
  %5080 = vmatpush1.bf16.msra.mxu0 0
  %5081 = vmatprep.mubr.bf16.mxu0 0
  %5082 = vmatmul.mubr.bf16.gmra.mrb[0].mxu0 %v5044
  %v5083 = vpop.f32.mrb[0].mxu0
  %v5084 = vadd.f32 %v4753, %v5083
  %v5085 = vpop.f32.mrb[0].mxu0
  %v5086 = vpop.f32.mrb[0].mxu0
  %v5087 = vadd.f32 %v4756, %v5086
  %v5088 = vpop.f32.mrb[0].mxu0
  %5089 = vmatprep.mubr.bf16.mxu0 0
  %5090 = vmatmul.mubr.bf16.gmra.mrb[0].mxu0 %v4623
  %v5091 = vpop.f32.mrb[0].mxu0
  %v5092 = vadd.f32 %v4761, %v5091
  %v5093 = vpop.f32.mrb[0].mxu0
  %v5094 = vpop.f32.mrb[0].mxu0
  %v5095 = vadd.f32 %v4764, %v5094
  %v5096 = vpop.f32.mrb[0].mxu0
  %5097 = vmatprep.mubr.bf16.mxu0 0
  %5098 = vmatmul.mubr.bf16.gmra.mrb[0].mxu0 %v4626
  %v5099 = vpop.f32.mrb[0].mxu0
  %v5100 = vadd.f32 %v4769, %v5099
  %v5101 = vpop.f32.mrb[0].mxu0
  %v5102 = vpop.f32.mrb[0].mxu0
  %v5103 = vadd.f32 %v4772, %v5102
  %v5104 = vpop.f32.mrb[0].mxu0
  %5105 = vmatprep.mubr.bf16.mxu0 0
  %5106 = vmatmul.mubr.bf16.gmra.mrb[0].mxu0 %v4629
  %v5107 = vpop.f32.mrb[0].mxu0
  %v5108 = vadd.f32 %v4777, %v5107
  %v5109 = vpop.f32.mrb[0].mxu0
  %v5110 = vpop.f32.mrb[0].mxu0
  %v5111 = vadd.f32 %v4780, %v5110
  %v5112 = vpop.f32.mrb[0].mxu0
  %5113 = vmatprep.mubr.bf16.mxu0 0
  %5114 = vmatmul.mubr.bf16.gmra.mrb[0].mxu0 %v4632
  %v5115 = vpop.f32.mrb[0].mxu0
  %v5116 = vadd.f32 %v4785, %v5115
  %v5117 = vpop.f32.mrb[0].mxu0
  %v5118 = vpop.f32.mrb[0].mxu0
  %v5119 = vadd.f32 %v4788, %v5118
  %v5120 = vpop.f32.mrb[0].mxu0
  %5121 = vmatprep.mubr.bf16.mxu0 0
  %5122 = vmatmul.mubr.bf16.gmra.mrb[0].mxu0 %v4635
  %v5123 = vpop.f32.mrb[0].mxu0
  %v5124 = vadd.f32 %v4793, %v5123
  %v5125 = vpop.f32.mrb[0].mxu0
  %v5126 = vpop.f32.mrb[0].mxu0
  %v5127 = vadd.f32 %v4796, %v5126
  %v5128 = vpop.f32.mrb[0].mxu0
  %5129 = vmatprep.mubr.bf16.mxu0 0
  %5130 = vmatmul.mubr.bf16.gmra.mrb[0].mxu0 %v4638
  %v5131 = vpop.f32.mrb[0].mxu0
  %v5132 = vadd.f32 %v4801, %v5131
  %v5133 = vpop.f32.mrb[0].mxu0
  %v5134 = vpop.f32.mrb[0].mxu0
  %v5135 = vadd.f32 %v4804, %v5134
  %v5136 = vpop.f32.mrb[0].mxu0
  %5137 = vmatprep.mubr.bf16.mxu0 0
  %5138 = vmatmul.mubr.bf16.gmra.mrb[0].mxu0 %v4641
  %v5139 = vpop.f32.mrb[0].mxu0
  %v5140 = vadd.f32 %v4809, %v5139
  %v5141 = vpop.f32.mrb[0].mxu0
  %v5142 = vpop.f32.mrb[0].mxu0
  %v5143 = vadd.f32 %v4812, %v5142
  %v5144 = vpop.f32.mrb[0].mxu0
  %5145 = vmatprep.mubr.bf16.mxu0 0
  %5146 = vmatmul.mubr.bf16.gmra.mrb[0].mxu0 %v4644
  %v5147 = vpop.f32.mrb[0].mxu0
  %v5148 = vadd.f32 %v4817, %v5147
  %v5149 = vpop.f32.mrb[0].mxu0
  %v5150 = vpop.f32.mrb[0].mxu0
  %v5151 = vadd.f32 %v4820, %v5150
  %v5152 = vpop.f32.mrb[0].mxu0
  %5153 = vmatprep.mubr.bf16.mxu0 0
  %5154 = vmatmul.mubr.bf16.gmra.mrb[0].mxu0 %v4647
  %v5155 = vpop.f32.mrb[0].mxu0
  %v5156 = vadd.f32 %v4825, %v5155
  %v5157 = vpop.f32.mrb[0].mxu0
  %v5158 = vpop.f32.mrb[0].mxu0
  %v5159 = vadd.f32 %v4828, %v5158
  %v5160 = vpop.f32.mrb[0].mxu0
  %5161 = vmatprep.mubr.bf16.mxu0 0
  %5162 = vmatmul.mubr.bf16.gmra.mrb[0].mxu0 %v4650
  %v5163 = vpop.f32.mrb[0].mxu0
  %v5164 = vadd.f32 %v4833, %v5163
  %v5165 = vpop.f32.mrb[0].mxu0
  %v5166 = vpop.f32.mrb[0].mxu0
  %v5167 = vadd.f32 %v4836, %v5166
  %v5168 = vpop.f32.mrb[0].mxu0
  %5169 = vmatprep.mubr.bf16.mxu0 0
  %5170 = vmatmul.mubr.bf16.gmra.mrb[0].mxu0 %v4653
  %v5171 = vpop.f32.mrb[0].mxu0
  %v5172 = vadd.f32 %v4841, %v5171
  %v5173 = vpop.f32.mrb[0].mxu0
  %v5174 = vpop.f32.mrb[0].mxu0
  %v5175 = vadd.f32 %v4844, %v5174
  %v5176 = vpop.f32.mrb[0].mxu0
  %5177 = vmatprep.mubr.bf16.mxu0 0
  %5178 = vmatmul.mubr.bf16.gmra.mrb[0].mxu0 %v4656
  %v5179 = vpop.f32.mrb[0].mxu0
  %v5180 = vadd.f32 %v4849, %v5179
  %v5181 = vpop.f32.mrb[0].mxu0
  %v5182 = vpop.f32.mrb[0].mxu0
  %v5183 = vadd.f32 %v4852, %v5182
  %v5184 = vpop.f32.mrb[0].mxu0
  %5185 = vmatprep.mubr.bf16.mxu0 0
  %5186 = vmatmul.mubr.bf16.gmra.mrb[0].mxu0 %v4659
  %v5187 = vpop.f32.mrb[0].mxu0
  %v5188 = vadd.f32 %v4857, %v5187
  %v5189 = vpop.f32.mrb[0].mxu0
  %v5190 = vpop.f32.mrb[0].mxu0
  %v5191 = vadd.f32 %v4860, %v5190
  %v5192 = vpop.f32.mrb[0].mxu0
  %5193 = vmatprep.mubr.bf16.mxu0 0
  %5194 = vmatmul.mubr.bf16.gmra.mrb[0].mxu0 %v4662
  %v5195 = vpop.f32.mrb[0].mxu0
  %v5196 = vadd.f32 %v4865, %v5195
  %v5197 = vpop.f32.mrb[0].mxu0
  %v5198 = vpop.f32.mrb[0].mxu0
  %v5199 = vadd.f32 %v4868, %v5198
  %v5200 = vpop.f32.mrb[0].mxu0
  %5201 = vmatprep.mubr.bf16.mxu0 0
  %5202 = vmatmul.mubr.bf16.gmra.mrb[0].mxu0 %v4665
  %v5203 = vpop.f32.mrb[0].mxu0
  %v5204 = vadd.f32 %v4873, %v5203
  %v5205 = vpop.f32.mrb[0].mxu0
  %v5206 = vpop.f32.mrb[0].mxu0
  %v5207 = vadd.f32 %v4876, %v5206
  %v5208 = vpop.f32.mrb[0].mxu0
  %5209 = vmatprep.mubr.bf16.mxu0 0
  %5210 = vmatmul.mubr.bf16.gmra.mrb[0].mxu0 %v5047
  %v5211 = vpop.f32.mrb[0].mxu0
  %v5212 = vadd.f32 %v4881, %v5211
  %v5213 = vpop.f32.mrb[0].mxu0
  %v5214 = vpop.f32.mrb[0].mxu0
  %v5215 = vadd.f32 %v4884, %v5214
  %v5216 = vpop.f32.mrb[0].mxu0
  %5217 = vmatprep.mubr.bf16.mxu0 0
  %5218 = vmatmul.mubr.bf16.gmra.mrb[0].mxu0 %v4671
  %v5219 = vpop.f32.mrb[0].mxu0
  %v5220 = vadd.f32 %v4889, %v5219
  %v5221 = vpop.f32.mrb[0].mxu0
  %v5222 = vpop.f32.mrb[0].mxu0
  %v5223 = vadd.f32 %v4892, %v5222
  %v5224 = vpop.f32.mrb[0].mxu0
  %5225 = vmatprep.mubr.bf16.mxu0 0
  %5226 = vmatmul.mubr.bf16.gmra.mrb[0].mxu0 %v4674
  %v5227 = vpop.f32.mrb[0].mxu0
  %v5228 = vadd.f32 %v4897, %v5227
  %v5229 = vpop.f32.mrb[0].mxu0
  %v5230 = vpop.f32.mrb[0].mxu0
  %v5231 = vadd.f32 %v4900, %v5230
  %v5232 = vpop.f32.mrb[0].mxu0
  %5233 = vmatprep.mubr.bf16.mxu0 0
  %5234 = vmatmul.mubr.bf16.gmra.mrb[0].mxu0 %v4677
  %v5235 = vpop.f32.mrb[0].mxu0
  %v5236 = vadd.f32 %v4905, %v5235
  %v5237 = vpop.f32.mrb[0].mxu0
  %v5238 = vpop.f32.mrb[0].mxu0
  %v5239 = vadd.f32 %v4908, %v5238
  %v5240 = vpop.f32.mrb[0].mxu0
  %5241 = vmatprep.mubr.bf16.mxu0 0
  %5242 = vmatmul.mubr.bf16.gmra.mrb[0].mxu0 %v4680
  %v5243 = vpop.f32.mrb[0].mxu0
  %v5244 = vadd.f32 %v4913, %v5243
  %v5245 = vpop.f32.mrb[0].mxu0
  %v5246 = vpop.f32.mrb[0].mxu0
  %v5247 = vadd.f32 %v4916, %v5246
  %v5248 = vpop.f32.mrb[0].mxu0
  %5249 = vmatprep.mubr.bf16.mxu0 0
  %5250 = vmatmul.mubr.bf16.gmra.mrb[0].mxu0 %v4683
  %v5251 = vpop.f32.mrb[0].mxu0
  %v5252 = vadd.f32 %v4921, %v5251
  %v5253 = vpop.f32.mrb[0].mxu0
  %v5254 = vpop.f32.mrb[0].mxu0
  %v5255 = vadd.f32 %v4924, %v5254
  %v5256 = vpop.f32.mrb[0].mxu0
  %5257 = vmatprep.mubr.bf16.mxu0 0
  %5258 = vmatmul.mubr.bf16.gmra.mrb[0].mxu0 %v4686
  %v5259 = vpop.f32.mrb[0].mxu0
  %v5260 = vadd.f32 %v4929, %v5259
  %v5261 = vpop.f32.mrb[0].mxu0
  %v5262 = vpop.f32.mrb[0].mxu0
  %v5263 = vadd.f32 %v4932, %v5262
  %v5264 = vpop.f32.mrb[0].mxu0
  %5265 = vmatprep.mubr.bf16.mxu0 0
  %5266 = vmatmul.mubr.bf16.gmra.mrb[0].mxu0 %v4689
  %v5267 = vpop.f32.mrb[0].mxu0
  %v5268 = vadd.f32 %v4937, %v5267
  %v5269 = vpop.f32.mrb[0].mxu0
  %v5270 = vpop.f32.mrb[0].mxu0
  %v5271 = vadd.f32 %v4940, %v5270
  %v5272 = vpop.f32.mrb[0].mxu0
  %5273 = vmatprep.mubr.bf16.mxu0 0
  %5274 = vmatmul.mubr.bf16.gmra.mrb[0].mxu0 %v4692
  %v5275 = vpop.f32.mrb[0].mxu0
  %v5276 = vadd.f32 %v4945, %v5275
  %v5277 = vpop.f32.mrb[0].mxu0
  %v5278 = vpop.f32.mrb[0].mxu0
  %v5279 = vadd.f32 %v4948, %v5278
  %v5280 = vpop.f32.mrb[0].mxu0
  %5281 = vmatprep.mubr.bf16.mxu0 0
  %5282 = vmatmul.mubr.bf16.gmra.mrb[0].mxu0 %v4695
  %v5283 = vpop.f32.mrb[0].mxu0
  %v5284 = vadd.f32 %v4953, %v5283
  %v5285 = vpop.f32.mrb[0].mxu0
  %v5286 = vpop.f32.mrb[0].mxu0
  %v5287 = vadd.f32 %v4956, %v5286
  %v5288 = vpop.f32.mrb[0].mxu0
  %5289 = vmatprep.mubr.bf16.mxu0 0
  %5290 = vmatmul.mubr.bf16.gmra.mrb[0].mxu0 %v4698
  %v5291 = vpop.f32.mrb[0].mxu0
  %v5292 = vadd.f32 %v4961, %v5291
  %v5293 = vpop.f32.mrb[0].mxu0
  %v5294 = vpop.f32.mrb[0].mxu0
  %v5295 = vadd.f32 %v4964, %v5294
  %v5296 = vpop.f32.mrb[0].mxu0
  %5297 = vmatprep.mubr.bf16.mxu0 0
  %5298 = vmatmul.mubr.bf16.gmra.mrb[0].mxu0 %v4701
  %v5299 = vpop.f32.mrb[0].mxu0
  %v5300 = vadd.f32 %v4969, %v5299
  %v5301 = vpop.f32.mrb[0].mxu0
  %v5302 = vpop.f32.mrb[0].mxu0
  %v5303 = vadd.f32 %v4972, %v5302
  %v5304 = vpop.f32.mrb[0].mxu0
  %5305 = vmatprep.mubr.bf16.mxu0 0
  %5306 = vmatmul.mubr.bf16.gmra.mrb[0].mxu0 %v4704
  %v5307 = vpop.f32.mrb[0].mxu0
  %v5308 = vadd.f32 %v4977, %v5307
  %v5309 = vpop.f32.mrb[0].mxu0
  %v5310 = vpop.f32.mrb[0].mxu0
  %v5311 = vadd.f32 %v4980, %v5310
  %v5312 = vpop.f32.mrb[0].mxu0
  %5313 = vmatprep.mubr.bf16.mxu0 0
  %5314 = vmatmul.mubr.bf16.gmra.mrb[0].mxu0 %v4707
  %v5315 = vpop.f32.mrb[0].mxu0
  %v5316 = vadd.f32 %v4985, %v5315
  %v5317 = vpop.f32.mrb[0].mxu0
  %v5318 = vpop.f32.mrb[0].mxu0
  %v5319 = vadd.f32 %v4988, %v5318
  %v5320 = vpop.f32.mrb[0].mxu0
  %5321 = vmatprep.mubr.bf16.mxu0 0
  %5322 = vmatmul.mubr.bf16.gmra.mrb[0].mxu0 %v4710
  %v5323 = vpop.f32.mrb[0].mxu0
  %v5324 = vadd.f32 %v4993, %v5323
  %v5325 = vpop.f32.mrb[0].mxu0
  %v5326 = vpop.f32.mrb[0].mxu0
  %v5327 = vadd.f32 %v4996, %v5326
  %v5328 = vpop.f32.mrb[0].mxu0
  %5329 = vmatprep.mubr.bf16.mxu0 0
  %5330 = vmatmul.mubr.bf16.gmra.mrb[0].mxu0 %v4713
  %v5331 = vpop.f32.mrb[0].mxu0
  %v5332 = vadd.f32 %v5001, %v5331
  %v5333 = vpop.f32.mrb[0].mxu0
  %v5334 = vpop.f32.mrb[0].mxu0
  %v5335 = vadd.f32 %v5004, %v5334
  %v5336 = vpop.f32.mrb[0].mxu0
  %5337 = vdwg.mxu0
  %v5338 = vshrl.u32 %v4145, 16
  %v5340 = vshll.u32 %v4145, 16
  %v5342 = vrot.slane %v5340, 1
  %v5343 = vor.u32 %v5338, %v5342
  %v5344 = vshll.u32 %v4147, 16
  %v5346 = vrot.slane %v5344, 1
  %v5347 = vsel %vm423, %v5343, %v5346
  %v5348 = vshrl.u32 %v4217, 16
  %v5350 = vshll.u32 %v4217, 16
  %v5352 = vrot.slane %v5350, 1
  %v5353 = vor.u32 %v5348, %v5352
  %v5354 = vshll.u32 %v4219, 16
  %v5356 = vrot.slane %v5354, 1
  %v5357 = vsel %vm423, %v5353, %v5356
  %s5358 = scalar_lea.vmem %s3, 96
  %v5359 = vld [vmem:[%s5358] sm:$0xf]
  %v5360 = vld [vmem:[%s5358 + $0x4] sm:$0xf]
  %v5361 = vld [vmem:[%s5358 + $0x8] sm:$0xf]
  %v5362 = vld [vmem:[%s5358 + $0xc] sm:$0xf]
  %v5363 = vld [vmem:[%s5358 + $0x10] sm:$0xf]
  %v5364 = vld [vmem:[%s5358 + $0x14] sm:$0xf]
  %v5365 = vld [vmem:[%s5358 + $0x18] sm:$0xf]
  %v5366 = vld [vmem:[%s5358 + $0x1c] sm:$0xf]
  %v5367 = vld [vmem:[%s5358 + $0x20] sm:$0xf]
  %v5368 = vld [vmem:[%s5358 + $0x24] sm:$0xf]
  %v5369 = vld [vmem:[%s5358 + $0x28] sm:$0xf]
  %v5370 = vld [vmem:[%s5358 + $0x2c] sm:$0xf]
  %v5383 = vunpack.c.l.b16 %v5359
  %v5384 = vunpack.c.l.b16 %v5360
  %v5385 = vunpack.c.l.b16 %v5361
  %v5386 = vunpack.c.l.b16 %v5362
  %v5387 = vunpack.c.l.b16 %v5363
  %v5388 = vunpack.c.l.b16 %v5364
  %v5389 = vunpack.c.l.b16 %v5365
  %v5390 = vunpack.c.l.b16 %v5366
  %v5391 = vunpack.c.l.b16 %v5367
  %v5392 = vunpack.c.l.b16 %v5368
  %v5393 = vunpack.c.l.b16 %v5369
  %v5394 = vunpack.c.l.b16 %v5370
  %v5395 = vpack.c.b16 %v5384, %v5383
  %v5396 = vpack.c.b16 %v5386, %v5385
  %v5397 = vpack.c.b16 %v5388, %v5387
  %v5398 = vpack.c.b16 %v5390, %v5389
  %v5399 = vpack.c.b16 %v5392, %v5391
  %v5400 = vpack.c.b16 %v5394, %v5393
  %v5408 = vsel %vm4621, %v5347, 0
  %v5411 = vsel %vm4621, %v5357, 0
  %5413 = vmatprep.subr.bf16.mxu0 0
  %5414 = vmatpush1.bf16.msra.mxu0 %v5395
  %5415 = vmatprep.subr.bf16.mxu0 0
  %5416 = vmatpush1.bf16.msra.mxu0 %v5396
  %5417 = vmatprep.subr.bf16.mxu0 0
  %5418 = vmatpush1.bf16.msra.mxu0 %v5397
  %5419 = vmatprep.subr.bf16.mxu0 0
  %5420 = vmatpush1.bf16.msra.mxu0 %v5398
  %5421 = vmatprep.subr.bf16.mxu0 0
  %5422 = vmatpush1.bf16.msra.mxu0 %v5399
  %5423 = vmatprep.subr.bf16.mxu0 0
  %5424 = vmatpush1.bf16.msra.mxu0 %v5400
  %5425 = vmatprep.subr.bf16.mxu0 0
  %5426 = vmatpush1.bf16.msra.mxu0 0
  %5427 = vmatprep.subr.bf16.mxu0 0
  %5428 = vmatpush1.bf16.msra.mxu0 0
  %5429 = vmatprep.subr.bf16.mxu0 0
  %5430 = vmatpush1.bf16.msra.mxu0 0
  %5431 = vmatprep.subr.bf16.mxu0 0
  %5432 = vmatpush1.bf16.msra.mxu0 0
  %5433 = vmatprep.subr.bf16.mxu0 0
  %5434 = vmatpush1.bf16.msra.mxu0 0
  %5435 = vmatprep.subr.bf16.mxu0 0
  %5436 = vmatpush1.bf16.msra.mxu0 0
  %5437 = vmatprep.subr.bf16.mxu0 0
  %5438 = vmatpush1.bf16.msra.mxu0 0
  %5439 = vmatprep.subr.bf16.mxu0 0
  %5440 = vmatpush1.bf16.msra.mxu0 0
  %5441 = vmatprep.subr.bf16.mxu0 0
  %5442 = vmatpush1.bf16.msra.mxu0 0
  %5443 = vmatprep.subr.bf16.mxu0 0
  %5444 = vmatpush1.bf16.msra.mxu0 0
  %5445 = vmatprep.mubr.bf16.mxu0 0
  %5446 = vmatmul.mubr.bf16.gmra.mrb[0].mxu0 %v4626
  %v5447 = vpop.f32.mrb[0].mxu0
  %v5448 = vadd.f32 0.0, %v5447
  %v5449 = vpop.f32.mrb[0].mxu0
  %v5450 = vpop.f32.mrb[0].mxu0
  %v5451 = vadd.f32 0.0, %v5450
  %v5452 = vpop.f32.mrb[0].mxu0
  %5453 = vmatprep.mubr.bf16.mxu0 0
  %5454 = vmatmul.mubr.bf16.gmra.mrb[0].mxu0 %v4629
  %v5455 = vpop.f32.mrb[0].mxu0
  %v5456 = vadd.f32 0.0, %v5455
  %v5457 = vpop.f32.mrb[0].mxu0
  %v5458 = vpop.f32.mrb[0].mxu0
  %v5459 = vadd.f32 0.0, %v5458
  %v5460 = vpop.f32.mrb[0].mxu0
  %5461 = vmatprep.mubr.bf16.mxu0 0
  %5462 = vmatmul.mubr.bf16.gmra.mrb[0].mxu0 %v4632
  %v5463 = vpop.f32.mrb[0].mxu0
  %v5464 = vadd.f32 0.0, %v5463
  %v5465 = vpop.f32.mrb[0].mxu0
  %v5466 = vpop.f32.mrb[0].mxu0
  %v5467 = vadd.f32 0.0, %v5466
  %v5468 = vpop.f32.mrb[0].mxu0
  %5469 = vmatprep.mubr.bf16.mxu0 0
  %5470 = vmatmul.mubr.bf16.gmra.mrb[0].mxu0 %v4635
  %v5471 = vpop.f32.mrb[0].mxu0
  %v5472 = vadd.f32 0.0, %v5471
  %v5473 = vpop.f32.mrb[0].mxu0
  %v5474 = vpop.f32.mrb[0].mxu0
  %v5475 = vadd.f32 0.0, %v5474
  %v5476 = vpop.f32.mrb[0].mxu0
  %5477 = vmatprep.mubr.bf16.mxu0 0
  %5478 = vmatmul.mubr.bf16.gmra.mrb[0].mxu0 %v4638
  %v5479 = vpop.f32.mrb[0].mxu0
  %v5480 = vadd.f32 0.0, %v5479
  %v5481 = vpop.f32.mrb[0].mxu0
  %v5482 = vpop.f32.mrb[0].mxu0
  %v5483 = vadd.f32 0.0, %v5482
  %v5484 = vpop.f32.mrb[0].mxu0
  %5485 = vmatprep.mubr.bf16.mxu0 0
  %5486 = vmatmul.mubr.bf16.gmra.mrb[0].mxu0 %v4641
  %v5487 = vpop.f32.mrb[0].mxu0
  %v5488 = vadd.f32 0.0, %v5487
  %v5489 = vpop.f32.mrb[0].mxu0
  %v5490 = vpop.f32.mrb[0].mxu0
  %v5491 = vadd.f32 0.0, %v5490
  %v5492 = vpop.f32.mrb[0].mxu0
  %5493 = vmatprep.mubr.bf16.mxu0 0
  %5494 = vmatmul.mubr.bf16.gmra.mrb[0].mxu0 %v4644
  %v5495 = vpop.f32.mrb[0].mxu0
  %v5496 = vadd.f32 0.0, %v5495
  %v5497 = vpop.f32.mrb[0].mxu0
  %v5498 = vpop.f32.mrb[0].mxu0
  %v5499 = vadd.f32 0.0, %v5498
  %v5500 = vpop.f32.mrb[0].mxu0
  %5501 = vmatprep.mubr.bf16.mxu0 0
  %5502 = vmatmul.mubr.bf16.gmra.mrb[0].mxu0 %v4647
  %v5503 = vpop.f32.mrb[0].mxu0
  %v5504 = vadd.f32 0.0, %v5503
  %v5505 = vpop.f32.mrb[0].mxu0
  %v5506 = vpop.f32.mrb[0].mxu0
  %v5507 = vadd.f32 0.0, %v5506
  %v5508 = vpop.f32.mrb[0].mxu0
  %5509 = vmatprep.mubr.bf16.mxu0 0
  %5510 = vmatmul.mubr.bf16.gmra.mrb[0].mxu0 %v4650
  %v5511 = vpop.f32.mrb[0].mxu0
  %v5512 = vadd.f32 0.0, %v5511
  %v5513 = vpop.f32.mrb[0].mxu0
  %v5514 = vpop.f32.mrb[0].mxu0
  %v5515 = vadd.f32 0.0, %v5514
  %v5516 = vpop.f32.mrb[0].mxu0
  %5517 = vmatprep.mubr.bf16.mxu0 0
  %5518 = vmatmul.mubr.bf16.gmra.mrb[0].mxu0 %v4653
  %v5519 = vpop.f32.mrb[0].mxu0
  %v5520 = vadd.f32 0.0, %v5519
  %v5521 = vpop.f32.mrb[0].mxu0
  %v5522 = vpop.f32.mrb[0].mxu0
  %v5523 = vadd.f32 0.0, %v5522
  %v5524 = vpop.f32.mrb[0].mxu0
  %5525 = vmatprep.mubr.bf16.mxu0 0
  %5526 = vmatmul.mubr.bf16.gmra.mrb[0].mxu0 %v4656
  %v5527 = vpop.f32.mrb[0].mxu0
  %v5528 = vadd.f32 0.0, %v5527
  %v5529 = vpop.f32.mrb[0].mxu0
  %v5530 = vpop.f32.mrb[0].mxu0
  %v5531 = vadd.f32 0.0, %v5530
  %v5532 = vpop.f32.mrb[0].mxu0
  %5533 = vmatprep.mubr.bf16.mxu0 0
  %5534 = vmatmul.mubr.bf16.gmra.mrb[0].mxu0 %v4659
  %v5535 = vpop.f32.mrb[0].mxu0
  %v5536 = vadd.f32 0.0, %v5535
  %v5537 = vpop.f32.mrb[0].mxu0
  %v5538 = vpop.f32.mrb[0].mxu0
  %v5539 = vadd.f32 0.0, %v5538
  %v5540 = vpop.f32.mrb[0].mxu0
  %5541 = vmatprep.mubr.bf16.mxu0 0
  %5542 = vmatmul.mubr.bf16.gmra.mrb[0].mxu0 %v4662
  %v5543 = vpop.f32.mrb[0].mxu0
  %v5544 = vadd.f32 0.0, %v5543
  %v5545 = vpop.f32.mrb[0].mxu0
  %v5546 = vpop.f32.mrb[0].mxu0
  %v5547 = vadd.f32 0.0, %v5546
  %v5548 = vpop.f32.mrb[0].mxu0
  %5549 = vmatprep.mubr.bf16.mxu0 0
  %5550 = vmatmul.mubr.bf16.gmra.mrb[0].mxu0 %v4665
  %v5551 = vpop.f32.mrb[0].mxu0
  %v5552 = vadd.f32 0.0, %v5551
  %v5553 = vpop.f32.mrb[0].mxu0
  %v5554 = vpop.f32.mrb[0].mxu0
  %v5555 = vadd.f32 0.0, %v5554
  %v5556 = vpop.f32.mrb[0].mxu0
  %5557 = vmatprep.mubr.bf16.mxu0 0
  %5558 = vmatmul.mubr.bf16.gmra.mrb[0].mxu0 %v4668
  %v5559 = vpop.f32.mrb[0].mxu0
  %v5560 = vadd.f32 0.0, %v5559
  %v5561 = vpop.f32.mrb[0].mxu0
  %v5562 = vpop.f32.mrb[0].mxu0
  %v5563 = vadd.f32 0.0, %v5562
  %v5564 = vpop.f32.mrb[0].mxu0
  %5565 = vmatprep.mubr.bf16.mxu0 0
  %5566 = vmatmul.mubr.bf16.gmra.mrb[0].mxu0 %v5408
  %v5567 = vpop.f32.mrb[0].mxu0
  %v5568 = vadd.f32 0.0, %v5567
  %v5569 = vpop.f32.mrb[0].mxu0
  %v5570 = vpop.f32.mrb[0].mxu0
  %v5571 = vadd.f32 0.0, %v5570
  %v5572 = vpop.f32.mrb[0].mxu0
  %5573 = vmatprep.mubr.bf16.mxu0 0
  %5574 = vmatmul.mubr.bf16.gmra.mrb[0].mxu0 %v4674
  %v5575 = vpop.f32.mrb[0].mxu0
  %v5576 = vadd.f32 0.0, %v5575
  %v5577 = vpop.f32.mrb[0].mxu0
  %v5578 = vpop.f32.mrb[0].mxu0
  %v5579 = vadd.f32 0.0, %v5578
  %v5580 = vpop.f32.mrb[0].mxu0
  %5581 = vmatprep.mubr.bf16.mxu0 0
  %5582 = vmatmul.mubr.bf16.gmra.mrb[0].mxu0 %v4677
  %v5583 = vpop.f32.mrb[0].mxu0
  %v5584 = vadd.f32 0.0, %v5583
  %v5585 = vpop.f32.mrb[0].mxu0
  %v5586 = vpop.f32.mrb[0].mxu0
  %v5587 = vadd.f32 0.0, %v5586
  %v5588 = vpop.f32.mrb[0].mxu0
  %5589 = vmatprep.mubr.bf16.mxu0 0
  %5590 = vmatmul.mubr.bf16.gmra.mrb[0].mxu0 %v4680
  %v5591 = vpop.f32.mrb[0].mxu0
  %v5592 = vadd.f32 0.0, %v5591
  %v5593 = vpop.f32.mrb[0].mxu0
  %v5594 = vpop.f32.mrb[0].mxu0
  %v5595 = vadd.f32 0.0, %v5594
  %v5596 = vpop.f32.mrb[0].mxu0
  %5597 = vmatprep.mubr.bf16.mxu0 0
  %5598 = vmatmul.mubr.bf16.gmra.mrb[0].mxu0 %v4683
  %v5599 = vpop.f32.mrb[0].mxu0
  %v5600 = vadd.f32 0.0, %v5599
  %v5601 = vpop.f32.mrb[0].mxu0
  %v5602 = vpop.f32.mrb[0].mxu0
  %v5603 = vadd.f32 0.0, %v5602
  %v5604 = vpop.f32.mrb[0].mxu0
  %5605 = vmatprep.mubr.bf16.mxu0 0
  %5606 = vmatmul.mubr.bf16.gmra.mrb[0].mxu0 %v4686
  %v5607 = vpop.f32.mrb[0].mxu0
  %v5608 = vadd.f32 0.0, %v5607
  %v5609 = vpop.f32.mrb[0].mxu0
  %v5610 = vpop.f32.mrb[0].mxu0
  %v5611 = vadd.f32 0.0, %v5610
  %v5612 = vpop.f32.mrb[0].mxu0
  %5613 = vmatprep.mubr.bf16.mxu0 0
  %5614 = vmatmul.mubr.bf16.gmra.mrb[0].mxu0 %v4689
  %v5615 = vpop.f32.mrb[0].mxu0
  %v5616 = vadd.f32 0.0, %v5615
  %v5617 = vpop.f32.mrb[0].mxu0
  %v5618 = vpop.f32.mrb[0].mxu0
  %v5619 = vadd.f32 0.0, %v5618
  %v5620 = vpop.f32.mrb[0].mxu0
  %5621 = vmatprep.mubr.bf16.mxu0 0
  %5622 = vmatmul.mubr.bf16.gmra.mrb[0].mxu0 %v4692
  %v5623 = vpop.f32.mrb[0].mxu0
  %v5624 = vadd.f32 0.0, %v5623
  %v5625 = vpop.f32.mrb[0].mxu0
  %v5626 = vpop.f32.mrb[0].mxu0
  %v5627 = vadd.f32 0.0, %v5626
  %v5628 = vpop.f32.mrb[0].mxu0
  %5629 = vmatprep.mubr.bf16.mxu0 0
  %5630 = vmatmul.mubr.bf16.gmra.mrb[0].mxu0 %v4695
  %v5631 = vpop.f32.mrb[0].mxu0
  %v5632 = vadd.f32 0.0, %v5631
  %v5633 = vpop.f32.mrb[0].mxu0
  %v5634 = vpop.f32.mrb[0].mxu0
  %v5635 = vadd.f32 0.0, %v5634
  %v5636 = vpop.f32.mrb[0].mxu0
  %5637 = vmatprep.mubr.bf16.mxu0 0
  %5638 = vmatmul.mubr.bf16.gmra.mrb[0].mxu0 %v4698
  %v5639 = vpop.f32.mrb[0].mxu0
  %v5640 = vadd.f32 0.0, %v5639
  %v5641 = vpop.f32.mrb[0].mxu0
  %v5642 = vpop.f32.mrb[0].mxu0
  %v5643 = vadd.f32 0.0, %v5642
  %v5644 = vpop.f32.mrb[0].mxu0
  %5645 = vmatprep.mubr.bf16.mxu0 0
  %5646 = vmatmul.mubr.bf16.gmra.mrb[0].mxu0 %v4701
  %v5647 = vpop.f32.mrb[0].mxu0
  %v5648 = vadd.f32 0.0, %v5647
  %v5649 = vpop.f32.mrb[0].mxu0
  %v5650 = vpop.f32.mrb[0].mxu0
  %v5651 = vadd.f32 0.0, %v5650
  %v5652 = vpop.f32.mrb[0].mxu0
  %5653 = vmatprep.mubr.bf16.mxu0 0
  %5654 = vmatmul.mubr.bf16.gmra.mrb[0].mxu0 %v4704
  %v5655 = vpop.f32.mrb[0].mxu0
  %v5656 = vadd.f32 0.0, %v5655
  %v5657 = vpop.f32.mrb[0].mxu0
  %v5658 = vpop.f32.mrb[0].mxu0
  %v5659 = vadd.f32 0.0, %v5658
  %v5660 = vpop.f32.mrb[0].mxu0
  %5661 = vmatprep.mubr.bf16.mxu0 0
  %5662 = vmatmul.mubr.bf16.gmra.mrb[0].mxu0 %v4707
  %v5663 = vpop.f32.mrb[0].mxu0
  %v5664 = vadd.f32 0.0, %v5663
  %v5665 = vpop.f32.mrb[0].mxu0
  %v5666 = vpop.f32.mrb[0].mxu0
  %v5667 = vadd.f32 0.0, %v5666
  %v5668 = vpop.f32.mrb[0].mxu0
  %5669 = vmatprep.mubr.bf16.mxu0 0
  %5670 = vmatmul.mubr.bf16.gmra.mrb[0].mxu0 %v4710
  %v5671 = vpop.f32.mrb[0].mxu0
  %v5672 = vadd.f32 0.0, %v5671
  %v5673 = vpop.f32.mrb[0].mxu0
  %v5674 = vpop.f32.mrb[0].mxu0
  %v5675 = vadd.f32 0.0, %v5674
  %v5676 = vpop.f32.mrb[0].mxu0
  %5677 = vmatprep.mubr.bf16.mxu0 0
  %5678 = vmatmul.mubr.bf16.gmra.mrb[0].mxu0 %v4713
  %v5679 = vpop.f32.mrb[0].mxu0
  %v5680 = vadd.f32 0.0, %v5679
  %v5681 = vpop.f32.mrb[0].mxu0
  %v5682 = vpop.f32.mrb[0].mxu0
  %v5683 = vadd.f32 0.0, %v5682
  %v5684 = vpop.f32.mrb[0].mxu0
  %5685 = vmatprep.mubr.bf16.mxu0 0
  %5686 = vmatmul.mubr.bf16.gmra.mrb[0].mxu0 %v4716
  %v5687 = vpop.f32.mrb[0].mxu0
  %v5688 = vadd.f32 0.0, %v5687
  %v5689 = vpop.f32.mrb[0].mxu0
  %v5690 = vpop.f32.mrb[0].mxu0
  %v5691 = vadd.f32 0.0, %v5690
  %v5692 = vpop.f32.mrb[0].mxu0
  %5693 = vmatprep.mubr.bf16.mxu0 0
  %5694 = vmatmul.mubr.bf16.gmra.mrb[0].mxu0 %v5411
  %v5695 = vpop.f32.mrb[0].mxu0
  %v5696 = vadd.f32 0.0, %v5695
  %v5697 = vpop.f32.mrb[0].mxu0
  %v5698 = vpop.f32.mrb[0].mxu0
  %v5699 = vadd.f32 0.0, %v5698
  %v5700 = vpop.f32.mrb[0].mxu0
  %5701 = vdwg.mxu0
  %v5702 = vadd.f32 %v5084, %v5448
  %v5703 = vadd.f32 %v5087, %v5451
  %v5704 = vadd.f32 %v5092, %v5456
  %v5705 = vadd.f32 %v5095, %v5459
  %v5706 = vadd.f32 %v5100, %v5464
  %v5707 = vadd.f32 %v5103, %v5467
  %v5708 = vadd.f32 %v5108, %v5472
  %v5709 = vadd.f32 %v5111, %v5475
  %v5710 = vadd.f32 %v5116, %v5480
  %v5711 = vadd.f32 %v5119, %v5483
  %v5712 = vadd.f32 %v5124, %v5488
  %v5713 = vadd.f32 %v5127, %v5491
  %v5714 = vadd.f32 %v5132, %v5496
  %v5715 = vadd.f32 %v5135, %v5499
  %v5716 = vadd.f32 %v5140, %v5504
  %v5717 = vadd.f32 %v5143, %v5507
  %v5718 = vadd.f32 %v5148, %v5512
  %v5719 = vadd.f32 %v5151, %v5515
  %v5720 = vadd.f32 %v5156, %v5520
  %v5721 = vadd.f32 %v5159, %v5523
  %v5722 = vadd.f32 %v5164, %v5528
  %v5723 = vadd.f32 %v5167, %v5531
  %v5724 = vadd.f32 %v5172, %v5536
  %v5725 = vadd.f32 %v5175, %v5539
  %v5726 = vadd.f32 %v5180, %v5544
  %v5727 = vadd.f32 %v5183, %v5547
  %v5728 = vadd.f32 %v5188, %v5552
  %v5729 = vadd.f32 %v5191, %v5555
  %v5730 = vadd.f32 %v5196, %v5560
  %v5731 = vadd.f32 %v5199, %v5563
  %v5732 = vadd.f32 %v5204, %v5568
  %v5733 = vadd.f32 %v5207, %v5571
  %v5734 = vadd.f32 %v5212, %v5576
  %v5735 = vadd.f32 %v5215, %v5579
  %v5736 = vadd.f32 %v5220, %v5584
  %v5737 = vadd.f32 %v5223, %v5587
  %v5738 = vadd.f32 %v5228, %v5592
  %v5739 = vadd.f32 %v5231, %v5595
  %v5740 = vadd.f32 %v5236, %v5600
  %v5741 = vadd.f32 %v5239, %v5603
  %v5742 = vadd.f32 %v5244, %v5608
  %v5743 = vadd.f32 %v5247, %v5611
  %v5744 = vadd.f32 %v5252, %v5616
  %v5745 = vadd.f32 %v5255, %v5619
  %v5746 = vadd.f32 %v5260, %v5624
  %v5747 = vadd.f32 %v5263, %v5627
  %v5748 = vadd.f32 %v5268, %v5632
  %v5749 = vadd.f32 %v5271, %v5635
  %v5750 = vadd.f32 %v5276, %v5640
  %v5751 = vadd.f32 %v5279, %v5643
  %v5752 = vadd.f32 %v5284, %v5648
  %v5753 = vadd.f32 %v5287, %v5651
  %v5754 = vadd.f32 %v5292, %v5656
  %v5755 = vadd.f32 %v5295, %v5659
  %v5756 = vadd.f32 %v5300, %v5664
  %v5757 = vadd.f32 %v5303, %v5667
  %v5758 = vadd.f32 %v5308, %v5672
  %v5759 = vadd.f32 %v5311, %v5675
  %v5760 = vadd.f32 %v5316, %v5680
  %v5761 = vadd.f32 %v5319, %v5683
  %v5762 = vadd.f32 %v5324, %v5688
  %v5763 = vadd.f32 %v5327, %v5691
  %v5764 = vadd.f32 %v5332, %v5696
  %v5765 = vadd.f32 %v5335, %v5699
  %v5766 = vld [vmem:[%s4] sm:$0x1]
  %v5768 = vlaneseq
  %v5769 = vshrl.u32 %v5768, 7
  %v5770 = vsub.s32 0, %v5769
  %v5771 = vrot.slane %v5766, %v5770
  %v5773 = vadd.f32 %v5702, %v5771
  %v5774 = vadd.f32 %v5703, %v5771
  %v5775 = vadd.f32 %v5704, %v5771
  %v5776 = vadd.f32 %v5705, %v5771
  %v5777 = vadd.f32 %v5706, %v5771
  %v5778 = vadd.f32 %v5707, %v5771
  %v5779 = vadd.f32 %v5708, %v5771
  %v5780 = vadd.f32 %v5709, %v5771
  %v5781 = vadd.f32 %v5710, %v5771
  %v5782 = vadd.f32 %v5711, %v5771
  %v5783 = vadd.f32 %v5712, %v5771
  %v5784 = vadd.f32 %v5713, %v5771
  %v5785 = vadd.f32 %v5714, %v5771
  %v5786 = vadd.f32 %v5715, %v5771
  %v5787 = vadd.f32 %v5716, %v5771
  %v5788 = vadd.f32 %v5717, %v5771
  %v5789 = vadd.f32 %v5718, %v5771
  %v5790 = vadd.f32 %v5719, %v5771
  %v5791 = vadd.f32 %v5720, %v5771
  %v5792 = vadd.f32 %v5721, %v5771
  %v5793 = vadd.f32 %v5722, %v5771
  %v5794 = vadd.f32 %v5723, %v5771
  %v5795 = vadd.f32 %v5724, %v5771
  %v5796 = vadd.f32 %v5725, %v5771
  %v5797 = vadd.f32 %v5726, %v5771
  %v5798 = vadd.f32 %v5727, %v5771
  %v5799 = vadd.f32 %v5728, %v5771
  %v5800 = vadd.f32 %v5729, %v5771
  %v5801 = vadd.f32 %v5730, %v5771
  %v5802 = vadd.f32 %v5731, %v5771
  %v5803 = vadd.f32 %v5732, %v5771
  %v5804 = vadd.f32 %v5733, %v5771
  %v5805 = vadd.f32 %v5734, %v5771
  %v5806 = vadd.f32 %v5735, %v5771
  %v5807 = vadd.f32 %v5736, %v5771
  %v5808 = vadd.f32 %v5737, %v5771
  %v5809 = vadd.f32 %v5738, %v5771
  %v5810 = vadd.f32 %v5739, %v5771
  %v5811 = vadd.f32 %v5740, %v5771
  %v5812 = vadd.f32 %v5741, %v5771
  %v5813 = vadd.f32 %v5742, %v5771
  %v5814 = vadd.f32 %v5743, %v5771
  %v5815 = vadd.f32 %v5744, %v5771
  %v5816 = vadd.f32 %v5745, %v5771
  %v5817 = vadd.f32 %v5746, %v5771
  %v5818 = vadd.f32 %v5747, %v5771
  %v5819 = vadd.f32 %v5748, %v5771
  %v5820 = vadd.f32 %v5749, %v5771
  %v5821 = vadd.f32 %v5750, %v5771
  %v5822 = vadd.f32 %v5751, %v5771
  %v5823 = vadd.f32 %v5752, %v5771
  %v5824 = vadd.f32 %v5753, %v5771
  %v5825 = vadd.f32 %v5754, %v5771
  %v5826 = vadd.f32 %v5755, %v5771
  %v5827 = vadd.f32 %v5756, %v5771
  %v5828 = vadd.f32 %v5757, %v5771
  %v5829 = vadd.f32 %v5758, %v5771
  %v5830 = vadd.f32 %v5759, %v5771
  %v5831 = vadd.f32 %v5760, %v5771
  %v5832 = vadd.f32 %v5761, %v5771
  %v5833 = vadd.f32 %v5762, %v5771
  %v5834 = vadd.f32 %v5763, %v5771
  %v5835 = vadd.f32 %v5764, %v5771
  %v5836 = vadd.f32 %v5765, %v5771
  %v5837 = vmax.f32 %v5773, 0.0
  %v5838 = vmax.f32 %v5774, 0.0
  %v5839 = vmax.f32 %v5775, 0.0
  %v5840 = vmax.f32 %v5776, 0.0
  %v5841 = vmax.f32 %v5777, 0.0
  %v5842 = vmax.f32 %v5778, 0.0
  %v5843 = vmax.f32 %v5779, 0.0
  %v5844 = vmax.f32 %v5780, 0.0
  %v5845 = vmax.f32 %v5781, 0.0
  %v5846 = vmax.f32 %v5782, 0.0
  %v5847 = vmax.f32 %v5783, 0.0
  %v5848 = vmax.f32 %v5784, 0.0
  %v5849 = vmax.f32 %v5785, 0.0
  %v5850 = vmax.f32 %v5786, 0.0
  %v5851 = vmax.f32 %v5787, 0.0
  %v5852 = vmax.f32 %v5788, 0.0
  %v5853 = vmax.f32 %v5789, 0.0
  %v5854 = vmax.f32 %v5790, 0.0
  %v5855 = vmax.f32 %v5791, 0.0
  %v5856 = vmax.f32 %v5792, 0.0
  %v5857 = vmax.f32 %v5793, 0.0
  %v5858 = vmax.f32 %v5794, 0.0
  %v5859 = vmax.f32 %v5795, 0.0
  %v5860 = vmax.f32 %v5796, 0.0
  %v5861 = vmax.f32 %v5797, 0.0
  %v5862 = vmax.f32 %v5798, 0.0
  %v5863 = vmax.f32 %v5799, 0.0
  %v5864 = vmax.f32 %v5800, 0.0
  %v5865 = vmax.f32 %v5801, 0.0
  %v5866 = vmax.f32 %v5802, 0.0
  %v5867 = vmax.f32 %v5803, 0.0
  %v5868 = vmax.f32 %v5804, 0.0
  %v5869 = vmax.f32 %v5805, 0.0
  %v5870 = vmax.f32 %v5806, 0.0
  %v5871 = vmax.f32 %v5807, 0.0
  %v5872 = vmax.f32 %v5808, 0.0
  %v5873 = vmax.f32 %v5809, 0.0
  %v5874 = vmax.f32 %v5810, 0.0
  %v5875 = vmax.f32 %v5811, 0.0
  %v5876 = vmax.f32 %v5812, 0.0
  %v5877 = vmax.f32 %v5813, 0.0
  %v5878 = vmax.f32 %v5814, 0.0
  %v5879 = vmax.f32 %v5815, 0.0
  %v5880 = vmax.f32 %v5816, 0.0
  %v5881 = vmax.f32 %v5817, 0.0
  %v5882 = vmax.f32 %v5818, 0.0
  %v5883 = vmax.f32 %v5819, 0.0
  %v5884 = vmax.f32 %v5820, 0.0
  %v5885 = vmax.f32 %v5821, 0.0
  %v5886 = vmax.f32 %v5822, 0.0
  %v5887 = vmax.f32 %v5823, 0.0
  %v5888 = vmax.f32 %v5824, 0.0
  %v5889 = vmax.f32 %v5825, 0.0
  %v5890 = vmax.f32 %v5826, 0.0
  %v5891 = vmax.f32 %v5827, 0.0
  %v5892 = vmax.f32 %v5828, 0.0
  %v5893 = vmax.f32 %v5829, 0.0
  %v5894 = vmax.f32 %v5830, 0.0
  %v5895 = vmax.f32 %v5831, 0.0
  %v5896 = vmax.f32 %v5832, 0.0
  %v5897 = vmax.f32 %v5833, 0.0
  %v5898 = vmax.f32 %v5834, 0.0
  %v5899 = vmax.f32 %v5835, 0.0
  %v5900 = vmax.f32 %v5836, 0.0
  %v5901 = vld [vmem:[%s5] sm:$0xf]
  %v5902 = vpack.c.bf16 %v5838, %v5837
  %v5903 = vpack.c.bf16 %v5840, %v5839
  %v5904 = vpack.c.bf16 %v5842, %v5841
  %v5905 = vpack.c.bf16 %v5844, %v5843
  %v5906 = vpack.c.bf16 %v5846, %v5845
  %v5907 = vpack.c.bf16 %v5848, %v5847
  %v5908 = vpack.c.bf16 %v5850, %v5849
  %v5909 = vpack.c.bf16 %v5852, %v5851
  %v5910 = vpack.c.bf16 %v5854, %v5853
  %v5911 = vpack.c.bf16 %v5856, %v5855
  %v5912 = vpack.c.bf16 %v5858, %v5857
  %v5913 = vpack.c.bf16 %v5860, %v5859
  %v5914 = vpack.c.bf16 %v5862, %v5861
  %v5915 = vpack.c.bf16 %v5864, %v5863
  %v5916 = vpack.c.bf16 %v5866, %v5865
  %v5917 = vpack.c.bf16 %v5868, %v5867
  %v5918 = vpack.c.bf16 %v5870, %v5869
  %v5919 = vpack.c.bf16 %v5872, %v5871
  %v5920 = vpack.c.bf16 %v5874, %v5873
  %v5921 = vpack.c.bf16 %v5876, %v5875
  %v5922 = vpack.c.bf16 %v5878, %v5877
  %v5923 = vpack.c.bf16 %v5880, %v5879
  %v5924 = vpack.c.bf16 %v5882, %v5881
  %v5925 = vpack.c.bf16 %v5884, %v5883
  %v5926 = vpack.c.bf16 %v5886, %v5885
  %v5927 = vpack.c.bf16 %v5888, %v5887
  %v5928 = vpack.c.bf16 %v5890, %v5889
  %v5929 = vpack.c.bf16 %v5892, %v5891
  %v5930 = vpack.c.bf16 %v5894, %v5893
  %v5931 = vpack.c.bf16 %v5896, %v5895
  %v5932 = vpack.c.bf16 %v5898, %v5897
  %v5933 = vpack.c.bf16 %v5900, %v5899
  %v5934 = vld [vmem:[%s6] sm:$0xff]
  %5936 = vset.pattern.permute.xlu0 0
  %5937 = vperm.xlu0 %5936, %v5934
  %v5938 = vpop.permute.xlu0 %5937
  %v5941 = vsel %vm3930, %v5901, 0
  %v5944 = vsel %vm3930, %v5902, 0
  %v5947 = vsel %vm3930, %v5903, 0
  %v5950 = vsel %vm3930, %v5904, 0
  %v5953 = vsel %vm3930, %v5905, 0
  %v5956 = vsel %vm3930, %v5906, 0
  %v5959 = vsel %vm3930, %v5907, 0
  %v5962 = vsel %vm3930, %v5908, 0
  %v5965 = vsel %vm3930, %v5909, 0
  %v5968 = vsel %vm3930, %v5910, 0
  %v5971 = vsel %vm3930, %v5911, 0
  %v5974 = vsel %vm3930, %v5912, 0
  %v5977 = vsel %vm3930, %v5913, 0
  %v5980 = vsel %vm3930, %v5914, 0
  %v5983 = vsel %vm3930, %v5915, 0
  %v5986 = vsel %vm3930, %v5916, 0
  %v5989 = vsel %vm3930, %v5917, 0
  %v5992 = vsel %vm3930, %v5918, 0
  %v5995 = vsel %vm3930, %v5919, 0
  %v5998 = vsel %vm3930, %v5920, 0
  %v6001 = vsel %vm3930, %v5921, 0
  %v6004 = vsel %vm3930, %v5922, 0
  %v6007 = vsel %vm3930, %v5923, 0
  %v6010 = vsel %vm3930, %v5924, 0
  %v6013 = vsel %vm3930, %v5925, 0
  %v6016 = vsel %vm3930, %v5926, 0
  %v6019 = vsel %vm3930, %v5927, 0
  %v6022 = vsel %vm3930, %v5928, 0
  %v6025 = vsel %vm3930, %v5929, 0
  %v6028 = vsel %vm3930, %v5930, 0
  %v6031 = vsel %vm3930, %v5931, 0
  %v6034 = vsel %vm3930, %v5932, 0
  %v6037 = vsel %vm3930, %v5933, 0
  %6039 = vmatprep.subr.bf16.mxu0 0
  %6040 = vmatpush1.bf16.xpose.msra.mxu0 %v5944
  %6041 = vmatprep.subr.bf16.mxu0 0
  %6042 = vmatpush1.bf16.xpose.msra.mxu0 %v5947
  %6043 = vmatprep.subr.bf16.mxu0 0
  %6044 = vmatpush1.bf16.xpose.msra.mxu0 %v5950
  %6045 = vmatprep.subr.bf16.mxu0 0
  %6046 = vmatpush1.bf16.xpose.msra.mxu0 %v5953
  %6047 = vmatprep.subr.bf16.mxu0 0
  %6048 = vmatpush1.bf16.xpose.msra.mxu0 %v5956
  %6049 = vmatprep.subr.bf16.mxu0 0
  %6050 = vmatpush1.bf16.xpose.msra.mxu0 %v5959
  %6051 = vmatprep.subr.bf16.mxu0 0
  %6052 = vmatpush1.bf16.xpose.msra.mxu0 %v5962
  %6053 = vmatprep.subr.bf16.mxu0 0
  %6054 = vmatpush1.bf16.xpose.msra.mxu0 %v5965
  %6055 = vmatprep.subr.bf16.mxu0 0
  %6056 = vmatpush1.bf16.xpose.msra.mxu0 %v5968
  %6057 = vmatprep.subr.bf16.mxu0 0
  %6058 = vmatpush1.bf16.xpose.msra.mxu0 %v5971
  %6059 = vmatprep.subr.bf16.mxu0 0
  %6060 = vmatpush1.bf16.xpose.msra.mxu0 %v5974
  %6061 = vmatprep.subr.bf16.mxu0 0
  %6062 = vmatpush1.bf16.xpose.msra.mxu0 %v5977
  %6063 = vmatprep.subr.bf16.mxu0 0
  %6064 = vmatpush1.bf16.xpose.msra.mxu0 %v5980
  %6065 = vmatprep.subr.bf16.mxu0 0
  %6066 = vmatpush1.bf16.xpose.msra.mxu0 %v5983
  %6067 = vmatprep.subr.bf16.mxu0 0
  %6068 = vmatpush1.bf16.xpose.msra.mxu0 %v5986
  %6069 = vmatprep.subr.bf16.mxu0 0
  %6070 = vmatpush1.bf16.xpose.msra.mxu0 %v5989
  %6071 = vmatprep.mubr.bf16.mxu0 0
  %6072 = vmatmul.mubr.bf16.gmra.mrb[0].mxu0 %v5941
  %v6073 = vpop.f32.mrb[0].mxu0
  %v6074 = vadd.f32 %v5938, %v6073
  %v6075 = vpop.f32.mrb[0].mxu0
  %v6076 = vadd.f32 %v5938, %v6075
  %v6077 = vpop.f32.mrb[0].mxu0
  %v6078 = vpop.f32.mrb[0].mxu0
  %6079 = vdwg.mxu0
  %6080 = vmatprep.subr.bf16.mxu0 0
  %6081 = vmatpush1.bf16.xpose.msra.mxu0 %v5992
  %6082 = vmatprep.subr.bf16.mxu0 0
  %6083 = vmatpush1.bf16.xpose.msra.mxu0 %v5995
  %6084 = vmatprep.subr.bf16.mxu0 0
  %6085 = vmatpush1.bf16.xpose.msra.mxu0 %v5998
  %6086 = vmatprep.subr.bf16.mxu0 0
  %6087 = vmatpush1.bf16.xpose.msra.mxu0 %v6001
  %6088 = vmatprep.subr.bf16.mxu0 0
  %6089 = vmatpush1.bf16.xpose.msra.mxu0 %v6004
  %6090 = vmatprep.subr.bf16.mxu0 0
  %6091 = vmatpush1.bf16.xpose.msra.mxu0 %v6007
  %6092 = vmatprep.subr.bf16.mxu0 0
  %6093 = vmatpush1.bf16.xpose.msra.mxu0 %v6010
  %6094 = vmatprep.subr.bf16.mxu0 0
  %6095 = vmatpush1.bf16.xpose.msra.mxu0 %v6013
  %6096 = vmatprep.subr.bf16.mxu0 0
  %6097 = vmatpush1.bf16.xpose.msra.mxu0 %v6016
  %6098 = vmatprep.subr.bf16.mxu0 0
  %6099 = vmatpush1.bf16.xpose.msra.mxu0 %v6019
  %6100 = vmatprep.subr.bf16.mxu0 0
  %6101 = vmatpush1.bf16.xpose.msra.mxu0 %v6022
  %6102 = vmatprep.subr.bf16.mxu0 0
  %6103 = vmatpush1.bf16.xpose.msra.mxu0 %v6025
  %6104 = vmatprep.subr.bf16.mxu0 0
  %6105 = vmatpush1.bf16.xpose.msra.mxu0 %v6028
  %6106 = vmatprep.subr.bf16.mxu0 0
  %6107 = vmatpush1.bf16.xpose.msra.mxu0 %v6031
  %6108 = vmatprep.subr.bf16.mxu0 0
  %6109 = vmatpush1.bf16.xpose.msra.mxu0 %v6034
  %6110 = vmatprep.subr.bf16.mxu0 0
  %6111 = vmatpush1.bf16.xpose.msra.mxu0 %v6037
  %6112 = vmatprep.mubr.bf16.mxu0 0
  %6113 = vmatmul.mubr.bf16.gmra.mrb[0].mxu0 %v5941
  %v6114 = vpop.f32.mrb[0].mxu0
  %v6115 = vadd.f32 %v5938, %v6114
  %v6116 = vpop.f32.mrb[0].mxu0
  %v6117 = vadd.f32 %v5938, %v6116
  %v6118 = vpop.f32.mrb[0].mxu0
  %v6119 = vpop.f32.mrb[0].mxu0
  %6120 = vdwg.mxu0
  %6121 = vst [vmem:[%s7] sm:$0xff] %v6074
  %6122 = vst [vmem:[%s7 + $0x8] sm:$0xff] %v6076
  %6123 = vst [vmem:[%s7 + $0x10] sm:$0xff] %v6115
  %6124 = vst [vmem:[%s7 + $0x18] sm:$0xff] %v6117
  // Predicated region
  $region30: #{aux_semantic_seg_head.1} parent=0 // pred_check
    _
  $region31: #{aux_semantic_seg_head.1} parent=0 // pred_check_branch
    %6126 = sbr.rel (0) target = $region33
  $region32: #{aux_semantic_seg_head.1} parent=0 // pred_region
    _
  $region33: #{aux_semantic_seg_head.1} parent=0 // pred_fallthru
    _
  // Predicated region
  $region34: #{aux_semantic_seg_head.1} parent=0 // pred_check
    _
  $region35: #{aux_semantic_seg_head.1} parent=0 // pred_check_branch
    %6128 = sbr.rel (0) target = $region37
  $region36: #{aux_semantic_seg_head.1} parent=0 // pred_region
    _
  $region37: #{aux_semantic_seg_head.1} parent=0 // pred_fallthru
    _

</llo_original>
